<compile_context>
chip_gen: v7x
topology: tpu7x:2x2x1
jax: 0.10.0
libtpu: 0.0.40
codegen_flags: <defaults>
</compile_context>

<pallas_src>
import functools

import jax
import jax.numpy as jnp
from jax import lax
from jax.experimental import pallas as pl
from jax.experimental.pallas import tpu as pltpu

VMEM_SPEC = pl.BlockSpec(memory_space=pltpu.MemorySpace.VMEM)
SMEM_SPEC = pl.BlockSpec(memory_space=pltpu.MemorySpace.SMEM)


# --------------------- layer-0: embedding + input projection ---------------------
def embed_proj_kernel(ids_ref, table_ref, out_ref):
    # ids_ref:   (N, 1) int32 token ids, time-major rows (row = t*B + b)
    # table_ref: (6, V, H) folded table  emb @ W_ih_{dir,gate}^T + b_ih  (f_r,f_z,f_n,b_r,b_z,b_n)
    # out_ref:   (6, N, H) layer-0 per-gate input projections
    n = out_ref.shape[1]
    v = table_ref.shape[1]
    onehot = (lax.broadcasted_iota(jnp.int32, (n, v), 1)
              == ids_ref[...]).astype(jnp.float32)            # (N, V) one-hot -> MXU matmul
    for k in range(6):                                        # static, unrolled
        out_ref[k] = jnp.dot(onehot, table_ref[k], preferred_element_type=jnp.float32)
    # TODO(synk): for large vocabularies keep the folded table in HBM (memory_space=pl.ANY) and
    # gather rows via scalar-prefetch / DMA instead of the one-hot matmul.


def embed_input_proj(ids_tm, table0):
    n = ids_tm.shape[0]
    h = table0.shape[2]
    return pl.pallas_call(
        embed_proj_kernel,
        out_shape=jax.ShapeDtypeStruct((6, n, h), jnp.float32),
        in_specs=[VMEM_SPEC, VMEM_SPEC],
        out_specs=VMEM_SPEC,
    )(ids_tm, table0)


# --------------------- layers >= 1: hoisted input projection ---------------------
def input_proj_kernel(xf_ref, xb_ref, wa_ref, wb_ref, b_ref, out_ref):
    # xf/xb: (N, H) previous-layer fwd/bwd outputs (time-major rows)
    # wa/wb: (6, H, H) input weights acting on the fwd / bwd halves of the (never-built) concat
    # b:     (6, 1, H) ; out: (6, N, H).  One big MXU matmul per gate, hoisted out of the recurrence.
    xf = xf_ref[...]
    xb = xb_ref[...]
    for k in range(6):
        out_ref[k] = (jnp.dot(xf, wa_ref[k], preferred_element_type=jnp.float32)
                      + jnp.dot(xb, wb_ref[k], preferred_element_type=jnp.float32)
                      + b_ref[k])


def input_projection(xf, xb, wa, wb, b):
    n, h = xf.shape
    return pl.pallas_call(
        input_proj_kernel,
        out_shape=jax.ShapeDtypeStruct((6, n, h), jnp.float32),
        in_specs=[VMEM_SPEC] * 5,
        out_specs=VMEM_SPEC,
    )(xf, xb, wa, wb, b)


# --------------------------- fused bidirectional GRU ---------------------------
def bigru_kernel(gxf_ref, gxb_ref, whhf_ref, whhb_ref, bhhf_ref, bhhb_ref,
                 outf_ref, outb_ref, hf_scr, hb_scr):
    # gxf/gxb : (3, tT, B, H) per-gate input projections for this time chunk
    #           (gxb's BlockSpec walks chunks in reverse order)
    # whh*    : (3, H, H) recurrent weights (gate order r, z, n), bhh*: (3, 1, H)
    # outf/outb: (tT, B, H) per-direction outputs ; hf/hb scratch: (B, H) carry across grid steps
    t_chunk = outf_ref.shape[0]

    @pl.when(pl.program_id(0) == 0)
    def _init():
        hf_scr[...] = jnp.zeros_like(hf_scr)
        hb_scr[...] = jnp.zeros_like(hb_scr)

    whh_f = whhf_ref[...]
    whh_b = whhb_ref[...]
    bhh_f = bhhf_ref[...]
    bhh_b = bhhb_ref[...]

    def cell(gx_r, gx_z, gx_n, h, whh, bhh):
        # PyTorch GRU: r=sig(gx_r+gh_r), z=sig(gx_z+gh_z), n=tanh(gx_n + r*(W_hn h + b_hn)),
        # h' = (1-z)*n + z*h   (gx_* already include b_ih)
        gh_r = jnp.dot(h, whh[0], preferred_element_type=jnp.float32) + bhh[0]
        gh_z = jnp.dot(h, whh[1], preferred_element_type=jnp.float32) + bhh[1]
        gh_n = jnp.dot(h, whh[2], preferred_element_type=jnp.float32) + bhh[2]
        r = jax.nn.sigmoid(gx_r + gh_r)
        z = jax.nn.sigmoid(gx_z + gh_z)
        n = jnp.tanh(gx_n + r * gh_n)
        return (1.0 - z) * n + z * h

    def step(tt, carry):
        h_f, h_b = carry
        # forward direction: local time ascending
        h_f = cell(gxf_ref[0, tt], gxf_ref[1, tt], gxf_ref[2, tt], h_f, whh_f, bhh_f)
        outf_ref[tt] = h_f
        # backward direction: local time descending (this block is global chunk G-1-g)
        tb = t_chunk - 1 - tt
        h_b = cell(gxb_ref[0, tb], gxb_ref[1, tb], gxb_ref[2, tb], h_b, whh_b, bhh_b)
        outb_ref[tb] = h_b
        return h_f, h_b

    h_f, h_b = lax.fori_loop(0, t_chunk, step,
                             (hf_scr[...], hb_scr[...]),
                             unroll=min(t_chunk, 8))
    hf_scr[...] = h_f
    hb_scr[...] = h_b


def bigru_layer(gx, whh_f, whh_b, bhh_f, bhh_b, t_chunk):
    # gx: (6, T, B, H)  ->  out_f, out_b each (T, B, H)
    _, seq, bsz, hidden = gx.shape
    grid_t = seq // t_chunk

    gxf_spec = pl.BlockSpec((3, t_chunk, bsz, hidden), lambda g: (0, g, 0, 0))
    gxb_spec = pl.BlockSpec((3, t_chunk, bsz, hidden), lambda g: (1, grid_t - 1 - g, 0, 0))
    w_spec = pl.BlockSpec((3, hidden, hidden), lambda g: (0, 0, 0))
    b_spec = pl.BlockSpec((3, 1, hidden), lambda g: (0, 0, 0))
    outf_spec = pl.BlockSpec((t_chunk, bsz, hidden), lambda g: (g, 0, 0))
    outb_spec = pl.BlockSpec((t_chunk, bsz, hidden), lambda g: (grid_t - 1 - g, 0, 0))

    out_shape = (jax.ShapeDtypeStruct((seq, bsz, hidden), jnp.float32),
                 jax.ShapeDtypeStruct((seq, bsz, hidden), jnp.float32))

    return pl.pallas_call(
        bigru_kernel,
        out_shape=out_shape,
        grid_spec=pltpu.PrefetchScalarGridSpec(
            num_scalar_prefetch=0,
            grid=(grid_t,),
            in_specs=[gxf_spec, gxb_spec, w_spec, w_spec, b_spec, b_spec],
            out_specs=(outf_spec, outb_spec),
            scratch_shapes=[pltpu.VMEM((bsz, hidden), jnp.float32),
                            pltpu.VMEM((bsz, hidden), jnp.float32)],
        ),
        compiler_params=pltpu.CompilerParams(dimension_semantics=("arbitrary",)),
    )(gx, gx, whh_f, whh_b, bhh_f, bhh_b)


# --------------------------------- linear head ---------------------------------
def head_kernel(hf_ref, hb_ref, wf_ref, wb_ref, b_ref, out_ref):
    # Linear(2H -> 1) as two MXU matmuls on the split fwd/bwd halves (concat never materialized).
    out_ref[...] = (jnp.dot(hf_ref[...], wf_ref[...], preferred_element_type=jnp.float32)
                    + jnp.dot(hb_ref[...], wb_ref[...], preferred_element_type=jnp.float32)
                    + b_ref[0])


def linear_head(hf, hb, wf, wb, b):
    n = hf.shape[0]
    return pl.pallas_call(
        head_kernel,
        out_shape=jax.ShapeDtypeStruct((n, 1), jnp.float32),
        in_specs=[VMEM_SPEC, VMEM_SPEC, VMEM_SPEC, VMEM_SPEC, SMEM_SPEC],
        out_specs=VMEM_SPEC,
    )(hf, hb, wf, wb, b)


# ------------------------------- model forward ---------------------------------
def _pick_t_chunk(seq_len, target=64):
    c = min(seq_len, target)
    while seq_len % c:
        c -= 1
    return c


def extractive_model_forward(ids, params, t_chunk=None):
    """ids: (B, T) int32 token ids  ->  (B, T) float32 scores (matches ExtractiveModel.forward)."""
    bsz, seq = ids.shape
    hidden = params["head"]["wf"].shape[0]
    n = seq * bsz
    if t_chunk is None:
        t_chunk = _pick_t_chunk(seq)
    assert seq % t_chunk == 0

    # time-major flattening: row t*B + b  <->  ids[b, t]
    ids_tm = jnp.transpose(ids).reshape(n, 1).astype(jnp.int32)

    # layer 0: embedding lookup fused with the (folded) input projection
    gx2d = embed_input_proj(ids_tm, params["table0"])                 # (6, N, H)

    out_f = out_b = None
    for li in range(len(params["rec"])):
        if li > 0:
            ip = params["inproj"][li]
            gx2d = input_projection(out_f.reshape(n, hidden), out_b.reshape(n, hidden),
                                    ip["wA"], ip["wB"], ip["b"])      # (6, N, H)
        gx = gx2d.reshape(6, seq, bsz, hidden)
        rec = params["rec"][li]
        out_f, out_b = bigru_layer(gx, rec["whh_f"], rec["whh_b"],
                                   rec["bhh_f"], rec["bhh_b"], t_chunk)
        # TODO(synk): nn.GRU inter-layer dropout is training-only (eval forward is a no-op); omitted.

    hd = params["head"]
    scores = linear_head(out_f.reshape(n, hidden), out_b.reshape(n, hidden),
                         hd["wf"], hd["wb"], hd["b"])                 # (N, 1) time-major
    return jnp.transpose(scores.reshape(seq, bsz))                    # (B, T)


# ------------------------- parameter prep (one-time) ----------------------------
def prepare_params(emb, gru_layers, lin_w, lin_b):
    """Convert PyTorch-layout GRU/linear params to the per-gate, pre-transposed kernel layout."""
    hidden = gru_layers[0][0]["w_hh"].shape[1]

    def gate_t(w):   # (3H, K) -> (3, K, H): per-gate, transposed
        return jnp.stack([jnp.transpose(w[g * hidden:(g + 1) * hidden, :]) for g in range(3)], 0)

    def gate_b(b):   # (3H,) -> (3, 1, H)
        return b.reshape(3, 1, hidden)

    # layer 0: fold  emb @ W_ih^T + b_ih  into a (6, V, H) table (order f_r,f_z,f_n,b_r,b_z,b_n)
    rows = []
    for p in gru_layers[0]:
        wt = gate_t(p["w_ih"])                     # (3, E, H)
        bi = gate_b(p["b_ih"])
        for g in range(3):
            rows.append(jnp.dot(emb, wt[g]) + bi[g])
    table0 = jnp.stack(rows, 0)                    # (6, V, H)

    # layers >= 1: split W_ih over the fwd/bwd halves of the concatenated input
    inproj = [None]
    for layer in gru_layers[1:]:
        wa, wb, bb = [], [], []
        for p in layer:
            wt = gate_t(p["w_ih"])                 # (3, 2H, H)
            bi = gate_b(p["b_ih"])
            for g in range(3):
                wa.append(wt[g][:hidden, :])       # acts on forward features
                wb.append(wt[g][hidden:, :])       # acts on backward features
                bb.append(bi[g])
        inproj.append({"wA": jnp.stack(wa, 0), "wB": jnp.stack(wb, 0), "b": jnp.stack(bb, 0)})

    rec = []
    for fwd_p, bwd_p in gru_layers:
        rec.append({"whh_f": gate_t(fwd_p["w_hh"]), "whh_b": gate_t(bwd_p["w_hh"]),
                    "bhh_f": gate_b(fwd_p["b_hh"]), "bhh_b": gate_b(bwd_p["b_hh"])})

    head = {"wf": jnp.transpose(lin_w[:, :hidden]),   # (H, 1)
            "wb": jnp.transpose(lin_w[:, hidden:]),   # (H, 1)
            "b": lin_b}                               # (1,)
    return {"table0": table0, "inproj": inproj, "rec": rec, "head": head}


# ---------------------------- deterministic params ------------------------------
def init_params(key, vocab, emb_size, hidden, num_layers, padding_idx=0):
    keys = iter(jax.random.split(key, 4 + num_layers * 2 * 4))
    nxt = lambda: next(keys)

    emb = jax.random.normal(nxt(), (vocab, emb_size), jnp.float32) * 0.1
    emb = emb.at[padding_idx].set(0.0)  # padding row

    bound = 1.0 / float(hidden) ** 0.5

    def u(shape):
        return jax.random.uniform(nxt(), shape, jnp.float32, -bound, bound)

    gru_layers = []
    for layer in range(num_layers):
        in_size = emb_size if layer == 0 else 2 * hidden
        directions = []
        for _ in range(2):  # forward, reverse
            directions.append(dict(
                w_ih=u((3 * hidden, in_size)),
                w_hh=u((3 * hidden, hidden)),
                b_ih=u((3 * hidden,)),
                b_hh=u((3 * hidden,)),
            ))
        gru_layers.append(tuple(directions))

    lin_w = u((1, 2 * hidden))
    lin_b = u((1,))
    return emb, gru_layers, lin_w, lin_b


if __name__ == "__main__":
    VOCAB, EMB_SIZE, HIDDEN, NUM_LAYERS = 50, 32, 32, 2
    BATCH, SEQ = 2, 8

    key = jax.random.PRNGKey(0)
    k_params, k_ids = jax.random.split(key)

    raw = init_params(k_params, VOCAB, EMB_SIZE, HIDDEN, NUM_LAYERS)
    params = prepare_params(*raw)
    ids = jax.random.randint(k_ids, (BATCH, SEQ), 0, VOCAB, dtype=jnp.int32)

    # t_chunk=4 -> time grid of 2 so the cross-chunk hidden-state carry path is exercised.
    fwd = jax.jit(functools.partial(extractive_model_forward, t_chunk=4))
    out = jax.block_until_ready(fwd(ids, params))
    assert out.shape == (BATCH, SEQ) and out.dtype == jnp.float32

    print("KERNEL_OK")
</pallas_src>

<mosaic_0001>
module attributes {stable_mosaic.version = 11 : i64} {
  func.func @embed_proj_kernel(%arg0: memref<16x1xi32, #tpu.memory_space<vmem>>, %arg1: memref<6x50x32xf32, #tpu.memory_space<vmem>>, %arg2: memref<6x16x32xf32, #tpu.memory_space<vmem>>) attributes {dimension_semantics = [], scalar_prefetch = 0 : i64, scratch_operands = 0 : i64, tpu.core_type = #tpu.core_type<tc>} {
    %0 = tpu.iota {dimensions = array<i32: 1>} : vector<16x50xi32>
    %c0 = arith.constant 0 : index
    %c0_0 = arith.constant 0 : index
    %1 = vector.load %arg0[%c0, %c0_0] : memref<16x1xi32, #tpu.memory_space<vmem>>, vector<16x1xi32>
    %2 = vector.broadcast %1 : vector<16x1xi32> to vector<16x50xi32>
    %3 = arith.cmpi eq, %0, %2 : vector<16x50xi32>
    %4 = arith.extui %3 : vector<16x50xi1> to vector<16x50xi32>
    %5 = arith.sitofp %4 : vector<16x50xi32> to vector<16x50xf32>
    %c0_1 = arith.constant 0 : index
    %c0_2 = arith.constant 0 : index
    %c0_3 = arith.constant 0 : index
    %6 = vector.load %arg1[%c0_1, %c0_2, %c0_3] : memref<6x50x32xf32, #tpu.memory_space<vmem>>, vector<1x50x32xf32>
    %7 = vector.shape_cast %6 : vector<1x50x32xf32> to vector<50x32xf32>
    %cst = arith.constant dense<0.000000e+00> : vector<16x32xf32>
    %8 = tpu.matmul %5, %7, %cst {dimension_numbers = #tpu.dot_dimension_numbers<[1], [0], [0], [1], [0, 0, 1, 1], [], []>} : vector<16x50xf32>, vector<50x32xf32>, vector<16x32xf32> -> vector<16x32xf32>
    %c0_4 = arith.constant 0 : index
    %c0_5 = arith.constant 0 : index
    %c0_6 = arith.constant 0 : index
    %9 = vector.load %arg2[%c0_4, %c0_5, %c0_6] : memref<6x16x32xf32, #tpu.memory_space<vmem>>, vector<1x16x32xf32>
    %10 = vector.shape_cast %9 : vector<1x16x32xf32> to vector<16x32xf32>
    %11 = vector.shape_cast %8 : vector<16x32xf32> to vector<1x16x32xf32>
    tpu.vector_store %arg2[%c0_4, %c0_5, %c0_6], %11 {strides = array<i32>} : memref<6x16x32xf32, #tpu.memory_space<vmem>>, vector<1x16x32xf32>,
    %c1 = arith.constant 1 : index
    %c0_7 = arith.constant 0 : index
    %c0_8 = arith.constant 0 : index
    %12 = vector.load %arg1[%c1, %c0_7, %c0_8] : memref<6x50x32xf32, #tpu.memory_space<vmem>>, vector<1x50x32xf32>
    %13 = vector.shape_cast %12 : vector<1x50x32xf32> to vector<50x32xf32>
    %cst_9 = arith.constant dense<0.000000e+00> : vector<16x32xf32>
    %14 = tpu.matmul %5, %13, %cst_9 {dimension_numbers = #tpu.dot_dimension_numbers<[1], [0], [0], [1], [0, 0, 1, 1], [], []>} : vector<16x50xf32>, vector<50x32xf32>, vector<16x32xf32> -> vector<16x32xf32>
    %c1_10 = arith.constant 1 : index
    %c0_11 = arith.constant 0 : index
    %c0_12 = arith.constant 0 : index
    %15 = vector.load %arg2[%c1_10, %c0_11, %c0_12] : memref<6x16x32xf32, #tpu.memory_space<vmem>>, vector<1x16x32xf32>
    %16 = vector.shape_cast %15 : vector<1x16x32xf32> to vector<16x32xf32>
    %17 = vector.shape_cast %14 : vector<16x32xf32> to vector<1x16x32xf32>
    tpu.vector_store %arg2[%c1_10, %c0_11, %c0_12], %17 {strides = array<i32>} : memref<6x16x32xf32, #tpu.memory_space<vmem>>, vector<1x16x32xf32>,
    %c2 = arith.constant 2 : index
    %c0_13 = arith.constant 0 : index
    %c0_14 = arith.constant 0 : index
    %18 = vector.load %arg1[%c2, %c0_13, %c0_14] : memref<6x50x32xf32, #tpu.memory_space<vmem>>, vector<1x50x32xf32>
    %19 = vector.shape_cast %18 : vector<1x50x32xf32> to vector<50x32xf32>
    %cst_15 = arith.constant dense<0.000000e+00> : vector<16x32xf32>
    %20 = tpu.matmul %5, %19, %cst_15 {dimension_numbers = #tpu.dot_dimension_numbers<[1], [0], [0], [1], [0, 0, 1, 1], [], []>} : vector<16x50xf32>, vector<50x32xf32>, vector<16x32xf32> -> vector<16x32xf32>
    %c2_16 = arith.constant 2 : index
    %c0_17 = arith.constant 0 : index
    %c0_18 = arith.constant 0 : index
    %21 = vector.load %arg2[%c2_16, %c0_17, %c0_18] : memref<6x16x32xf32, #tpu.memory_space<vmem>>, vector<1x16x32xf32>
    %22 = vector.shape_cast %21 : vector<1x16x32xf32> to vector<16x32xf32>
    %23 = vector.shape_cast %20 : vector<16x32xf32> to vector<1x16x32xf32>
    tpu.vector_store %arg2[%c2_16, %c0_17, %c0_18], %23 {strides = array<i32>} : memref<6x16x32xf32, #tpu.memory_space<vmem>>, vector<1x16x32xf32>,
    %c3 = arith.constant 3 : index
    %c0_19 = arith.constant 0 : index
    %c0_20 = arith.constant 0 : index
    %24 = vector.load %arg1[%c3, %c0_19, %c0_20] : memref<6x50x32xf32, #tpu.memory_space<vmem>>, vector<1x50x32xf32>
    %25 = vector.shape_cast %24 : vector<1x50x32xf32> to vector<50x32xf32>
    %cst_21 = arith.constant dense<0.000000e+00> : vector<16x32xf32>
    %26 = tpu.matmul %5, %25, %cst_21 {dimension_numbers = #tpu.dot_dimension_numbers<[1], [0], [0], [1], [0, 0, 1, 1], [], []>} : vector<16x50xf32>, vector<50x32xf32>, vector<16x32xf32> -> vector<16x32xf32>
    %c3_22 = arith.constant 3 : index
    %c0_23 = arith.constant 0 : index
    %c0_24 = arith.constant 0 : index
    %27 = vector.load %arg2[%c3_22, %c0_23, %c0_24] : memref<6x16x32xf32, #tpu.memory_space<vmem>>, vector<1x16x32xf32>
    %28 = vector.shape_cast %27 : vector<1x16x32xf32> to vector<16x32xf32>
    %29 = vector.shape_cast %26 : vector<16x32xf32> to vector<1x16x32xf32>
    tpu.vector_store %arg2[%c3_22, %c0_23, %c0_24], %29 {strides = array<i32>} : memref<6x16x32xf32, #tpu.memory_space<vmem>>, vector<1x16x32xf32>,
    %c4 = arith.constant 4 : index
    %c0_25 = arith.constant 0 : index
    %c0_26 = arith.constant 0 : index
    %30 = vector.load %arg1[%c4, %c0_25, %c0_26] : memref<6x50x32xf32, #tpu.memory_space<vmem>>, vector<1x50x32xf32>
    %31 = vector.shape_cast %30 : vector<1x50x32xf32> to vector<50x32xf32>
    %cst_27 = arith.constant dense<0.000000e+00> : vector<16x32xf32>
    %32 = tpu.matmul %5, %31, %cst_27 {dimension_numbers = #tpu.dot_dimension_numbers<[1], [0], [0], [1], [0, 0, 1, 1], [], []>} : vector<16x50xf32>, vector<50x32xf32>, vector<16x32xf32> -> vector<16x32xf32>
    %c4_28 = arith.constant 4 : index
    %c0_29 = arith.constant 0 : index
    %c0_30 = arith.constant 0 : index
    %33 = vector.load %arg2[%c4_28, %c0_29, %c0_30] : memref<6x16x32xf32, #tpu.memory_space<vmem>>, vector<1x16x32xf32>
    %34 = vector.shape_cast %33 : vector<1x16x32xf32> to vector<16x32xf32>
    %35 = vector.shape_cast %32 : vector<16x32xf32> to vector<1x16x32xf32>
    tpu.vector_store %arg2[%c4_28, %c0_29, %c0_30], %35 {strides = array<i32>} : memref<6x16x32xf32, #tpu.memory_space<vmem>>, vector<1x16x32xf32>,
    %c5 = arith.constant 5 : index
    %c0_31 = arith.constant 0 : index
    %c0_32 = arith.constant 0 : index
    %36 = vector.load %arg1[%c5, %c0_31, %c0_32] : memref<6x50x32xf32, #tpu.memory_space<vmem>>, vector<1x50x32xf32>
    %37 = vector.shape_cast %36 : vector<1x50x32xf32> to vector<50x32xf32>
    %cst_33 = arith.constant dense<0.000000e+00> : vector<16x32xf32>
    %38 = tpu.matmul %5, %37, %cst_33 {dimension_numbers = #tpu.dot_dimension_numbers<[1], [0], [0], [1], [0, 0, 1, 1], [], []>} : vector<16x50xf32>, vector<50x32xf32>, vector<16x32xf32> -> vector<16x32xf32>
    %c5_34 = arith.constant 5 : index
    %c0_35 = arith.constant 0 : index
    %c0_36 = arith.constant 0 : index
    %39 = vector.load %arg2[%c5_34, %c0_35, %c0_36] : memref<6x16x32xf32, #tpu.memory_space<vmem>>, vector<1x16x32xf32>
    %40 = vector.shape_cast %39 : vector<1x16x32xf32> to vector<16x32xf32>
    %41 = vector.shape_cast %38 : vector<16x32xf32> to vector<1x16x32xf32>
    tpu.vector_store %arg2[%c5_34, %c0_35, %c0_36], %41 {strides = array<i32>} : memref<6x16x32xf32, #tpu.memory_space<vmem>>, vector<1x16x32xf32>,
    return
  }
}

module attributes {stable_mosaic.version = 11 : i64} {
  func.func @input_proj_kernel(%arg0: memref<16x32xf32, #tpu.memory_space<vmem>>, %arg1: memref<16x32xf32, #tpu.memory_space<vmem>>, %arg2: memref<6x32x32xf32, #tpu.memory_space<vmem>>, %arg3: memref<6x32x32xf32, #tpu.memory_space<vmem>>, %arg4: memref<6x1x32xf32, #tpu.memory_space<vmem>>, %arg5: memref<6x16x32xf32, #tpu.memory_space<vmem>>) attributes {dimension_semantics = [], scalar_prefetch = 0 : i64, scratch_operands = 0 : i64, tpu.core_type = #tpu.core_type<tc>} {
    %c0 = arith.constant 0 : index
    %c0_0 = arith.constant 0 : index
    %0 = vector.load %arg0[%c0, %c0_0] : memref<16x32xf32, #tpu.memory_space<vmem>>, vector<16x32xf32>
    %c0_1 = arith.constant 0 : index
    %c0_2 = arith.constant 0 : index
    %1 = vector.load %arg1[%c0_1, %c0_2] : memref<16x32xf32, #tpu.memory_space<vmem>>, vector<16x32xf32>
    %c0_3 = arith.constant 0 : index
    %c0_4 = arith.constant 0 : index
    %c0_5 = arith.constant 0 : index
    %2 = vector.load %arg2[%c0_3, %c0_4, %c0_5] : memref<6x32x32xf32, #tpu.memory_space<vmem>>, vector<1x32x32xf32>
    %3 = vector.shape_cast %2 : vector<1x32x32xf32> to vector<32x32xf32>
    %cst = arith.constant dense<0.000000e+00> : vector<16x32xf32>
    %4 = tpu.matmul %0, %3, %cst {dimension_numbers = #tpu.dot_dimension_numbers<[1], [0], [0], [1], [0, 0, 1, 1], [], []>} : vector<16x32xf32>, vector<32x32xf32>, vector<16x32xf32> -> vector<16x32xf32>
    %c0_6 = arith.constant 0 : index
    %c0_7 = arith.constant 0 : index
    %c0_8 = arith.constant 0 : index
    %5 = vector.load %arg3[%c0_6, %c0_7, %c0_8] : memref<6x32x32xf32, #tpu.memory_space<vmem>>, vector<1x32x32xf32>
    %6 = vector.shape_cast %5 : vector<1x32x32xf32> to vector<32x32xf32>
    %cst_9 = arith.constant dense<0.000000e+00> : vector<16x32xf32>
    %7 = tpu.matmul %1, %6, %cst_9 {dimension_numbers = #tpu.dot_dimension_numbers<[1], [0], [0], [1], [0, 0, 1, 1], [], []>} : vector<16x32xf32>, vector<32x32xf32>, vector<16x32xf32> -> vector<16x32xf32>
    %8 = arith.addf %4, %7 : vector<16x32xf32>
    %c0_10 = arith.constant 0 : index
    %c0_11 = arith.constant 0 : index
    %c0_12 = arith.constant 0 : index
    %9 = vector.load %arg4[%c0_10, %c0_11, %c0_12] : memref<6x1x32xf32, #tpu.memory_space<vmem>>, vector<1x1x32xf32>
    %10 = vector.shape_cast %9 : vector<1x1x32xf32> to vector<1x32xf32>
    %11 = vector.broadcast %10 : vector<1x32xf32> to vector<16x32xf32>
    %12 = arith.addf %8, %11 : vector<16x32xf32>
    %c0_13 = arith.constant 0 : index
    %c0_14 = arith.constant 0 : index
    %c0_15 = arith.constant 0 : index
    %13 = vector.load %arg5[%c0_13, %c0_14, %c0_15] : memref<6x16x32xf32, #tpu.memory_space<vmem>>, vector<1x16x32xf32>
    %14 = vector.shape_cast %13 : vector<1x16x32xf32> to vector<16x32xf32>
    %15 = vector.shape_cast %12 : vector<16x32xf32> to vector<1x16x32xf32>
    tpu.vector_store %arg5[%c0_13, %c0_14, %c0_15], %15 {strides = array<i32>} : memref<6x16x32xf32, #tpu.memory_space<vmem>>, vector<1x16x32xf32>,
    %c1 = arith.constant 1 : index
    %c0_16 = arith.constant 0 : index
    %c0_17 = arith.constant 0 : index
    %16 = vector.load %arg2[%c1, %c0_16, %c0_17] : memref<6x32x32xf32, #tpu.memory_space<vmem>>, vector<1x32x32xf32>
    %17 = vector.shape_cast %16 : vector<1x32x32xf32> to vector<32x32xf32>
    %cst_18 = arith.constant dense<0.000000e+00> : vector<16x32xf32>
    %18 = tpu.matmul %0, %17, %cst_18 {dimension_numbers = #tpu.dot_dimension_numbers<[1], [0], [0], [1], [0, 0, 1, 1], [], []>} : vector<16x32xf32>, vector<32x32xf32>, vector<16x32xf32> -> vector<16x32xf32>
    %c1_19 = arith.constant 1 : index
    %c0_20 = arith.constant 0 : index
    %c0_21 = arith.constant 0 : index
    %19 = vector.load %arg3[%c1_19, %c0_20, %c0_21] : memref<6x32x32xf32, #tpu.memory_space<vmem>>, vector<1x32x32xf32>
    %20 = vector.shape_cast %19 : vector<1x32x32xf32> to vector<32x32xf32>
    %cst_22 = arith.constant dense<0.000000e+00> : vector<16x32xf32>
    %21 = tpu.matmul %1, %20, %cst_22 {dimension_numbers = #tpu.dot_dimension_numbers<[1], [0], [0], [1], [0, 0, 1, 1], [], []>} : vector<16x32xf32>, vector<32x32xf32>, vector<16x32xf32> -> vector<16x32xf32>
    %22 = arith.addf %18, %21 : vector<16x32xf32>
    %c1_23 = arith.constant 1 : index
    %c0_24 = arith.constant 0 : index
    %c0_25 = arith.constant 0 : index
    %23 = vector.load %arg4[%c1_23, %c0_24, %c0_25] : memref<6x1x32xf32, #tpu.memory_space<vmem>>, vector<1x1x32xf32>
    %24 = vector.shape_cast %23 : vector<1x1x32xf32> to vector<1x32xf32>
    %25 = vector.broadcast %24 : vector<1x32xf32> to vector<16x32xf32>
    %26 = arith.addf %22, %25 : vector<16x32xf32>
    %c1_26 = arith.constant 1 : index
    %c0_27 = arith.constant 0 : index
    %c0_28 = arith.constant 0 : index
    %27 = vector.load %arg5[%c1_26, %c0_27, %c0_28] : memref<6x16x32xf32, #tpu.memory_space<vmem>>, vector<1x16x32xf32>
    %28 = vector.shape_cast %27 : vector<1x16x32xf32> to vector<16x32xf32>
    %29 = vector.shape_cast %26 : vector<16x32xf32> to vector<1x16x32xf32>
    tpu.vector_store %arg5[%c1_26, %c0_27, %c0_28], %29 {strides = array<i32>} : memref<6x16x32xf32, #tpu.memory_space<vmem>>, vector<1x16x32xf32>,
    %c2 = arith.constant 2 : index
    %c0_29 = arith.constant 0 : index
    %c0_30 = arith.constant 0 : index
    %30 = vector.load %arg2[%c2, %c0_29, %c0_30] : memref<6x32x32xf32, #tpu.memory_space<vmem>>, vector<1x32x32xf32>
    %31 = vector.shape_cast %30 : vector<1x32x32xf32> to vector<32x32xf32>
    %cst_31 = arith.constant dense<0.000000e+00> : vector<16x32xf32>
    %32 = tpu.matmul %0, %31, %cst_31 {dimension_numbers = #tpu.dot_dimension_numbers<[1], [0], [0], [1], [0, 0, 1, 1], [], []>} : vector<16x32xf32>, vector<32x32xf32>, vector<16x32xf32> -> vector<16x32xf32>
    %c2_32 = arith.constant 2 : index
    %c0_33 = arith.constant 0 : index
    %c0_34 = arith.constant 0 : index
    %33 = vector.load %arg3[%c2_32, %c0_33, %c0_34] : memref<6x32x32xf32, #tpu.memory_space<vmem>>, vector<1x32x32xf32>
    %34 = vector.shape_cast %33 : vector<1x32x32xf32> to vector<32x32xf32>
    %cst_35 = arith.constant dense<0.000000e+00> : vector<16x32xf32>
    %35 = tpu.matmul %1, %34, %cst_35 {dimension_numbers = #tpu.dot_dimension_numbers<[1], [0], [0], [1], [0, 0, 1, 1], [], []>} : vector<16x32xf32>, vector<32x32xf32>, vector<16x32xf32> -> vector<16x32xf32>
    %36 = arith.addf %32, %35 : vector<16x32xf32>
    %c2_36 = arith.constant 2 : index
    %c0_37 = arith.constant 0 : index
    %c0_38 = arith.constant 0 : index
    %37 = vector.load %arg4[%c2_36, %c0_37, %c0_38] : memref<6x1x32xf32, #tpu.memory_space<vmem>>, vector<1x1x32xf32>
    %38 = vector.shape_cast %37 : vector<1x1x32xf32> to vector<1x32xf32>
    %39 = vector.broadcast %38 : vector<1x32xf32> to vector<16x32xf32>
    %40 = arith.addf %36, %39 : vector<16x32xf32>
    %c2_39 = arith.constant 2 : index
    %c0_40 = arith.constant 0 : index
    %c0_41 = arith.constant 0 : index
    %41 = vector.load %arg5[%c2_39, %c0_40, %c0_41] : memref<6x16x32xf32, #tpu.memory_space<vmem>>, vector<1x16x32xf32>
    %42 = vector.shape_cast %41 : vector<1x16x32xf32> to vector<16x32xf32>
    %43 = vector.shape_cast %40 : vector<16x32xf32> to vector<1x16x32xf32>
    tpu.vector_store %arg5[%c2_39, %c0_40, %c0_41], %43 {strides = array<i32>} : memref<6x16x32xf32, #tpu.memory_space<vmem>>, vector<1x16x32xf32>,
    %c3 = arith.constant 3 : index
    %c0_42 = arith.constant 0 : index
    %c0_43 = arith.constant 0 : index
    %44 = vector.load %arg2[%c3, %c0_42, %c0_43] : memref<6x32x32xf32, #tpu.memory_space<vmem>>, vector<1x32x32xf32>
    %45 = vector.shape_cast %44 : vector<1x32x32xf32> to vector<32x32xf32>
    %cst_44 = arith.constant dense<0.000000e+00> : vector<16x32xf32>
    %46 = tpu.matmul %0, %45, %cst_44 {dimension_numbers = #tpu.dot_dimension_numbers<[1], [0], [0], [1], [0, 0, 1, 1], [], []>} : vector<16x32xf32>, vector<32x32xf32>, vector<16x32xf32> -> vector<16x32xf32>
    %c3_45 = arith.constant 3 : index
    %c0_46 = arith.constant 0 : index
    %c0_47 = arith.constant 0 : index
    %47 = vector.load %arg3[%c3_45, %c0_46, %c0_47] : memref<6x32x32xf32, #tpu.memory_space<vmem>>, vector<1x32x32xf32>
    %48 = vector.shape_cast %47 : vector<1x32x32xf32> to vector<32x32xf32>
    %cst_48 = arith.constant dense<0.000000e+00> : vector<16x32xf32>
    %49 = tpu.matmul %1, %48, %cst_48 {dimension_numbers = #tpu.dot_dimension_numbers<[1], [0], [0], [1], [0, 0, 1, 1], [], []>} : vector<16x32xf32>, vector<32x32xf32>, vector<16x32xf32> -> vector<16x32xf32>
    %50 = arith.addf %46, %49 : vector<16x32xf32>
    %c3_49 = arith.constant 3 : index
    %c0_50 = arith.constant 0 : index
    %c0_51 = arith.constant 0 : index
    %51 = vector.load %arg4[%c3_49, %c0_50, %c0_51] : memref<6x1x32xf32, #tpu.memory_space<vmem>>, vector<1x1x32xf32>
    %52 = vector.shape_cast %51 : vector<1x1x32xf32> to vector<1x32xf32>
    %53 = vector.broadcast %52 : vector<1x32xf32> to vector<16x32xf32>
    %54 = arith.addf %50, %53 : vector<16x32xf32>
    %c3_52 = arith.constant 3 : index
    %c0_53 = arith.constant 0 : index
    %c0_54 = arith.constant 0 : index
    %55 = vector.load %arg5[%c3_52, %c0_53, %c0_54] : memref<6x16x32xf32, #tpu.memory_space<vmem>>, vector<1x16x32xf32>
    %56 = vector.shape_cast %55 : vector<1x16x32xf32> to vector<16x32xf32>
    %57 = vector.shape_cast %54 : vector<16x32xf32> to vector<1x16x32xf32>
    tpu.vector_store %arg5[%c3_52, %c0_53, %c0_54], %57 {strides = array<i32>} : memref<6x16x32xf32, #tpu.memory_space<vmem>>, vector<1x16x32xf32>,
    %c4 = arith.constant 4 : index
    %c0_55 = arith.constant 0 : index
    %c0_56 = arith.constant 0 : index
    %58 = vector.load %arg2[%c4, %c0_55, %c0_56] : memref<6x32x32xf32, #tpu.memory_space<vmem>>, vector<1x32x32xf32>
    %59 = vector.shape_cast %58 : vector<1x32x32xf32> to vector<32x32xf32>
    %cst_57 = arith.constant dense<0.000000e+00> : vector<16x32xf32>
    %60 = tpu.matmul %0, %59, %cst_57 {dimension_numbers = #tpu.dot_dimension_numbers<[1], [0], [0], [1], [0, 0, 1, 1], [], []>} : vector<16x32xf32>, vector<32x32xf32>, vector<16x32xf32> -> vector<16x32xf32>
    %c4_58 = arith.constant 4 : index
    %c0_59 = arith.constant 0 : index
    %c0_60 = arith.constant 0 : index
    %61 = vector.load %arg3[%c4_58, %c0_59, %c0_60] : memref<6x32x32xf32, #tpu.memory_space<vmem>>, vector<1x32x32xf32>
    %62 = vector.shape_cast %61 : vector<1x32x32xf32> to vector<32x32xf32>
    %cst_61 = arith.constant dense<0.000000e+00> : vector<16x32xf32>
    %63 = tpu.matmul %1, %62, %cst_61 {dimension_numbers = #tpu.dot_dimension_numbers<[1], [0], [0], [1], [0, 0, 1, 1], [], []>} : vector<16x32xf32>, vector<32x32xf32>, vector<16x32xf32> -> vector<16x32xf32>
    %64 = arith.addf %60, %63 : vector<16x32xf32>
    %c4_62 = arith.constant 4 : index
    %c0_63 = arith.constant 0 : index
    %c0_64 = arith.constant 0 : index
    %65 = vector.load %arg4[%c4_62, %c0_63, %c0_64] : memref<6x1x32xf32, #tpu.memory_space<vmem>>, vector<1x1x32xf32>
    %66 = vector.shape_cast %65 : vector<1x1x32xf32> to vector<1x32xf32>
    %67 = vector.broadcast %66 : vector<1x32xf32> to vector<16x32xf32>
    %68 = arith.addf %64, %67 : vector<16x32xf32>
    %c4_65 = arith.constant 4 : index
    %c0_66 = arith.constant 0 : index
    %c0_67 = arith.constant 0 : index
    %69 = vector.load %arg5[%c4_65, %c0_66, %c0_67] : memref<6x16x32xf32, #tpu.memory_space<vmem>>, vector<1x16x32xf32>
    %70 = vector.shape_cast %69 : vector<1x16x32xf32> to vector<16x32xf32>
    %71 = vector.shape_cast %68 : vector<16x32xf32> to vector<1x16x32xf32>
    tpu.vector_store %arg5[%c4_65, %c0_66, %c0_67], %71 {strides = array<i32>} : memref<6x16x32xf32, #tpu.memory_space<vmem>>, vector<1x16x32xf32>,
    %c5 = arith.constant 5 : index
    %c0_68 = arith.constant 0 : index
    %c0_69 = arith.constant 0 : index
    %72 = vector.load %arg2[%c5, %c0_68, %c0_69] : memref<6x32x32xf32, #tpu.memory_space<vmem>>, vector<1x32x32xf32>
    %73 = vector.shape_cast %72 : vector<1x32x32xf32> to vector<32x32xf32>
    %cst_70 = arith.constant dense<0.000000e+00> : vector<16x32xf32>
    %74 = tpu.matmul %0, %73, %cst_70 {dimension_numbers = #tpu.dot_dimension_numbers<[1], [0], [0], [1], [0, 0, 1, 1], [], []>} : vector<16x32xf32>, vector<32x32xf32>, vector<16x32xf32> -> vector<16x32xf32>
    %c5_71 = arith.constant 5 : index
    %c0_72 = arith.constant 0 : index
    %c0_73 = arith.constant 0 : index
    %75 = vector.load %arg3[%c5_71, %c0_72, %c0_73] : memref<6x32x32xf32, #tpu.memory_space<vmem>>, vector<1x32x32xf32>
    %76 = vector.shape_cast %75 : vector<1x32x32xf32> to vector<32x32xf32>
    %cst_74 = arith.constant dense<0.000000e+00> : vector<16x32xf32>
    %77 = tpu.matmul %1, %76, %cst_74 {dimension_numbers = #tpu.dot_dimension_numbers<[1], [0], [0], [1], [0, 0, 1, 1], [], []>} : vector<16x32xf32>, vector<32x32xf32>, vector<16x32xf32> -> vector<16x32xf32>
    %78 = arith.addf %74, %77 : vector<16x32xf32>
    %c5_75 = arith.constant 5 : index
    %c0_76 = arith.constant 0 : index
    %c0_77 = arith.constant 0 : index
    %79 = vector.load %arg4[%c5_75, %c0_76, %c0_77] : memref<6x1x32xf32, #tpu.memory_space<vmem>>, vector<1x1x32xf32>
    %80 = vector.shape_cast %79 : vector<1x1x32xf32> to vector<1x32xf32>
    %81 = vector.broadcast %80 : vector<1x32xf32> to vector<16x32xf32>
    %82 = arith.addf %78, %81 : vector<16x32xf32>
    %c5_78 = arith.constant 5 : index
    %c0_79 = arith.constant 0 : index
    %c0_80 = arith.constant 0 : index
    %83 = vector.load %arg5[%c5_78, %c0_79, %c0_80] : memref<6x16x32xf32, #tpu.memory_space<vmem>>, vector<1x16x32xf32>
    %84 = vector.shape_cast %83 : vector<1x16x32xf32> to vector<16x32xf32>
    %85 = vector.shape_cast %82 : vector<16x32xf32> to vector<1x16x32xf32>
    tpu.vector_store %arg5[%c5_78, %c0_79, %c0_80], %85 {strides = array<i32>} : memref<6x16x32xf32, #tpu.memory_space<vmem>>, vector<1x16x32xf32>,
    return
  }
}

module attributes {stable_mosaic.version = 11 : i64} {
  func.func @head_kernel(%arg0: memref<16x32xf32, #tpu.memory_space<vmem>>, %arg1: memref<16x32xf32, #tpu.memory_space<vmem>>, %arg2: memref<32x1xf32, #tpu.memory_space<vmem>>, %arg3: memref<32x1xf32, #tpu.memory_space<vmem>>, %arg4: memref<1xf32, #tpu.memory_space<smem>>, %arg5: memref<16x1xf32, #tpu.memory_space<vmem>>) attributes {dimension_semantics = [], scalar_prefetch = 0 : i64, scratch_operands = 0 : i64, tpu.core_type = #tpu.core_type<tc>} {
    %c0 = arith.constant 0 : index
    %c0_0 = arith.constant 0 : index
    %0 = vector.load %arg0[%c0, %c0_0] : memref<16x32xf32, #tpu.memory_space<vmem>>, vector<16x32xf32>
    %c0_1 = arith.constant 0 : index
    %c0_2 = arith.constant 0 : index
    %1 = vector.load %arg2[%c0_1, %c0_2] : memref<32x1xf32, #tpu.memory_space<vmem>>, vector<32x1xf32>
    %cst = arith.constant dense<0.000000e+00> : vector<16x1xf32>
    %2 = tpu.matmul %0, %1, %cst {dimension_numbers = #tpu.dot_dimension_numbers<[1], [0], [0], [1], [0, 0, 1, 1], [], []>} : vector<16x32xf32>, vector<32x1xf32>, vector<16x1xf32> -> vector<16x1xf32>
    %c0_3 = arith.constant 0 : index
    %c0_4 = arith.constant 0 : index
    %3 = vector.load %arg1[%c0_3, %c0_4] : memref<16x32xf32, #tpu.memory_space<vmem>>, vector<16x32xf32>
    %c0_5 = arith.constant 0 : index
    %c0_6 = arith.constant 0 : index
    %4 = vector.load %arg3[%c0_5, %c0_6] : memref<32x1xf32, #tpu.memory_space<vmem>>, vector<32x1xf32>
    %cst_7 = arith.constant dense<0.000000e+00> : vector<16x1xf32>
    %5 = tpu.matmul %3, %4, %cst_7 {dimension_numbers = #tpu.dot_dimension_numbers<[1], [0], [0], [1], [0, 0, 1, 1], [], []>} : vector<16x32xf32>, vector<32x1xf32>, vector<16x1xf32> -> vector<16x1xf32>
    %6 = arith.addf %2, %5 : vector<16x1xf32>
    %c0_8 = arith.constant 0 : index
    %7 = memref.load %arg4[%c0_8] : memref<1xf32, #tpu.memory_space<smem>>
    %8 = vector.broadcast %7 : f32 to vector<16x1xf32>
    %9 = arith.addf %6, %8 : vector<16x1xf32>
    %c0_9 = arith.constant 0 : index
    %c0_10 = arith.constant 0 : index
    %10 = vector.load %arg5[%c0_9, %c0_10] : memref<16x1xf32, #tpu.memory_space<vmem>>, vector<16x1xf32>
    tpu.vector_store %arg5[%c0_9, %c0_10], %9 {strides = array<i32>} : memref<16x1xf32, #tpu.memory_space<vmem>>, vector<16x1xf32>,
    return
  }
}

module attributes {stable_mosaic.version = 11 : i64} {
  func.func @bigru_kernel(%arg0: i32, %arg1: memref<3x4x2x32xf32, #tpu.memory_space<vmem>>, %arg2: memref<3x4x2x32xf32, #tpu.memory_space<vmem>>, %arg3: memref<3x32x32xf32, #tpu.memory_space<vmem>>, %arg4: memref<3x32x32xf32, #tpu.memory_space<vmem>>, %arg5: memref<3x1x32xf32, #tpu.memory_space<vmem>>, %arg6: memref<3x1x32xf32, #tpu.memory_space<vmem>>, %arg7: memref<4x2x32xf32, #tpu.memory_space<vmem>>, %arg8: memref<4x2x32xf32, #tpu.memory_space<vmem>>, %arg9: memref<2x32xf32, #tpu.memory_space<vmem>>, %arg10: memref<2x32xf32, #tpu.memory_space<vmem>>) attributes {dimension_semantics = [#tpu.dimension_semantics<arbitrary>], iteration_bounds = array<i64: 2>, scalar_prefetch = 0 : i64, scratch_operands = 2 : i64, tpu.core_type = #tpu.core_type<tc>, window_params = [{transform_indices = @transform_0, window_bounds = array<i64: 3, 4, 2, 32>}, {transform_indices = @transform_1, window_bounds = array<i64: 3, 4, 2, 32>}, {pipeline_mode = #tpu.pipeline_mode<synchronous>, transform_indices = @transform_2, window_bounds = array<i64: 3, 32, 32>}, {pipeline_mode = #tpu.pipeline_mode<synchronous>, transform_indices = @transform_3, window_bounds = array<i64: 3, 32, 32>}, {pipeline_mode = #tpu.pipeline_mode<synchronous>, transform_indices = @transform_4, window_bounds = array<i64: 3, 1, 32>}, {pipeline_mode = #tpu.pipeline_mode<synchronous>, transform_indices = @transform_5, window_bounds = array<i64: 3, 1, 32>}, {transform_indices = @transform_6, window_bounds = array<i64: 4, 2, 32>}, {transform_indices = @transform_7, window_bounds = array<i64: 4, 2, 32>}]} {
    %c0_i32 = arith.constant 0 : i32
    %0 = arith.cmpi eq, %arg0, %c0_i32 : i32
    %1 = arith.extui %0 : i1 to i32
    %c0_i32_0 = arith.constant 0 : i32
    %2 = arith.cmpi ne, %1, %c0_i32_0 : i32
    scf.if %2 {
      %cst_158 = arith.constant 0.000000e+00 : f32
      %447 = vector.broadcast %cst_158 : f32 to vector<2x32xf32>
      %c0_159 = arith.constant 0 : index
      %c0_160 = arith.constant 0 : index
      %448 = vector.load %arg9[%c0_159, %c0_160] : memref<2x32xf32, #tpu.memory_space<vmem>>, vector<2x32xf32>
      tpu.vector_store %arg9[%c0_159, %c0_160], %447 {strides = array<i32>} : memref<2x32xf32, #tpu.memory_space<vmem>>, vector<2x32xf32>,
      %cst_161 = arith.constant 0.000000e+00 : f32
      %449 = vector.broadcast %cst_161 : f32 to vector<2x32xf32>
      %c0_162 = arith.constant 0 : index
      %c0_163 = arith.constant 0 : index
      %450 = vector.load %arg10[%c0_162, %c0_163] : memref<2x32xf32, #tpu.memory_space<vmem>>, vector<2x32xf32>
      tpu.vector_store %arg10[%c0_162, %c0_163], %449 {strides = array<i32>} : memref<2x32xf32, #tpu.memory_space<vmem>>, vector<2x32xf32>,
    } else {
    }
    %c0 = arith.constant 0 : index
    %c0_1 = arith.constant 0 : index
    %c0_2 = arith.constant 0 : index
    %3 = vector.load %arg3[%c0, %c0_1, %c0_2] : memref<3x32x32xf32, #tpu.memory_space<vmem>>, vector<3x32x32xf32>
    %c0_3 = arith.constant 0 : index
    %c0_4 = arith.constant 0 : index
    %c0_5 = arith.constant 0 : index
    %4 = vector.load %arg4[%c0_3, %c0_4, %c0_5] : memref<3x32x32xf32, #tpu.memory_space<vmem>>, vector<3x32x32xf32>
    %c0_6 = arith.constant 0 : index
    %c0_7 = arith.constant 0 : index
    %c0_8 = arith.constant 0 : index
    %5 = vector.load %arg5[%c0_6, %c0_7, %c0_8] : memref<3x1x32xf32, #tpu.memory_space<vmem>>, vector<3x1x32xf32>
    %c0_9 = arith.constant 0 : index
    %c0_10 = arith.constant 0 : index
    %c0_11 = arith.constant 0 : index
    %6 = vector.load %arg6[%c0_9, %c0_10, %c0_11] : memref<3x1x32xf32, #tpu.memory_space<vmem>>, vector<3x1x32xf32>
    %c0_12 = arith.constant 0 : index
    %c0_13 = arith.constant 0 : index
    %7 = vector.load %arg9[%c0_12, %c0_13] : memref<2x32xf32, #tpu.memory_space<vmem>>, vector<2x32xf32>
    %c0_14 = arith.constant 0 : index
    %c0_15 = arith.constant 0 : index
    %8 = vector.load %arg10[%c0_14, %c0_15] : memref<2x32xf32, #tpu.memory_space<vmem>>, vector<2x32xf32>
    %c0_i32_16 = arith.constant 0 : i32
    %c0_17 = arith.constant 0 : index
    %9 = arith.index_cast %c0_i32_16 : i32 to index
    %c0_18 = arith.constant 0 : index
    %c0_19 = arith.constant 0 : index
    %10 = vector.load %arg1[%c0_17, %9, %c0_18, %c0_19] : memref<3x4x2x32xf32, #tpu.memory_space<vmem>>, vector<1x1x2x32xf32>
    %11 = vector.shape_cast %10 : vector<1x1x2x32xf32> to vector<2x32xf32>
    %c1 = arith.constant 1 : index
    %12 = arith.index_cast %c0_i32_16 : i32 to index
    %c0_20 = arith.constant 0 : index
    %c0_21 = arith.constant 0 : index
    %13 = vector.load %arg1[%c1, %12, %c0_20, %c0_21] : memref<3x4x2x32xf32, #tpu.memory_space<vmem>>, vector<1x1x2x32xf32>
    %14 = vector.shape_cast %13 : vector<1x1x2x32xf32> to vector<2x32xf32>
    %c2 = arith.constant 2 : index
    %15 = arith.index_cast %c0_i32_16 : i32 to index
    %c0_22 = arith.constant 0 : index
    %c0_23 = arith.constant 0 : index
    %16 = vector.load %arg1[%c2, %15, %c0_22, %c0_23] : memref<3x4x2x32xf32, #tpu.memory_space<vmem>>, vector<1x1x2x32xf32>
    %17 = vector.shape_cast %16 : vector<1x1x2x32xf32> to vector<2x32xf32>
    %18 = vector.extract_strided_slice %3 {offsets = [0, 0, 0], sizes = [1, 32, 32], strides = [1, 1, 1]} : vector<3x32x32xf32> to vector<1x32x32xf32>
    %19 = vector.shape_cast %18 : vector<1x32x32xf32> to vector<32x32xf32>
    %cst = arith.constant dense<0.000000e+00> : vector<2x32xf32>
    %20 = tpu.matmul %7, %19, %cst {dimension_numbers = #tpu.dot_dimension_numbers<[1], [0], [0], [1], [0, 0, 1, 1], [], []>} : vector<2x32xf32>, vector<32x32xf32>, vector<2x32xf32> -> vector<2x32xf32>
    %21 = vector.extract_strided_slice %5 {offsets = [0, 0, 0], sizes = [1, 1, 32], strides = [1, 1, 1]} : vector<3x1x32xf32> to vector<1x1x32xf32>
    %22 = vector.shape_cast %21 : vector<1x1x32xf32> to vector<1x32xf32>
    %23 = vector.broadcast %22 : vector<1x32xf32> to vector<2x32xf32>
    %24 = arith.addf %20, %23 : vector<2x32xf32>
    %25 = vector.extract_strided_slice %3 {offsets = [1, 0, 0], sizes = [1, 32, 32], strides = [1, 1, 1]} : vector<3x32x32xf32> to vector<1x32x32xf32>
    %26 = vector.shape_cast %25 : vector<1x32x32xf32> to vector<32x32xf32>
    %cst_24 = arith.constant dense<0.000000e+00> : vector<2x32xf32>
    %27 = tpu.matmul %7, %26, %cst_24 {dimension_numbers = #tpu.dot_dimension_numbers<[1], [0], [0], [1], [0, 0, 1, 1], [], []>} : vector<2x32xf32>, vector<32x32xf32>, vector<2x32xf32> -> vector<2x32xf32>
    %28 = vector.extract_strided_slice %5 {offsets = [1, 0, 0], sizes = [1, 1, 32], strides = [1, 1, 1]} : vector<3x1x32xf32> to vector<1x1x32xf32>
    %29 = vector.shape_cast %28 : vector<1x1x32xf32> to vector<1x32xf32>
    %30 = vector.broadcast %29 : vector<1x32xf32> to vector<2x32xf32>
    %31 = arith.addf %27, %30 : vector<2x32xf32>
    %32 = vector.extract_strided_slice %3 {offsets = [2, 0, 0], sizes = [1, 32, 32], strides = [1, 1, 1]} : vector<3x32x32xf32> to vector<1x32x32xf32>
    %33 = vector.shape_cast %32 : vector<1x32x32xf32> to vector<32x32xf32>
    %cst_25 = arith.constant dense<0.000000e+00> : vector<2x32xf32>
    %34 = tpu.matmul %7, %33, %cst_25 {dimension_numbers = #tpu.dot_dimension_numbers<[1], [0], [0], [1], [0, 0, 1, 1], [], []>} : vector<2x32xf32>, vector<32x32xf32>, vector<2x32xf32> -> vector<2x32xf32>
    %35 = vector.extract_strided_slice %5 {offsets = [2, 0, 0], sizes = [1, 1, 32], strides = [1, 1, 1]} : vector<3x1x32xf32> to vector<1x1x32xf32>
    %36 = vector.shape_cast %35 : vector<1x1x32xf32> to vector<1x32xf32>
    %37 = vector.broadcast %36 : vector<1x32xf32> to vector<2x32xf32>
    %38 = arith.addf %34, %37 : vector<2x32xf32>
    %39 = arith.addf %11, %24 : vector<2x32xf32>
    %40 = arith.negf %39 : vector<2x32xf32>
    %41 = math.exp %40 : vector<2x32xf32>
    %cst_26 = arith.constant 1.000000e+00 : f32
    %42 = vector.broadcast %cst_26 : f32 to vector<2x32xf32>
    %43 = arith.addf %42, %41 : vector<2x32xf32>
    %44 = arith.divf %42, %43 : vector<2x32xf32>
    %45 = arith.addf %14, %31 : vector<2x32xf32>
    %46 = arith.negf %45 : vector<2x32xf32>
    %47 = math.exp %46 : vector<2x32xf32>
    %cst_27 = arith.constant 1.000000e+00 : f32
    %48 = vector.broadcast %cst_27 : f32 to vector<2x32xf32>
    %49 = arith.addf %48, %47 : vector<2x32xf32>
    %50 = arith.divf %48, %49 : vector<2x32xf32>
    %51 = arith.mulf %44, %38 : vector<2x32xf32>
    %52 = arith.addf %17, %51 : vector<2x32xf32>
    %53 = math.tanh %52 : vector<2x32xf32>
    %cst_28 = arith.constant 1.000000e+00 : f32
    %54 = vector.broadcast %cst_28 : f32 to vector<2x32xf32>
    %55 = arith.subf %54, %50 : vector<2x32xf32>
    %56 = arith.mulf %55, %53 : vector<2x32xf32>
    %57 = arith.mulf %50, %7 : vector<2x32xf32>
    %58 = arith.addf %56, %57 : vector<2x32xf32>
    %59 = arith.index_cast %c0_i32_16 : i32 to index
    %c0_29 = arith.constant 0 : index
    %c0_30 = arith.constant 0 : index
    %60 = vector.load %arg7[%59, %c0_29, %c0_30] : memref<4x2x32xf32, #tpu.memory_space<vmem>>, vector<1x2x32xf32>
    %61 = vector.shape_cast %60 : vector<1x2x32xf32> to vector<2x32xf32>
    %62 = vector.shape_cast %58 : vector<2x32xf32> to vector<1x2x32xf32>
    tpu.vector_store %arg7[%59, %c0_29, %c0_30], %62 {strides = array<i32>} : memref<4x2x32xf32, #tpu.memory_space<vmem>>, vector<1x2x32xf32>,
    %c3_i32 = arith.constant 3 : i32
    %63 = arith.subi %c3_i32, %c0_i32_16 : i32
    %c0_31 = arith.constant 0 : index
    %64 = arith.index_cast %63 : i32 to index
    %c0_32 = arith.constant 0 : index
    %c0_33 = arith.constant 0 : index
    %65 = vector.load %arg2[%c0_31, %64, %c0_32, %c0_33] : memref<3x4x2x32xf32, #tpu.memory_space<vmem>>, vector<1x1x2x32xf32>
    %66 = vector.shape_cast %65 : vector<1x1x2x32xf32> to vector<2x32xf32>
    %c1_34 = arith.constant 1 : index
    %67 = arith.index_cast %63 : i32 to index
    %c0_35 = arith.constant 0 : index
    %c0_36 = arith.constant 0 : index
    %68 = vector.load %arg2[%c1_34, %67, %c0_35, %c0_36] : memref<3x4x2x32xf32, #tpu.memory_space<vmem>>, vector<1x1x2x32xf32>
    %69 = vector.shape_cast %68 : vector<1x1x2x32xf32> to vector<2x32xf32>
    %c2_37 = arith.constant 2 : index
    %70 = arith.index_cast %63 : i32 to index
    %c0_38 = arith.constant 0 : index
    %c0_39 = arith.constant 0 : index
    %71 = vector.load %arg2[%c2_37, %70, %c0_38, %c0_39] : memref<3x4x2x32xf32, #tpu.memory_space<vmem>>, vector<1x1x2x32xf32>
    %72 = vector.shape_cast %71 : vector<1x1x2x32xf32> to vector<2x32xf32>
    %73 = vector.extract_strided_slice %4 {offsets = [0, 0, 0], sizes = [1, 32, 32], strides = [1, 1, 1]} : vector<3x32x32xf32> to vector<1x32x32xf32>
    %74 = vector.shape_cast %73 : vector<1x32x32xf32> to vector<32x32xf32>
    %cst_40 = arith.constant dense<0.000000e+00> : vector<2x32xf32>
    %75 = tpu.matmul %8, %74, %cst_40 {dimension_numbers = #tpu.dot_dimension_numbers<[1], [0], [0], [1], [0, 0, 1, 1], [], []>} : vector<2x32xf32>, vector<32x32xf32>, vector<2x32xf32> -> vector<2x32xf32>
    %76 = vector.extract_strided_slice %6 {offsets = [0, 0, 0], sizes = [1, 1, 32], strides = [1, 1, 1]} : vector<3x1x32xf32> to vector<1x1x32xf32>
    %77 = vector.shape_cast %76 : vector<1x1x32xf32> to vector<1x32xf32>
    %78 = vector.broadcast %77 : vector<1x32xf32> to vector<2x32xf32>
    %79 = arith.addf %75, %78 : vector<2x32xf32>
    %80 = vector.extract_strided_slice %4 {offsets = [1, 0, 0], sizes = [1, 32, 32], strides = [1, 1, 1]} : vector<3x32x32xf32> to vector<1x32x32xf32>
    %81 = vector.shape_cast %80 : vector<1x32x32xf32> to vector<32x32xf32>
    %cst_41 = arith.constant dense<0.000000e+00> : vector<2x32xf32>
    %82 = tpu.matmul %8, %81, %cst_41 {dimension_numbers = #tpu.dot_dimension_numbers<[1], [0], [0], [1], [0, 0, 1, 1], [], []>} : vector<2x32xf32>, vector<32x32xf32>, vector<2x32xf32> -> vector<2x32xf32>
    %83 = vector.extract_strided_slice %6 {offsets = [1, 0, 0], sizes = [1, 1, 32], strides = [1, 1, 1]} : vector<3x1x32xf32> to vector<1x1x32xf32>
    %84 = vector.shape_cast %83 : vector<1x1x32xf32> to vector<1x32xf32>
    %85 = vector.broadcast %84 : vector<1x32xf32> to vector<2x32xf32>
    %86 = arith.addf %82, %85 : vector<2x32xf32>
    %87 = vector.extract_strided_slice %4 {offsets = [2, 0, 0], sizes = [1, 32, 32], strides = [1, 1, 1]} : vector<3x32x32xf32> to vector<1x32x32xf32>
    %88 = vector.shape_cast %87 : vector<1x32x32xf32> to vector<32x32xf32>
    %cst_42 = arith.constant dense<0.000000e+00> : vector<2x32xf32>
    %89 = tpu.matmul %8, %88, %cst_42 {dimension_numbers = #tpu.dot_dimension_numbers<[1], [0], [0], [1], [0, 0, 1, 1], [], []>} : vector<2x32xf32>, vector<32x32xf32>, vector<2x32xf32> -> vector<2x32xf32>
    %90 = vector.extract_strided_slice %6 {offsets = [2, 0, 0], sizes = [1, 1, 32], strides = [1, 1, 1]} : vector<3x1x32xf32> to vector<1x1x32xf32>
    %91 = vector.shape_cast %90 : vector<1x1x32xf32> to vector<1x32xf32>
    %92 = vector.broadcast %91 : vector<1x32xf32> to vector<2x32xf32>
    %93 = arith.addf %89, %92 : vector<2x32xf32>
    %94 = arith.addf %66, %79 : vector<2x32xf32>
    %95 = arith.negf %94 : vector<2x32xf32>
    %96 = math.exp %95 : vector<2x32xf32>
    %cst_43 = arith.constant 1.000000e+00 : f32
    %97 = vector.broadcast %cst_43 : f32 to vector<2x32xf32>
    %98 = arith.addf %97, %96 : vector<2x32xf32>
    %99 = arith.divf %97, %98 : vector<2x32xf32>
    %100 = arith.addf %69, %86 : vector<2x32xf32>
    %101 = arith.negf %100 : vector<2x32xf32>
    %102 = math.exp %101 : vector<2x32xf32>
    %cst_44 = arith.constant 1.000000e+00 : f32
    %103 = vector.broadcast %cst_44 : f32 to vector<2x32xf32>
    %104 = arith.addf %103, %102 : vector<2x32xf32>
    %105 = arith.divf %103, %104 : vector<2x32xf32>
    %106 = arith.mulf %99, %93 : vector<2x32xf32>
    %107 = arith.addf %72, %106 : vector<2x32xf32>
    %108 = math.tanh %107 : vector<2x32xf32>
    %cst_45 = arith.constant 1.000000e+00 : f32
    %109 = vector.broadcast %cst_45 : f32 to vector<2x32xf32>
    %110 = arith.subf %109, %105 : vector<2x32xf32>
    %111 = arith.mulf %110, %108 : vector<2x32xf32>
    %112 = arith.mulf %105, %8 : vector<2x32xf32>
    %113 = arith.addf %111, %112 : vector<2x32xf32>
    %114 = arith.index_cast %63 : i32 to index
    %c0_46 = arith.constant 0 : index
    %c0_47 = arith.constant 0 : index
    %115 = vector.load %arg8[%114, %c0_46, %c0_47] : memref<4x2x32xf32, #tpu.memory_space<vmem>>, vector<1x2x32xf32>
    %116 = vector.shape_cast %115 : vector<1x2x32xf32> to vector<2x32xf32>
    %117 = vector.shape_cast %113 : vector<2x32xf32> to vector<1x2x32xf32>
    tpu.vector_store %arg8[%114, %c0_46, %c0_47], %117 {strides = array<i32>} : memref<4x2x32xf32, #tpu.memory_space<vmem>>, vector<1x2x32xf32>,
    %c1_i32 = arith.constant 1 : i32
    %c0_48 = arith.constant 0 : index
    %118 = arith.index_cast %c1_i32 : i32 to index
    %c0_49 = arith.constant 0 : index
    %c0_50 = arith.constant 0 : index
    %119 = vector.load %arg1[%c0_48, %118, %c0_49, %c0_50] : memref<3x4x2x32xf32, #tpu.memory_space<vmem>>, vector<1x1x2x32xf32>
    %120 = vector.shape_cast %119 : vector<1x1x2x32xf32> to vector<2x32xf32>
    %c1_51 = arith.constant 1 : index
    %121 = arith.index_cast %c1_i32 : i32 to index
    %c0_52 = arith.constant 0 : index
    %c0_53 = arith.constant 0 : index
    %122 = vector.load %arg1[%c1_51, %121, %c0_52, %c0_53] : memref<3x4x2x32xf32, #tpu.memory_space<vmem>>, vector<1x1x2x32xf32>
    %123 = vector.shape_cast %122 : vector<1x1x2x32xf32> to vector<2x32xf32>
    %c2_54 = arith.constant 2 : index
    %124 = arith.index_cast %c1_i32 : i32 to index
    %c0_55 = arith.constant 0 : index
    %c0_56 = arith.constant 0 : index
    %125 = vector.load %arg1[%c2_54, %124, %c0_55, %c0_56] : memref<3x4x2x32xf32, #tpu.memory_space<vmem>>, vector<1x1x2x32xf32>
    %126 = vector.shape_cast %125 : vector<1x1x2x32xf32> to vector<2x32xf32>
    %127 = vector.extract_strided_slice %3 {offsets = [0, 0, 0], sizes = [1, 32, 32], strides = [1, 1, 1]} : vector<3x32x32xf32> to vector<1x32x32xf32>
    %128 = vector.shape_cast %127 : vector<1x32x32xf32> to vector<32x32xf32>
    %cst_57 = arith.constant dense<0.000000e+00> : vector<2x32xf32>
    %129 = tpu.matmul %58, %128, %cst_57 {dimension_numbers = #tpu.dot_dimension_numbers<[1], [0], [0], [1], [0, 0, 1, 1], [], []>} : vector<2x32xf32>, vector<32x32xf32>, vector<2x32xf32> -> vector<2x32xf32>
    %130 = vector.extract_strided_slice %5 {offsets = [0, 0, 0], sizes = [1, 1, 32], strides = [1, 1, 1]} : vector<3x1x32xf32> to vector<1x1x32xf32>
    %131 = vector.shape_cast %130 : vector<1x1x32xf32> to vector<1x32xf32>
    %132 = vector.broadcast %131 : vector<1x32xf32> to vector<2x32xf32>
    %133 = arith.addf %129, %132 : vector<2x32xf32>
    %134 = vector.extract_strided_slice %3 {offsets = [1, 0, 0], sizes = [1, 32, 32], strides = [1, 1, 1]} : vector<3x32x32xf32> to vector<1x32x32xf32>
    %135 = vector.shape_cast %134 : vector<1x32x32xf32> to vector<32x32xf32>
    %cst_58 = arith.constant dense<0.000000e+00> : vector<2x32xf32>
    %136 = tpu.matmul %58, %135, %cst_58 {dimension_numbers = #tpu.dot_dimension_numbers<[1], [0], [0], [1], [0, 0, 1, 1], [], []>} : vector<2x32xf32>, vector<32x32xf32>, vector<2x32xf32> -> vector<2x32xf32>
    %137 = vector.extract_strided_slice %5 {offsets = [1, 0, 0], sizes = [1, 1, 32], strides = [1, 1, 1]} : vector<3x1x32xf32> to vector<1x1x32xf32>
    %138 = vector.shape_cast %137 : vector<1x1x32xf32> to vector<1x32xf32>
    %139 = vector.broadcast %138 : vector<1x32xf32> to vector<2x32xf32>
    %140 = arith.addf %136, %139 : vector<2x32xf32>
    %141 = vector.extract_strided_slice %3 {offsets = [2, 0, 0], sizes = [1, 32, 32], strides = [1, 1, 1]} : vector<3x32x32xf32> to vector<1x32x32xf32>
    %142 = vector.shape_cast %141 : vector<1x32x32xf32> to vector<32x32xf32>
    %cst_59 = arith.constant dense<0.000000e+00> : vector<2x32xf32>
    %143 = tpu.matmul %58, %142, %cst_59 {dimension_numbers = #tpu.dot_dimension_numbers<[1], [0], [0], [1], [0, 0, 1, 1], [], []>} : vector<2x32xf32>, vector<32x32xf32>, vector<2x32xf32> -> vector<2x32xf32>
    %144 = vector.extract_strided_slice %5 {offsets = [2, 0, 0], sizes = [1, 1, 32], strides = [1, 1, 1]} : vector<3x1x32xf32> to vector<1x1x32xf32>
    %145 = vector.shape_cast %144 : vector<1x1x32xf32> to vector<1x32xf32>
    %146 = vector.broadcast %145 : vector<1x32xf32> to vector<2x32xf32>
    %147 = arith.addf %143, %146 : vector<2x32xf32>
    %148 = arith.addf %120, %133 : vector<2x32xf32>
    %149 = arith.negf %148 : vector<2x32xf32>
    %150 = math.exp %149 : vector<2x32xf32>
    %cst_60 = arith.constant 1.000000e+00 : f32
    %151 = vector.broadcast %cst_60 : f32 to vector<2x32xf32>
    %152 = arith.addf %151, %150 : vector<2x32xf32>
    %153 = arith.divf %151, %152 : vector<2x32xf32>
    %154 = arith.addf %123, %140 : vector<2x32xf32>
    %155 = arith.negf %154 : vector<2x32xf32>
    %156 = math.exp %155 : vector<2x32xf32>
    %cst_61 = arith.constant 1.000000e+00 : f32
    %157 = vector.broadcast %cst_61 : f32 to vector<2x32xf32>
    %158 = arith.addf %157, %156 : vector<2x32xf32>
    %159 = arith.divf %157, %158 : vector<2x32xf32>
    %160 = arith.mulf %153, %147 : vector<2x32xf32>
    %161 = arith.addf %126, %160 : vector<2x32xf32>
    %162 = math.tanh %161 : vector<2x32xf32>
    %cst_62 = arith.constant 1.000000e+00 : f32
    %163 = vector.broadcast %cst_62 : f32 to vector<2x32xf32>
    %164 = arith.subf %163, %159 : vector<2x32xf32>
    %165 = arith.mulf %164, %162 : vector<2x32xf32>
    %166 = arith.mulf %159, %58 : vector<2x32xf32>
    %167 = arith.addf %165, %166 : vector<2x32xf32>
    %168 = arith.index_cast %c1_i32 : i32 to index
    %c0_63 = arith.constant 0 : index
    %c0_64 = arith.constant 0 : index
    %169 = vector.load %arg7[%168, %c0_63, %c0_64] : memref<4x2x32xf32, #tpu.memory_space<vmem>>, vector<1x2x32xf32>
    %170 = vector.shape_cast %169 : vector<1x2x32xf32> to vector<2x32xf32>
    %171 = vector.shape_cast %167 : vector<2x32xf32> to vector<1x2x32xf32>
    tpu.vector_store %arg7[%168, %c0_63, %c0_64], %171 {strides = array<i32>} : memref<4x2x32xf32, #tpu.memory_space<vmem>>, vector<1x2x32xf32>,
    %c3_i32_65 = arith.constant 3 : i32
    %172 = arith.subi %c3_i32_65, %c1_i32 : i32
    %c0_66 = arith.constant 0 : index
    %173 = arith.index_cast %172 : i32 to index
    %c0_67 = arith.constant 0 : index
    %c0_68 = arith.constant 0 : index
    %174 = vector.load %arg2[%c0_66, %173, %c0_67, %c0_68] : memref<3x4x2x32xf32, #tpu.memory_space<vmem>>, vector<1x1x2x32xf32>
    %175 = vector.shape_cast %174 : vector<1x1x2x32xf32> to vector<2x32xf32>
    %c1_69 = arith.constant 1 : index
    %176 = arith.index_cast %172 : i32 to index
    %c0_70 = arith.constant 0 : index
    %c0_71 = arith.constant 0 : index
    %177 = vector.load %arg2[%c1_69, %176, %c0_70, %c0_71] : memref<3x4x2x32xf32, #tpu.memory_space<vmem>>, vector<1x1x2x32xf32>
    %178 = vector.shape_cast %177 : vector<1x1x2x32xf32> to vector<2x32xf32>
    %c2_72 = arith.constant 2 : index
    %179 = arith.index_cast %172 : i32 to index
    %c0_73 = arith.constant 0 : index
    %c0_74 = arith.constant 0 : index
    %180 = vector.load %arg2[%c2_72, %179, %c0_73, %c0_74] : memref<3x4x2x32xf32, #tpu.memory_space<vmem>>, vector<1x1x2x32xf32>
    %181 = vector.shape_cast %180 : vector<1x1x2x32xf32> to vector<2x32xf32>
    %182 = vector.extract_strided_slice %4 {offsets = [0, 0, 0], sizes = [1, 32, 32], strides = [1, 1, 1]} : vector<3x32x32xf32> to vector<1x32x32xf32>
    %183 = vector.shape_cast %182 : vector<1x32x32xf32> to vector<32x32xf32>
    %cst_75 = arith.constant dense<0.000000e+00> : vector<2x32xf32>
    %184 = tpu.matmul %113, %183, %cst_75 {dimension_numbers = #tpu.dot_dimension_numbers<[1], [0], [0], [1], [0, 0, 1, 1], [], []>} : vector<2x32xf32>, vector<32x32xf32>, vector<2x32xf32> -> vector<2x32xf32>
    %185 = vector.extract_strided_slice %6 {offsets = [0, 0, 0], sizes = [1, 1, 32], strides = [1, 1, 1]} : vector<3x1x32xf32> to vector<1x1x32xf32>
    %186 = vector.shape_cast %185 : vector<1x1x32xf32> to vector<1x32xf32>
    %187 = vector.broadcast %186 : vector<1x32xf32> to vector<2x32xf32>
    %188 = arith.addf %184, %187 : vector<2x32xf32>
    %189 = vector.extract_strided_slice %4 {offsets = [1, 0, 0], sizes = [1, 32, 32], strides = [1, 1, 1]} : vector<3x32x32xf32> to vector<1x32x32xf32>
    %190 = vector.shape_cast %189 : vector<1x32x32xf32> to vector<32x32xf32>
    %cst_76 = arith.constant dense<0.000000e+00> : vector<2x32xf32>
    %191 = tpu.matmul %113, %190, %cst_76 {dimension_numbers = #tpu.dot_dimension_numbers<[1], [0], [0], [1], [0, 0, 1, 1], [], []>} : vector<2x32xf32>, vector<32x32xf32>, vector<2x32xf32> -> vector<2x32xf32>
    %192 = vector.extract_strided_slice %6 {offsets = [1, 0, 0], sizes = [1, 1, 32], strides = [1, 1, 1]} : vector<3x1x32xf32> to vector<1x1x32xf32>
    %193 = vector.shape_cast %192 : vector<1x1x32xf32> to vector<1x32xf32>
    %194 = vector.broadcast %193 : vector<1x32xf32> to vector<2x32xf32>
    %195 = arith.addf %191, %194 : vector<2x32xf32>
    %196 = vector.extract_strided_slice %4 {offsets = [2, 0, 0], sizes = [1, 32, 32], strides = [1, 1, 1]} : vector<3x32x32xf32> to vector<1x32x32xf32>
    %197 = vector.shape_cast %196 : vector<1x32x32xf32> to vector<32x32xf32>
    %cst_77 = arith.constant dense<0.000000e+00> : vector<2x32xf32>
    %198 = tpu.matmul %113, %197, %cst_77 {dimension_numbers = #tpu.dot_dimension_numbers<[1], [0], [0], [1], [0, 0, 1, 1], [], []>} : vector<2x32xf32>, vector<32x32xf32>, vector<2x32xf32> -> vector<2x32xf32>
    %199 = vector.extract_strided_slice %6 {offsets = [2, 0, 0], sizes = [1, 1, 32], strides = [1, 1, 1]} : vector<3x1x32xf32> to vector<1x1x32xf32>
    %200 = vector.shape_cast %199 : vector<1x1x32xf32> to vector<1x32xf32>
    %201 = vector.broadcast %200 : vector<1x32xf32> to vector<2x32xf32>
    %202 = arith.addf %198, %201 : vector<2x32xf32>
    %203 = arith.addf %175, %188 : vector<2x32xf32>
    %204 = arith.negf %203 : vector<2x32xf32>
    %205 = math.exp %204 : vector<2x32xf32>
    %cst_78 = arith.constant 1.000000e+00 : f32
    %206 = vector.broadcast %cst_78 : f32 to vector<2x32xf32>
    %207 = arith.addf %206, %205 : vector<2x32xf32>
    %208 = arith.divf %206, %207 : vector<2x32xf32>
    %209 = arith.addf %178, %195 : vector<2x32xf32>
    %210 = arith.negf %209 : vector<2x32xf32>
    %211 = math.exp %210 : vector<2x32xf32>
    %cst_79 = arith.constant 1.000000e+00 : f32
    %212 = vector.broadcast %cst_79 : f32 to vector<2x32xf32>
    %213 = arith.addf %212, %211 : vector<2x32xf32>
    %214 = arith.divf %212, %213 : vector<2x32xf32>
    %215 = arith.mulf %208, %202 : vector<2x32xf32>
    %216 = arith.addf %181, %215 : vector<2x32xf32>
    %217 = math.tanh %216 : vector<2x32xf32>
    %cst_80 = arith.constant 1.000000e+00 : f32
    %218 = vector.broadcast %cst_80 : f32 to vector<2x32xf32>
    %219 = arith.subf %218, %214 : vector<2x32xf32>
    %220 = arith.mulf %219, %217 : vector<2x32xf32>
    %221 = arith.mulf %214, %113 : vector<2x32xf32>
    %222 = arith.addf %220, %221 : vector<2x32xf32>
    %223 = arith.index_cast %172 : i32 to index
    %c0_81 = arith.constant 0 : index
    %c0_82 = arith.constant 0 : index
    %224 = vector.load %arg8[%223, %c0_81, %c0_82] : memref<4x2x32xf32, #tpu.memory_space<vmem>>, vector<1x2x32xf32>
    %225 = vector.shape_cast %224 : vector<1x2x32xf32> to vector<2x32xf32>
    %226 = vector.shape_cast %222 : vector<2x32xf32> to vector<1x2x32xf32>
    tpu.vector_store %arg8[%223, %c0_81, %c0_82], %226 {strides = array<i32>} : memref<4x2x32xf32, #tpu.memory_space<vmem>>, vector<1x2x32xf32>,
    %c2_i32 = arith.constant 2 : i32
    %c0_83 = arith.constant 0 : index
    %227 = arith.index_cast %c2_i32 : i32 to index
    %c0_84 = arith.constant 0 : index
    %c0_85 = arith.constant 0 : index
    %228 = vector.load %arg1[%c0_83, %227, %c0_84, %c0_85] : memref<3x4x2x32xf32, #tpu.memory_space<vmem>>, vector<1x1x2x32xf32>
    %229 = vector.shape_cast %228 : vector<1x1x2x32xf32> to vector<2x32xf32>
    %c1_86 = arith.constant 1 : index
    %230 = arith.index_cast %c2_i32 : i32 to index
    %c0_87 = arith.constant 0 : index
    %c0_88 = arith.constant 0 : index
    %231 = vector.load %arg1[%c1_86, %230, %c0_87, %c0_88] : memref<3x4x2x32xf32, #tpu.memory_space<vmem>>, vector<1x1x2x32xf32>
    %232 = vector.shape_cast %231 : vector<1x1x2x32xf32> to vector<2x32xf32>
    %c2_89 = arith.constant 2 : index
    %233 = arith.index_cast %c2_i32 : i32 to index
    %c0_90 = arith.constant 0 : index
    %c0_91 = arith.constant 0 : index
    %234 = vector.load %arg1[%c2_89, %233, %c0_90, %c0_91] : memref<3x4x2x32xf32, #tpu.memory_space<vmem>>, vector<1x1x2x32xf32>
    %235 = vector.shape_cast %234 : vector<1x1x2x32xf32> to vector<2x32xf32>
    %236 = vector.extract_strided_slice %3 {offsets = [0, 0, 0], sizes = [1, 32, 32], strides = [1, 1, 1]} : vector<3x32x32xf32> to vector<1x32x32xf32>
    %237 = vector.shape_cast %236 : vector<1x32x32xf32> to vector<32x32xf32>
    %cst_92 = arith.constant dense<0.000000e+00> : vector<2x32xf32>
    %238 = tpu.matmul %167, %237, %cst_92 {dimension_numbers = #tpu.dot_dimension_numbers<[1], [0], [0], [1], [0, 0, 1, 1], [], []>} : vector<2x32xf32>, vector<32x32xf32>, vector<2x32xf32> -> vector<2x32xf32>
    %239 = vector.extract_strided_slice %5 {offsets = [0, 0, 0], sizes = [1, 1, 32], strides = [1, 1, 1]} : vector<3x1x32xf32> to vector<1x1x32xf32>
    %240 = vector.shape_cast %239 : vector<1x1x32xf32> to vector<1x32xf32>
    %241 = vector.broadcast %240 : vector<1x32xf32> to vector<2x32xf32>
    %242 = arith.addf %238, %241 : vector<2x32xf32>
    %243 = vector.extract_strided_slice %3 {offsets = [1, 0, 0], sizes = [1, 32, 32], strides = [1, 1, 1]} : vector<3x32x32xf32> to vector<1x32x32xf32>
    %244 = vector.shape_cast %243 : vector<1x32x32xf32> to vector<32x32xf32>
    %cst_93 = arith.constant dense<0.000000e+00> : vector<2x32xf32>
    %245 = tpu.matmul %167, %244, %cst_93 {dimension_numbers = #tpu.dot_dimension_numbers<[1], [0], [0], [1], [0, 0, 1, 1], [], []>} : vector<2x32xf32>, vector<32x32xf32>, vector<2x32xf32> -> vector<2x32xf32>
    %246 = vector.extract_strided_slice %5 {offsets = [1, 0, 0], sizes = [1, 1, 32], strides = [1, 1, 1]} : vector<3x1x32xf32> to vector<1x1x32xf32>
    %247 = vector.shape_cast %246 : vector<1x1x32xf32> to vector<1x32xf32>
    %248 = vector.broadcast %247 : vector<1x32xf32> to vector<2x32xf32>
    %249 = arith.addf %245, %248 : vector<2x32xf32>
    %250 = vector.extract_strided_slice %3 {offsets = [2, 0, 0], sizes = [1, 32, 32], strides = [1, 1, 1]} : vector<3x32x32xf32> to vector<1x32x32xf32>
    %251 = vector.shape_cast %250 : vector<1x32x32xf32> to vector<32x32xf32>
    %cst_94 = arith.constant dense<0.000000e+00> : vector<2x32xf32>
    %252 = tpu.matmul %167, %251, %cst_94 {dimension_numbers = #tpu.dot_dimension_numbers<[1], [0], [0], [1], [0, 0, 1, 1], [], []>} : vector<2x32xf32>, vector<32x32xf32>, vector<2x32xf32> -> vector<2x32xf32>
    %253 = vector.extract_strided_slice %5 {offsets = [2, 0, 0], sizes = [1, 1, 32], strides = [1, 1, 1]} : vector<3x1x32xf32> to vector<1x1x32xf32>
    %254 = vector.shape_cast %253 : vector<1x1x32xf32> to vector<1x32xf32>
    %255 = vector.broadcast %254 : vector<1x32xf32> to vector<2x32xf32>
    %256 = arith.addf %252, %255 : vector<2x32xf32>
    %257 = arith.addf %229, %242 : vector<2x32xf32>
    %258 = arith.negf %257 : vector<2x32xf32>
    %259 = math.exp %258 : vector<2x32xf32>
    %cst_95 = arith.constant 1.000000e+00 : f32
    %260 = vector.broadcast %cst_95 : f32 to vector<2x32xf32>
    %261 = arith.addf %260, %259 : vector<2x32xf32>
    %262 = arith.divf %260, %261 : vector<2x32xf32>
    %263 = arith.addf %232, %249 : vector<2x32xf32>
    %264 = arith.negf %263 : vector<2x32xf32>
    %265 = math.exp %264 : vector<2x32xf32>
    %cst_96 = arith.constant 1.000000e+00 : f32
    %266 = vector.broadcast %cst_96 : f32 to vector<2x32xf32>
    %267 = arith.addf %266, %265 : vector<2x32xf32>
    %268 = arith.divf %266, %267 : vector<2x32xf32>
    %269 = arith.mulf %262, %256 : vector<2x32xf32>
    %270 = arith.addf %235, %269 : vector<2x32xf32>
    %271 = math.tanh %270 : vector<2x32xf32>
    %cst_97 = arith.constant 1.000000e+00 : f32
    %272 = vector.broadcast %cst_97 : f32 to vector<2x32xf32>
    %273 = arith.subf %272, %268 : vector<2x32xf32>
    %274 = arith.mulf %273, %271 : vector<2x32xf32>
    %275 = arith.mulf %268, %167 : vector<2x32xf32>
    %276 = arith.addf %274, %275 : vector<2x32xf32>
    %277 = arith.index_cast %c2_i32 : i32 to index
    %c0_98 = arith.constant 0 : index
    %c0_99 = arith.constant 0 : index
    %278 = vector.load %arg7[%277, %c0_98, %c0_99] : memref<4x2x32xf32, #tpu.memory_space<vmem>>, vector<1x2x32xf32>
    %279 = vector.shape_cast %278 : vector<1x2x32xf32> to vector<2x32xf32>
    %280 = vector.shape_cast %276 : vector<2x32xf32> to vector<1x2x32xf32>
    tpu.vector_store %arg7[%277, %c0_98, %c0_99], %280 {strides = array<i32>} : memref<4x2x32xf32, #tpu.memory_space<vmem>>, vector<1x2x32xf32>,
    %c3_i32_100 = arith.constant 3 : i32
    %281 = arith.subi %c3_i32_100, %c2_i32 : i32
    %c0_101 = arith.constant 0 : index
    %282 = arith.index_cast %281 : i32 to index
    %c0_102 = arith.constant 0 : index
    %c0_103 = arith.constant 0 : index
    %283 = vector.load %arg2[%c0_101, %282, %c0_102, %c0_103] : memref<3x4x2x32xf32, #tpu.memory_space<vmem>>, vector<1x1x2x32xf32>
    %284 = vector.shape_cast %283 : vector<1x1x2x32xf32> to vector<2x32xf32>
    %c1_104 = arith.constant 1 : index
    %285 = arith.index_cast %281 : i32 to index
    %c0_105 = arith.constant 0 : index
    %c0_106 = arith.constant 0 : index
    %286 = vector.load %arg2[%c1_104, %285, %c0_105, %c0_106] : memref<3x4x2x32xf32, #tpu.memory_space<vmem>>, vector<1x1x2x32xf32>
    %287 = vector.shape_cast %286 : vector<1x1x2x32xf32> to vector<2x32xf32>
    %c2_107 = arith.constant 2 : index
    %288 = arith.index_cast %281 : i32 to index
    %c0_108 = arith.constant 0 : index
    %c0_109 = arith.constant 0 : index
    %289 = vector.load %arg2[%c2_107, %288, %c0_108, %c0_109] : memref<3x4x2x32xf32, #tpu.memory_space<vmem>>, vector<1x1x2x32xf32>
    %290 = vector.shape_cast %289 : vector<1x1x2x32xf32> to vector<2x32xf32>
    %291 = vector.extract_strided_slice %4 {offsets = [0, 0, 0], sizes = [1, 32, 32], strides = [1, 1, 1]} : vector<3x32x32xf32> to vector<1x32x32xf32>
    %292 = vector.shape_cast %291 : vector<1x32x32xf32> to vector<32x32xf32>
    %cst_110 = arith.constant dense<0.000000e+00> : vector<2x32xf32>
    %293 = tpu.matmul %222, %292, %cst_110 {dimension_numbers = #tpu.dot_dimension_numbers<[1], [0], [0], [1], [0, 0, 1, 1], [], []>} : vector<2x32xf32>, vector<32x32xf32>, vector<2x32xf32> -> vector<2x32xf32>
    %294 = vector.extract_strided_slice %6 {offsets = [0, 0, 0], sizes = [1, 1, 32], strides = [1, 1, 1]} : vector<3x1x32xf32> to vector<1x1x32xf32>
    %295 = vector.shape_cast %294 : vector<1x1x32xf32> to vector<1x32xf32>
    %296 = vector.broadcast %295 : vector<1x32xf32> to vector<2x32xf32>
    %297 = arith.addf %293, %296 : vector<2x32xf32>
    %298 = vector.extract_strided_slice %4 {offsets = [1, 0, 0], sizes = [1, 32, 32], strides = [1, 1, 1]} : vector<3x32x32xf32> to vector<1x32x32xf32>
    %299 = vector.shape_cast %298 : vector<1x32x32xf32> to vector<32x32xf32>
    %cst_111 = arith.constant dense<0.000000e+00> : vector<2x32xf32>
    %300 = tpu.matmul %222, %299, %cst_111 {dimension_numbers = #tpu.dot_dimension_numbers<[1], [0], [0], [1], [0, 0, 1, 1], [], []>} : vector<2x32xf32>, vector<32x32xf32>, vector<2x32xf32> -> vector<2x32xf32>
    %301 = vector.extract_strided_slice %6 {offsets = [1, 0, 0], sizes = [1, 1, 32], strides = [1, 1, 1]} : vector<3x1x32xf32> to vector<1x1x32xf32>
    %302 = vector.shape_cast %301 : vector<1x1x32xf32> to vector<1x32xf32>
    %303 = vector.broadcast %302 : vector<1x32xf32> to vector<2x32xf32>
    %304 = arith.addf %300, %303 : vector<2x32xf32>
    %305 = vector.extract_strided_slice %4 {offsets = [2, 0, 0], sizes = [1, 32, 32], strides = [1, 1, 1]} : vector<3x32x32xf32> to vector<1x32x32xf32>
    %306 = vector.shape_cast %305 : vector<1x32x32xf32> to vector<32x32xf32>
    %cst_112 = arith.constant dense<0.000000e+00> : vector<2x32xf32>
    %307 = tpu.matmul %222, %306, %cst_112 {dimension_numbers = #tpu.dot_dimension_numbers<[1], [0], [0], [1], [0, 0, 1, 1], [], []>} : vector<2x32xf32>, vector<32x32xf32>, vector<2x32xf32> -> vector<2x32xf32>
    %308 = vector.extract_strided_slice %6 {offsets = [2, 0, 0], sizes = [1, 1, 32], strides = [1, 1, 1]} : vector<3x1x32xf32> to vector<1x1x32xf32>
    %309 = vector.shape_cast %308 : vector<1x1x32xf32> to vector<1x32xf32>
    %310 = vector.broadcast %309 : vector<1x32xf32> to vector<2x32xf32>
    %311 = arith.addf %307, %310 : vector<2x32xf32>
    %312 = arith.addf %284, %297 : vector<2x32xf32>
    %313 = arith.negf %312 : vector<2x32xf32>
    %314 = math.exp %313 : vector<2x32xf32>
    %cst_113 = arith.constant 1.000000e+00 : f32
    %315 = vector.broadcast %cst_113 : f32 to vector<2x32xf32>
    %316 = arith.addf %315, %314 : vector<2x32xf32>
    %317 = arith.divf %315, %316 : vector<2x32xf32>
    %318 = arith.addf %287, %304 : vector<2x32xf32>
    %319 = arith.negf %318 : vector<2x32xf32>
    %320 = math.exp %319 : vector<2x32xf32>
    %cst_114 = arith.constant 1.000000e+00 : f32
    %321 = vector.broadcast %cst_114 : f32 to vector<2x32xf32>
    %322 = arith.addf %321, %320 : vector<2x32xf32>
    %323 = arith.divf %321, %322 : vector<2x32xf32>
    %324 = arith.mulf %317, %311 : vector<2x32xf32>
    %325 = arith.addf %290, %324 : vector<2x32xf32>
    %326 = math.tanh %325 : vector<2x32xf32>
    %cst_115 = arith.constant 1.000000e+00 : f32
    %327 = vector.broadcast %cst_115 : f32 to vector<2x32xf32>
    %328 = arith.subf %327, %323 : vector<2x32xf32>
    %329 = arith.mulf %328, %326 : vector<2x32xf32>
    %330 = arith.mulf %323, %222 : vector<2x32xf32>
    %331 = arith.addf %329, %330 : vector<2x32xf32>
    %332 = arith.index_cast %281 : i32 to index
    %c0_116 = arith.constant 0 : index
    %c0_117 = arith.constant 0 : index
    %333 = vector.load %arg8[%332, %c0_116, %c0_117] : memref<4x2x32xf32, #tpu.memory_space<vmem>>, vector<1x2x32xf32>
    %334 = vector.shape_cast %333 : vector<1x2x32xf32> to vector<2x32xf32>
    %335 = vector.shape_cast %331 : vector<2x32xf32> to vector<1x2x32xf32>
    tpu.vector_store %arg8[%332, %c0_116, %c0_117], %335 {strides = array<i32>} : memref<4x2x32xf32, #tpu.memory_space<vmem>>, vector<1x2x32xf32>,
    %c3_i32_118 = arith.constant 3 : i32
    %c0_119 = arith.constant 0 : index
    %336 = arith.index_cast %c3_i32_118 : i32 to index
    %c0_120 = arith.constant 0 : index
    %c0_121 = arith.constant 0 : index
    %337 = vector.load %arg1[%c0_119, %336, %c0_120, %c0_121] : memref<3x4x2x32xf32, #tpu.memory_space<vmem>>, vector<1x1x2x32xf32>
    %338 = vector.shape_cast %337 : vector<1x1x2x32xf32> to vector<2x32xf32>
    %c1_122 = arith.constant 1 : index
    %339 = arith.index_cast %c3_i32_118 : i32 to index
    %c0_123 = arith.constant 0 : index
    %c0_124 = arith.constant 0 : index
    %340 = vector.load %arg1[%c1_122, %339, %c0_123, %c0_124] : memref<3x4x2x32xf32, #tpu.memory_space<vmem>>, vector<1x1x2x32xf32>
    %341 = vector.shape_cast %340 : vector<1x1x2x32xf32> to vector<2x32xf32>
    %c2_125 = arith.constant 2 : index
    %342 = arith.index_cast %c3_i32_118 : i32 to index
    %c0_126 = arith.constant 0 : index
    %c0_127 = arith.constant 0 : index
    %343 = vector.load %arg1[%c2_125, %342, %c0_126, %c0_127] : memref<3x4x2x32xf32, #tpu.memory_space<vmem>>, vector<1x1x2x32xf32>
    %344 = vector.shape_cast %343 : vector<1x1x2x32xf32> to vector<2x32xf32>
    %345 = vector.extract_strided_slice %3 {offsets = [0, 0, 0], sizes = [1, 32, 32], strides = [1, 1, 1]} : vector<3x32x32xf32> to vector<1x32x32xf32>
    %346 = vector.shape_cast %345 : vector<1x32x32xf32> to vector<32x32xf32>
    %cst_128 = arith.constant dense<0.000000e+00> : vector<2x32xf32>
    %347 = tpu.matmul %276, %346, %cst_128 {dimension_numbers = #tpu.dot_dimension_numbers<[1], [0], [0], [1], [0, 0, 1, 1], [], []>} : vector<2x32xf32>, vector<32x32xf32>, vector<2x32xf32> -> vector<2x32xf32>
    %348 = vector.extract_strided_slice %5 {offsets = [0, 0, 0], sizes = [1, 1, 32], strides = [1, 1, 1]} : vector<3x1x32xf32> to vector<1x1x32xf32>
    %349 = vector.shape_cast %348 : vector<1x1x32xf32> to vector<1x32xf32>
    %350 = vector.broadcast %349 : vector<1x32xf32> to vector<2x32xf32>
    %351 = arith.addf %347, %350 : vector<2x32xf32>
    %352 = vector.extract_strided_slice %3 {offsets = [1, 0, 0], sizes = [1, 32, 32], strides = [1, 1, 1]} : vector<3x32x32xf32> to vector<1x32x32xf32>
    %353 = vector.shape_cast %352 : vector<1x32x32xf32> to vector<32x32xf32>
    %cst_129 = arith.constant dense<0.000000e+00> : vector<2x32xf32>
    %354 = tpu.matmul %276, %353, %cst_129 {dimension_numbers = #tpu.dot_dimension_numbers<[1], [0], [0], [1], [0, 0, 1, 1], [], []>} : vector<2x32xf32>, vector<32x32xf32>, vector<2x32xf32> -> vector<2x32xf32>
    %355 = vector.extract_strided_slice %5 {offsets = [1, 0, 0], sizes = [1, 1, 32], strides = [1, 1, 1]} : vector<3x1x32xf32> to vector<1x1x32xf32>
    %356 = vector.shape_cast %355 : vector<1x1x32xf32> to vector<1x32xf32>
    %357 = vector.broadcast %356 : vector<1x32xf32> to vector<2x32xf32>
    %358 = arith.addf %354, %357 : vector<2x32xf32>
    %359 = vector.extract_strided_slice %3 {offsets = [2, 0, 0], sizes = [1, 32, 32], strides = [1, 1, 1]} : vector<3x32x32xf32> to vector<1x32x32xf32>
    %360 = vector.shape_cast %359 : vector<1x32x32xf32> to vector<32x32xf32>
    %cst_130 = arith.constant dense<0.000000e+00> : vector<2x32xf32>
    %361 = tpu.matmul %276, %360, %cst_130 {dimension_numbers = #tpu.dot_dimension_numbers<[1], [0], [0], [1], [0, 0, 1, 1], [], []>} : vector<2x32xf32>, vector<32x32xf32>, vector<2x32xf32> -> vector<2x32xf32>
    %362 = vector.extract_strided_slice %5 {offsets = [2, 0, 0], sizes = [1, 1, 32], strides = [1, 1, 1]} : vector<3x1x32xf32> to vector<1x1x32xf32>
    %363 = vector.shape_cast %362 : vector<1x1x32xf32> to vector<1x32xf32>
    %364 = vector.broadcast %363 : vector<1x32xf32> to vector<2x32xf32>
    %365 = arith.addf %361, %364 : vector<2x32xf32>
    %366 = arith.addf %338, %351 : vector<2x32xf32>
    %367 = arith.negf %366 : vector<2x32xf32>
    %368 = math.exp %367 : vector<2x32xf32>
    %cst_131 = arith.constant 1.000000e+00 : f32
    %369 = vector.broadcast %cst_131 : f32 to vector<2x32xf32>
    %370 = arith.addf %369, %368 : vector<2x32xf32>
    %371 = arith.divf %369, %370 : vector<2x32xf32>
    %372 = arith.addf %341, %358 : vector<2x32xf32>
    %373 = arith.negf %372 : vector<2x32xf32>
    %374 = math.exp %373 : vector<2x32xf32>
    %cst_132 = arith.constant 1.000000e+00 : f32
    %375 = vector.broadcast %cst_132 : f32 to vector<2x32xf32>
    %376 = arith.addf %375, %374 : vector<2x32xf32>
    %377 = arith.divf %375, %376 : vector<2x32xf32>
    %378 = arith.mulf %371, %365 : vector<2x32xf32>
    %379 = arith.addf %344, %378 : vector<2x32xf32>
    %380 = math.tanh %379 : vector<2x32xf32>
    %cst_133 = arith.constant 1.000000e+00 : f32
    %381 = vector.broadcast %cst_133 : f32 to vector<2x32xf32>
    %382 = arith.subf %381, %377 : vector<2x32xf32>
    %383 = arith.mulf %382, %380 : vector<2x32xf32>
    %384 = arith.mulf %377, %276 : vector<2x32xf32>
    %385 = arith.addf %383, %384 : vector<2x32xf32>
    %386 = arith.index_cast %c3_i32_118 : i32 to index
    %c0_134 = arith.constant 0 : index
    %c0_135 = arith.constant 0 : index
    %387 = vector.load %arg7[%386, %c0_134, %c0_135] : memref<4x2x32xf32, #tpu.memory_space<vmem>>, vector<1x2x32xf32>
    %388 = vector.shape_cast %387 : vector<1x2x32xf32> to vector<2x32xf32>
    %389 = vector.shape_cast %385 : vector<2x32xf32> to vector<1x2x32xf32>
    tpu.vector_store %arg7[%386, %c0_134, %c0_135], %389 {strides = array<i32>} : memref<4x2x32xf32, #tpu.memory_space<vmem>>, vector<1x2x32xf32>,
    %c3_i32_136 = arith.constant 3 : i32
    %390 = arith.subi %c3_i32_136, %c3_i32_118 : i32
    %c0_137 = arith.constant 0 : index
    %391 = arith.index_cast %390 : i32 to index
    %c0_138 = arith.constant 0 : index
    %c0_139 = arith.constant 0 : index
    %392 = vector.load %arg2[%c0_137, %391, %c0_138, %c0_139] : memref<3x4x2x32xf32, #tpu.memory_space<vmem>>, vector<1x1x2x32xf32>
    %393 = vector.shape_cast %392 : vector<1x1x2x32xf32> to vector<2x32xf32>
    %c1_140 = arith.constant 1 : index
    %394 = arith.index_cast %390 : i32 to index
    %c0_141 = arith.constant 0 : index
    %c0_142 = arith.constant 0 : index
    %395 = vector.load %arg2[%c1_140, %394, %c0_141, %c0_142] : memref<3x4x2x32xf32, #tpu.memory_space<vmem>>, vector<1x1x2x32xf32>
    %396 = vector.shape_cast %395 : vector<1x1x2x32xf32> to vector<2x32xf32>
    %c2_143 = arith.constant 2 : index
    %397 = arith.index_cast %390 : i32 to index
    %c0_144 = arith.constant 0 : index
    %c0_145 = arith.constant 0 : index
    %398 = vector.load %arg2[%c2_143, %397, %c0_144, %c0_145] : memref<3x4x2x32xf32, #tpu.memory_space<vmem>>, vector<1x1x2x32xf32>
    %399 = vector.shape_cast %398 : vector<1x1x2x32xf32> to vector<2x32xf32>
    %400 = vector.extract_strided_slice %4 {offsets = [0, 0, 0], sizes = [1, 32, 32], strides = [1, 1, 1]} : vector<3x32x32xf32> to vector<1x32x32xf32>
    %401 = vector.shape_cast %400 : vector<1x32x32xf32> to vector<32x32xf32>
    %cst_146 = arith.constant dense<0.000000e+00> : vector<2x32xf32>
    %402 = tpu.matmul %331, %401, %cst_146 {dimension_numbers = #tpu.dot_dimension_numbers<[1], [0], [0], [1], [0, 0, 1, 1], [], []>} : vector<2x32xf32>, vector<32x32xf32>, vector<2x32xf32> -> vector<2x32xf32>
    %403 = vector.extract_strided_slice %6 {offsets = [0, 0, 0], sizes = [1, 1, 32], strides = [1, 1, 1]} : vector<3x1x32xf32> to vector<1x1x32xf32>
    %404 = vector.shape_cast %403 : vector<1x1x32xf32> to vector<1x32xf32>
    %405 = vector.broadcast %404 : vector<1x32xf32> to vector<2x32xf32>
    %406 = arith.addf %402, %405 : vector<2x32xf32>
    %407 = vector.extract_strided_slice %4 {offsets = [1, 0, 0], sizes = [1, 32, 32], strides = [1, 1, 1]} : vector<3x32x32xf32> to vector<1x32x32xf32>
    %408 = vector.shape_cast %407 : vector<1x32x32xf32> to vector<32x32xf32>
    %cst_147 = arith.constant dense<0.000000e+00> : vector<2x32xf32>
    %409 = tpu.matmul %331, %408, %cst_147 {dimension_numbers = #tpu.dot_dimension_numbers<[1], [0], [0], [1], [0, 0, 1, 1], [], []>} : vector<2x32xf32>, vector<32x32xf32>, vector<2x32xf32> -> vector<2x32xf32>
    %410 = vector.extract_strided_slice %6 {offsets = [1, 0, 0], sizes = [1, 1, 32], strides = [1, 1, 1]} : vector<3x1x32xf32> to vector<1x1x32xf32>
    %411 = vector.shape_cast %410 : vector<1x1x32xf32> to vector<1x32xf32>
    %412 = vector.broadcast %411 : vector<1x32xf32> to vector<2x32xf32>
    %413 = arith.addf %409, %412 : vector<2x32xf32>
    %414 = vector.extract_strided_slice %4 {offsets = [2, 0, 0], sizes = [1, 32, 32], strides = [1, 1, 1]} : vector<3x32x32xf32> to vector<1x32x32xf32>
    %415 = vector.shape_cast %414 : vector<1x32x32xf32> to vector<32x32xf32>
    %cst_148 = arith.constant dense<0.000000e+00> : vector<2x32xf32>
    %416 = tpu.matmul %331, %415, %cst_148 {dimension_numbers = #tpu.dot_dimension_numbers<[1], [0], [0], [1], [0, 0, 1, 1], [], []>} : vector<2x32xf32>, vector<32x32xf32>, vector<2x32xf32> -> vector<2x32xf32>
    %417 = vector.extract_strided_slice %6 {offsets = [2, 0, 0], sizes = [1, 1, 32], strides = [1, 1, 1]} : vector<3x1x32xf32> to vector<1x1x32xf32>
    %418 = vector.shape_cast %417 : vector<1x1x32xf32> to vector<1x32xf32>
    %419 = vector.broadcast %418 : vector<1x32xf32> to vector<2x32xf32>
    %420 = arith.addf %416, %419 : vector<2x32xf32>
    %421 = arith.addf %393, %406 : vector<2x32xf32>
    %422 = arith.negf %421 : vector<2x32xf32>
    %423 = math.exp %422 : vector<2x32xf32>
    %cst_149 = arith.constant 1.000000e+00 : f32
    %424 = vector.broadcast %cst_149 : f32 to vector<2x32xf32>
    %425 = arith.addf %424, %423 : vector<2x32xf32>
    %426 = arith.divf %424, %425 : vector<2x32xf32>
    %427 = arith.addf %396, %413 : vector<2x32xf32>
    %428 = arith.negf %427 : vector<2x32xf32>
    %429 = math.exp %428 : vector<2x32xf32>
    %cst_150 = arith.constant 1.000000e+00 : f32
    %430 = vector.broadcast %cst_150 : f32 to vector<2x32xf32>
    %431 = arith.addf %430, %429 : vector<2x32xf32>
    %432 = arith.divf %430, %431 : vector<2x32xf32>
    %433 = arith.mulf %426, %420 : vector<2x32xf32>
    %434 = arith.addf %399, %433 : vector<2x32xf32>
    %435 = math.tanh %434 : vector<2x32xf32>
    %cst_151 = arith.constant 1.000000e+00 : f32
    %436 = vector.broadcast %cst_151 : f32 to vector<2x32xf32>
    %437 = arith.subf %436, %432 : vector<2x32xf32>
    %438 = arith.mulf %437, %435 : vector<2x32xf32>
    %439 = arith.mulf %432, %331 : vector<2x32xf32>
    %440 = arith.addf %438, %439 : vector<2x32xf32>
    %441 = arith.index_cast %390 : i32 to index
    %c0_152 = arith.constant 0 : index
    %c0_153 = arith.constant 0 : index
    %442 = vector.load %arg8[%441, %c0_152, %c0_153] : memref<4x2x32xf32, #tpu.memory_space<vmem>>, vector<1x2x32xf32>
    %443 = vector.shape_cast %442 : vector<1x2x32xf32> to vector<2x32xf32>
    %444 = vector.shape_cast %440 : vector<2x32xf32> to vector<1x2x32xf32>
    tpu.vector_store %arg8[%441, %c0_152, %c0_153], %444 {strides = array<i32>} : memref<4x2x32xf32, #tpu.memory_space<vmem>>, vector<1x2x32xf32>,
    %c4_i32 = arith.constant 4 : i32
    %c0_154 = arith.constant 0 : index
    %c0_155 = arith.constant 0 : index
    %445 = vector.load %arg9[%c0_154, %c0_155] : memref<2x32xf32, #tpu.memory_space<vmem>>, vector<2x32xf32>
    tpu.vector_store %arg9[%c0_154, %c0_155], %385 {strides = array<i32>} : memref<2x32xf32, #tpu.memory_space<vmem>>, vector<2x32xf32>,
    %c0_156 = arith.constant 0 : index
    %c0_157 = arith.constant 0 : index
    %446 = vector.load %arg10[%c0_156, %c0_157] : memref<2x32xf32, #tpu.memory_space<vmem>>, vector<2x32xf32>
    tpu.vector_store %arg10[%c0_156, %c0_157], %440 {strides = array<i32>} : memref<2x32xf32, #tpu.memory_space<vmem>>, vector<2x32xf32>,
    return
  }
  func.func @transform_0(%arg0: i32) -> (i32, i32, i32, i32) {
    %c0_i32 = arith.constant 0 : i32
    %c0_i32_0 = arith.constant 0 : i32
    %c0_i32_1 = arith.constant 0 : i32
    %c0_i32_2 = arith.constant 0 : i32
    return %c0_i32, %arg0, %c0_i32_0, %c0_i32_1 : i32, i32, i32, i32
  }
  func.func @transform_1(%arg0: i32) -> (i32, i32, i32, i32) {
    %c1_i32 = arith.constant 1 : i32
    %0 = arith.subi %c1_i32, %arg0 : i32
    %c1_i32_0 = arith.constant 1 : i32
    %c0_i32 = arith.constant 0 : i32
    %c0_i32_1 = arith.constant 0 : i32
    %c0_i32_2 = arith.constant 0 : i32
    return %c1_i32_0, %0, %c0_i32, %c0_i32_1 : i32, i32, i32, i32
  }
  func.func @transform_2(%arg0: i32) -> (i32, i32, i32) {
    %c0_i32 = arith.constant 0 : i32
    %c0_i32_0 = arith.constant 0 : i32
    %c0_i32_1 = arith.constant 0 : i32
    %c0_i32_2 = arith.constant 0 : i32
    return %c0_i32, %c0_i32_0, %c0_i32_1 : i32, i32, i32
  }
  func.func @transform_3(%arg0: i32) -> (i32, i32, i32) {
    %c0_i32 = arith.constant 0 : i32
    %c0_i32_0 = arith.constant 0 : i32
    %c0_i32_1 = arith.constant 0 : i32
    %c0_i32_2 = arith.constant 0 : i32
    return %c0_i32, %c0_i32_0, %c0_i32_1 : i32, i32, i32
  }
  func.func @transform_4(%arg0: i32) -> (i32, i32, i32) {
    %c0_i32 = arith.constant 0 : i32
    %c0_i32_0 = arith.constant 0 : i32
    %c0_i32_1 = arith.constant 0 : i32
    %c0_i32_2 = arith.constant 0 : i32
    return %c0_i32, %c0_i32_0, %c0_i32_1 : i32, i32, i32
  }
  func.func @transform_5(%arg0: i32) -> (i32, i32, i32) {
    %c0_i32 = arith.constant 0 : i32
    %c0_i32_0 = arith.constant 0 : i32
    %c0_i32_1 = arith.constant 0 : i32
    %c0_i32_2 = arith.constant 0 : i32
    return %c0_i32, %c0_i32_0, %c0_i32_1 : i32, i32, i32
  }
  func.func @transform_6(%arg0: i32) -> (i32, i32, i32) {
    %c0_i32 = arith.constant 0 : i32
    %c0_i32_0 = arith.constant 0 : i32
    %c0_i32_1 = arith.constant 0 : i32
    return %arg0, %c0_i32, %c0_i32_0 : i32, i32, i32
  }
  func.func @transform_7(%arg0: i32) -> (i32, i32, i32) {
    %c1_i32 = arith.constant 1 : i32
    %0 = arith.subi %c1_i32, %arg0 : i32
    %c0_i32 = arith.constant 0 : i32
    %c0_i32_0 = arith.constant 0 : i32
    %c0_i32_1 = arith.constant 0 : i32
    return %0, %c0_i32, %c0_i32_0 : i32, i32, i32
  }
}

</mosaic_0001>

<llo_original>
// kernel: extractive_model_forward.9
$region0: #{extractive_model_forward.9}
  #allocation0 [shape = 'u32[]', space=smem, size = 0x4, offset = 0x4, fixed_abs, tag = 'smem constant byte address 0x4 - core index']
  #allocation1 [shape = 'u32[144,128]{1,0:T(1,128)}', space=vmem, size = 0x12000, scoped, tag = 'internal scratch']
  #allocation2 [shape = 'f32[1]{0:T(128)S(6)}', space=smem, size = 0x200, scoped, tag = 'scoped memory for extractive_model_forward.9']
  %s0 = inlined_call_operand.vmem [shape: f32[16,32], index: 0, kind: input, shape index: {}]
  %s1 = inlined_call_operand.vmem [shape: f32[16,32], index: 1, kind: input, shape index: {}]
  %s2 = inlined_call_operand.vmem [shape: f32[32,1], index: 2, kind: input, shape index: {}]
  %s3 = inlined_call_operand.vmem [shape: f32[32,1], index: 3, kind: input, shape index: {}]
  %s4 = inlined_call_operand.<no memory space> [shape: f32[1], index: 4, kind: input, shape index: {}]
  %s5 = inlined_call_operand.vmem [shape: f32[16,1], index: 5, kind: output, shape index: {}]
  %s6 = sld [smem:[#allocation0]]
  $region30: #{extractive_model_forward.9} parent=0
    _
  %s8 = ssub.s32 1, %s6
  %s9 = scalar_select 0, %s8, %s6
  %10 = sst [smem:[#allocation2]] %s4
  // Predicated region
  $region2: #{extractive_model_forward.9} parent=0 // pred_check
    _
  $region3: #{extractive_model_forward.9} parent=0 // pred_check_branch
    %12 = sbr.rel (0) target = $region5
  $region4: #{extractive_model_forward.9} parent=0 // pred_region
    _
  $region5: #{extractive_model_forward.9} parent=0 // pred_fallthru
    _
  // Predicated region
  $region6: #{extractive_model_forward.9} parent=0 // pred_check
    _
  $region7: #{extractive_model_forward.9} parent=0 // pred_check_branch
    %14 = sbr.rel (0) target = $region9
  $region8: #{extractive_model_forward.9} parent=0 // pred_region
    _
  $region9: #{extractive_model_forward.9} parent=0 // pred_fallthru
    _
  // Predicated region
  $region10: #{extractive_model_forward.9} parent=0 // pred_check
    _
  $region11: #{extractive_model_forward.9} parent=0 // pred_check_branch
    %16 = sbr.rel (0) target = $region13
  $region12: #{extractive_model_forward.9} parent=0 // pred_region
    _
  $region13: #{extractive_model_forward.9} parent=0 // pred_fallthru
    _
  // Predicated region
  $region14: #{extractive_model_forward.9} parent=0 // pred_check
    _
  $region15: #{extractive_model_forward.9} parent=0 // pred_check_branch
    %18 = sbr.rel (0) target = $region17
  $region16: #{extractive_model_forward.9} parent=0 // pred_region
    _
  $region17: #{extractive_model_forward.9} parent=0 // pred_fallthru
    _
  // Predicated region
  $region18: #{extractive_model_forward.9} parent=0 // pred_check
    _
  $region19: #{extractive_model_forward.9} parent=0 // pred_check_branch
    %20 = sbr.rel (0) target = $region21
  $region20: #{extractive_model_forward.9} parent=0 // pred_region
    _
  $region21: #{extractive_model_forward.9} parent=0 // pred_fallthru
    _
  %v21 = vld [vmem:[%s0] sm:$0xff]
  %v22 = vld [vmem:[%s0 + $0x8] sm:$0xff]
  %v23 = vld [vmem:[%s2] sm:$0xff]
  %v24 = vld [vmem:[%s2 + $0x8] sm:$0xff]
  %v25 = vld [vmem:[%s2 + $0x10] sm:$0xff]
  %v26 = vld [vmem:[%s2 + $0x18] sm:$0xff]
  %v27 = vld [vmem:[%s1] sm:$0xff]
  %v28 = vld [vmem:[%s1 + $0x8] sm:$0xff]
  %v29 = vld [vmem:[%s3] sm:$0xff]
  %v30 = vld [vmem:[%s3 + $0x8] sm:$0xff]
  %v31 = vld [vmem:[%s3 + $0x10] sm:$0xff]
  %v32 = vld [vmem:[%s3 + $0x18] sm:$0xff]
  %vm33 = vcmask 261120
  %v35 = vsel %vm33, %v27, 0
  %v38 = vsel %vm33, %v28, 0
  %40 = vmatprep.subr.mxu0 0.0
  %41 = vmatpush1.msra.mxu0 %v29
  %42 = vmatprep.subr.mxu0 0.0
  %43 = vmatpush1.msra.mxu0 %v30
  %44 = vmatprep.subr.mxu0 0.0
  %45 = vmatpush1.msra.mxu0 %v31
  %46 = vmatprep.subr.mxu0 0.0
  %47 = vmatpush1.msra.mxu0 %v32
  %48 = vmatprep.subr.mxu0 0.0
  %49 = vmatpush1.msra.mxu0 0.0
  %50 = vmatprep.subr.mxu0 0.0
  %51 = vmatpush1.msra.mxu0 0.0
  %52 = vmatprep.subr.mxu0 0.0
  %53 = vmatpush1.msra.mxu0 0.0
  %54 = vmatprep.subr.mxu0 0.0
  %55 = vmatpush1.msra.mxu0 0.0
  %56 = vmatprep.subr.mxu0 0.0
  %57 = vmatpush1.msra.mxu0 0.0
  %58 = vmatprep.subr.mxu0 0.0
  %59 = vmatpush1.msra.mxu0 0.0
  %60 = vmatprep.subr.mxu0 0.0
  %61 = vmatpush1.msra.mxu0 0.0
  %62 = vmatprep.subr.mxu0 0.0
  %63 = vmatpush1.msra.mxu0 0.0
  %64 = vmatprep.subr.mxu0 0.0
  %65 = vmatpush1.msra.mxu0 0.0
  %66 = vmatprep.subr.mxu0 0.0
  %67 = vmatpush1.msra.mxu0 0.0
  %68 = vmatprep.subr.mxu0 0.0
  %69 = vmatpush1.msra.mxu0 0.0
  %70 = vmatprep.subr.mxu0 0.0
  %71 = vmatpush1.msra.mxu0 0.0
  %72 = vmatprep.subr.mxu0 0.0
  %73 = vmatpush1.msra.mxu0 0.0
  %74 = vmatprep.subr.mxu0 0.0
  %75 = vmatpush1.msra.mxu0 0.0
  %76 = vmatprep.subr.mxu0 0.0
  %77 = vmatpush1.msra.mxu0 0.0
  %78 = vmatprep.subr.mxu0 0.0
  %79 = vmatpush1.msra.mxu0 0.0
  %80 = vmatprep.subr.mxu0 0.0
  %81 = vmatpush1.msra.mxu0 0.0
  %82 = vmatprep.subr.mxu0 0.0
  %83 = vmatpush1.msra.mxu0 0.0
  %84 = vmatprep.subr.mxu0 0.0
  %85 = vmatpush1.msra.mxu0 0.0
  %86 = vmatprep.subr.mxu0 0.0
  %87 = vmatpush1.msra.mxu0 0.0
  %88 = vmatprep.subr.mxu0 0.0
  %89 = vmatpush1.msra.mxu0 0.0
  %90 = vmatprep.subr.mxu0 0.0
  %91 = vmatpush1.msra.mxu0 0.0
  %92 = vmatprep.subr.mxu0 0.0
  %93 = vmatpush1.msra.mxu0 0.0
  %94 = vmatprep.subr.mxu0 0.0
  %95 = vmatpush1.msra.mxu0 0.0
  %96 = vmatprep.subr.mxu0 0.0
  %97 = vmatpush1.msra.mxu0 0.0
  %98 = vmatprep.subr.mxu0 0.0
  %99 = vmatpush1.msra.mxu0 0.0
  %100 = vmatprep.subr.mxu0 0.0
  %101 = vmatpush1.msra.mxu0 0.0
  %102 = vmatprep.subr.mxu0 0.0
  %103 = vmatpush1.msra.mxu0 0.0
  %104 = vmatprep.mubr.f32.mxu0 0.0
  %105 = vmatmul.mubr.f32.gmra.mrb[0].mxu0 %v35
  %v106 = vpop.f32.mrb[0].mxu0
  %v107 = vadd.f32 0.0, %v106
  %v108 = vpop.f32.mrb[0].mxu0
  %109 = vmatprep.mubr.f32.mxu0 0.0
  %110 = vmatmul.mubr.f32.gmra.mrb[0].mxu0 %v38
  %v111 = vpop.f32.mrb[0].mxu0
  %v112 = vadd.f32 0.0, %v111
  %v113 = vpop.f32.mrb[0].mxu0
  %114 = vdwg.mxu0
  %v116 = vsel %vm33, %v21, 0
  %v119 = vsel %vm33, %v22, 0
  %121 = vmatprep.subr.mxu0 0.0
  %122 = vmatpush1.msra.mxu0 %v23
  %123 = vmatprep.subr.mxu0 0.0
  %124 = vmatpush1.msra.mxu0 %v24
  %125 = vmatprep.subr.mxu0 0.0
  %126 = vmatpush1.msra.mxu0 %v25
  %127 = vmatprep.subr.mxu0 0.0
  %128 = vmatpush1.msra.mxu0 %v26
  %129 = vmatprep.subr.mxu0 0.0
  %130 = vmatpush1.msra.mxu0 0.0
  %131 = vmatprep.subr.mxu0 0.0
  %132 = vmatpush1.msra.mxu0 0.0
  %133 = vmatprep.subr.mxu0 0.0
  %134 = vmatpush1.msra.mxu0 0.0
  %135 = vmatprep.subr.mxu0 0.0
  %136 = vmatpush1.msra.mxu0 0.0
  %137 = vmatprep.subr.mxu0 0.0
  %138 = vmatpush1.msra.mxu0 0.0
  %139 = vmatprep.subr.mxu0 0.0
  %140 = vmatpush1.msra.mxu0 0.0
  %141 = vmatprep.subr.mxu0 0.0
  %142 = vmatpush1.msra.mxu0 0.0
  %143 = vmatprep.subr.mxu0 0.0
  %144 = vmatpush1.msra.mxu0 0.0
  %145 = vmatprep.subr.mxu0 0.0
  %146 = vmatpush1.msra.mxu0 0.0
  %147 = vmatprep.subr.mxu0 0.0
  %148 = vmatpush1.msra.mxu0 0.0
  %149 = vmatprep.subr.mxu0 0.0
  %150 = vmatpush1.msra.mxu0 0.0
  %151 = vmatprep.subr.mxu0 0.0
  %152 = vmatpush1.msra.mxu0 0.0
  %153 = vmatprep.subr.mxu0 0.0
  %154 = vmatpush1.msra.mxu0 0.0
  %155 = vmatprep.subr.mxu0 0.0
  %156 = vmatpush1.msra.mxu0 0.0
  %157 = vmatprep.subr.mxu0 0.0
  %158 = vmatpush1.msra.mxu0 0.0
  %159 = vmatprep.subr.mxu0 0.0
  %160 = vmatpush1.msra.mxu0 0.0
  %161 = vmatprep.subr.mxu0 0.0
  %162 = vmatpush1.msra.mxu0 0.0
  %163 = vmatprep.subr.mxu0 0.0
  %164 = vmatpush1.msra.mxu0 0.0
  %165 = vmatprep.subr.mxu0 0.0
  %166 = vmatpush1.msra.mxu0 0.0
  %167 = vmatprep.subr.mxu0 0.0
  %168 = vmatpush1.msra.mxu0 0.0
  %169 = vmatprep.subr.mxu0 0.0
  %170 = vmatpush1.msra.mxu0 0.0
  %171 = vmatprep.subr.mxu0 0.0
  %172 = vmatpush1.msra.mxu0 0.0
  %173 = vmatprep.subr.mxu0 0.0
  %174 = vmatpush1.msra.mxu0 0.0
  %175 = vmatprep.subr.mxu0 0.0
  %176 = vmatpush1.msra.mxu0 0.0
  %177 = vmatprep.subr.mxu0 0.0
  %178 = vmatpush1.msra.mxu0 0.0
  %179 = vmatprep.subr.mxu0 0.0
  %180 = vmatpush1.msra.mxu0 0.0
  %181 = vmatprep.subr.mxu0 0.0
  %182 = vmatpush1.msra.mxu0 0.0
  %183 = vmatprep.subr.mxu0 0.0
  %184 = vmatpush1.msra.mxu0 0.0
  %185 = vmatprep.mubr.f32.mxu0 0.0
  %186 = vmatmul.mubr.f32.gmra.mrb[0].mxu0 %v116
  %v187 = vpop.f32.mrb[0].mxu0
  %v188 = vadd.f32 %v107, %v187
  %v189 = vpop.f32.mrb[0].mxu0
  %190 = vmatprep.mubr.f32.mxu0 0.0
  %191 = vmatmul.mubr.f32.gmra.mrb[0].mxu0 %v119
  %v192 = vpop.f32.mrb[0].mxu0
  %v193 = vadd.f32 %v112, %v192
  %v194 = vpop.f32.mrb[0].mxu0
  %195 = vdwg.mxu0
  %s196 = sld [smem:[#allocation2]]
  %v197 = vstv %s196
  %v198 = vadd.f32 %v188, %v197
  %v199 = vadd.f32 %v193, %v197
  %vm200 = vcmask 7168
  %201 = vst.msk [vmem:[%s5] sm:$0xff] %vm200, %v198
  %202 = vst.msk [vmem:[%s5 + $0x8] sm:$0xff] %vm200, %v199
  // Predicated region
  $region22: #{extractive_model_forward.9} parent=0 // pred_check
    _
  $region23: #{extractive_model_forward.9} parent=0 // pred_check_branch
    %204 = sbr.rel (0) target = $region25
  $region24: #{extractive_model_forward.9} parent=0 // pred_region
    _
  $region25: #{extractive_model_forward.9} parent=0 // pred_fallthru
    _
  // Predicated region
  $region26: #{extractive_model_forward.9} parent=0 // pred_check
    _
  $region27: #{extractive_model_forward.9} parent=0 // pred_check_branch
    %206 = sbr.rel (0) target = $region29
  $region28: #{extractive_model_forward.9} parent=0 // pred_region
    _
  $region29: #{extractive_model_forward.9} parent=0 // pred_fallthru
    _

// kernel: extractive_model_forward.5
$region0: #{extractive_model_forward.5}
  #allocation0 [shape = 'u32[]', space=smem, size = 0x4, offset = 0x4, fixed_abs, tag = 'smem constant byte address 0x4 - core index']
  #allocation1 [shape = 'u32[144,128]{1,0:T(1,128)}', space=vmem, size = 0x12000, scoped, tag = 'internal scratch']
  %s0 = inlined_call_operand.vmem [shape: s32[16,1], index: 0, kind: input, shape index: {}]
  %s1 = inlined_call_operand.vmem [shape: f32[6,50,32], index: 1, kind: input, shape index: {}]
  %s2 = inlined_call_operand.vmem [shape: f32[6,16,32], index: 2, kind: output, shape index: {}]
  %s3 = sld [smem:[#allocation0]]
  $region18: #{extractive_model_forward.5} parent=0
    _
  %s5 = ssub.s32 1, %s3
  %s6 = scalar_select 0, %s5, %s3
  // Predicated region
  $region2: #{extractive_model_forward.5} parent=0 // pred_check
    _
  $region3: #{extractive_model_forward.5} parent=0 // pred_check_branch
    %8 = sbr.rel (0) target = $region5
  $region4: #{extractive_model_forward.5} parent=0 // pred_region
    _
  $region5: #{extractive_model_forward.5} parent=0 // pred_fallthru
    _
  // Predicated region
  $region6: #{extractive_model_forward.5} parent=0 // pred_check
    _
  $region7: #{extractive_model_forward.5} parent=0 // pred_check_branch
    %10 = sbr.rel (0) target = $region9
  $region8: #{extractive_model_forward.5} parent=0 // pred_region
    _
  $region9: #{extractive_model_forward.5} parent=0 // pred_fallthru
    _
  %v11 = vlaneseq
  %v12 = vand.u32 %v11, 127
  %v13 = vld [vmem:[%s0] sm:$0xff]
  %v14 = vld [vmem:[%s0 + $0x8] sm:$0xff]
  %15 = vset.pattern.permute.xlu0 0
  %16 = vperm.xlu0 %15, %v13
  %v17 = vpop.permute.xlu0 %16
  %18 = vset.pattern.permute.xlu0 0
  %19 = vperm.xlu0 %18, %v14
  %v20 = vpop.permute.xlu0 %19
  %vm21 = vcmp.eq.s32.totalorder %v12, %v17
  %vm22 = vcmp.eq.s32.totalorder %v12, %v20
  %v23 = vsel %vm21, 1, 0
  %v24 = vsel %vm22, 1, 0
  %v25 = vcvt.s32.f32 %v23
  %v26 = vcvt.s32.f32 %v24
  %v27 = vld [vmem:[%s1] sm:$0xff]
  %v28 = vld [vmem:[%s1 + $0x8] sm:$0xff]
  %v29 = vld [vmem:[%s1 + $0x10] sm:$0xff]
  %v30 = vld [vmem:[%s1 + $0x18] sm:$0xff]
  %v31 = vld [vmem:[%s1 + $0x20] sm:$0xff]
  %v32 = vld [vmem:[%s1 + $0x28] sm:$0xff]
  %v33 = vld [vmem:[%s1 + $0x30] sm:$0x3]
  %vm34 = vcmask 408576
  %v36 = vsel %vm34, %v25, 0
  %v39 = vsel %vm34, %v26, 0
  %vm41 = vcmask 1041408
  %v43 = vsel %vm41, %v33, 0
  %45 = vmatprep.subr.mxu0 0.0
  %46 = vmatpush1.msra.mxu0 %v27
  %47 = vmatprep.subr.mxu0 0.0
  %48 = vmatpush1.msra.mxu0 %v28
  %49 = vmatprep.subr.mxu0 0.0
  %50 = vmatpush1.msra.mxu0 %v29
  %51 = vmatprep.subr.mxu0 0.0
  %52 = vmatpush1.msra.mxu0 %v30
  %53 = vmatprep.subr.mxu0 0.0
  %54 = vmatpush1.msra.mxu0 %v31
  %55 = vmatprep.subr.mxu0 0.0
  %56 = vmatpush1.msra.mxu0 %v32
  %57 = vmatprep.subr.mxu0 0.0
  %58 = vmatpush1.msra.mxu0 %v43
  %59 = vmatprep.subr.mxu0 0.0
  %60 = vmatpush1.msra.mxu0 0.0
  %61 = vmatprep.subr.mxu0 0.0
  %62 = vmatpush1.msra.mxu0 0.0
  %63 = vmatprep.subr.mxu0 0.0
  %64 = vmatpush1.msra.mxu0 0.0
  %65 = vmatprep.subr.mxu0 0.0
  %66 = vmatpush1.msra.mxu0 0.0
  %67 = vmatprep.subr.mxu0 0.0
  %68 = vmatpush1.msra.mxu0 0.0
  %69 = vmatprep.subr.mxu0 0.0
  %70 = vmatpush1.msra.mxu0 0.0
  %71 = vmatprep.subr.mxu0 0.0
  %72 = vmatpush1.msra.mxu0 0.0
  %73 = vmatprep.subr.mxu0 0.0
  %74 = vmatpush1.msra.mxu0 0.0
  %75 = vmatprep.subr.mxu0 0.0
  %76 = vmatpush1.msra.mxu0 0.0
  %77 = vmatprep.subr.mxu0 0.0
  %78 = vmatpush1.msra.mxu0 0.0
  %79 = vmatprep.subr.mxu0 0.0
  %80 = vmatpush1.msra.mxu0 0.0
  %81 = vmatprep.subr.mxu0 0.0
  %82 = vmatpush1.msra.mxu0 0.0
  %83 = vmatprep.subr.mxu0 0.0
  %84 = vmatpush1.msra.mxu0 0.0
  %85 = vmatprep.subr.mxu0 0.0
  %86 = vmatpush1.msra.mxu0 0.0
  %87 = vmatprep.subr.mxu0 0.0
  %88 = vmatpush1.msra.mxu0 0.0
  %89 = vmatprep.subr.mxu0 0.0
  %90 = vmatpush1.msra.mxu0 0.0
  %91 = vmatprep.subr.mxu0 0.0
  %92 = vmatpush1.msra.mxu0 0.0
  %93 = vmatprep.subr.mxu0 0.0
  %94 = vmatpush1.msra.mxu0 0.0
  %95 = vmatprep.subr.mxu0 0.0
  %96 = vmatpush1.msra.mxu0 0.0
  %97 = vmatprep.subr.mxu0 0.0
  %98 = vmatpush1.msra.mxu0 0.0
  %99 = vmatprep.subr.mxu0 0.0
  %100 = vmatpush1.msra.mxu0 0.0
  %101 = vmatprep.subr.mxu0 0.0
  %102 = vmatpush1.msra.mxu0 0.0
  %103 = vmatprep.subr.mxu0 0.0
  %104 = vmatpush1.msra.mxu0 0.0
  %105 = vmatprep.subr.mxu0 0.0
  %106 = vmatpush1.msra.mxu0 0.0
  %107 = vmatprep.subr.mxu0 0.0
  %108 = vmatpush1.msra.mxu0 0.0
  %109 = vmatprep.mubr.f32.mxu0 0.0
  %110 = vmatmul.mubr.f32.gmra.mrb[0].mxu0 %v36
  %v111 = vpop.f32.mrb[0].mxu0
  %v112 = vadd.f32 0.0, %v111
  %v113 = vpop.f32.mrb[0].mxu0
  %114 = vmatprep.mubr.f32.mxu0 0.0
  %115 = vmatmul.mubr.f32.gmra.mrb[0].mxu0 %v39
  %v116 = vpop.f32.mrb[0].mxu0
  %v117 = vadd.f32 0.0, %v116
  %v118 = vpop.f32.mrb[0].mxu0
  %119 = vdwg.mxu0
  %vm120 = vcmask 261120
  %121 = vst.msk [vmem:[%s2] sm:$0xff] %vm120, %v112
  %122 = vst.msk [vmem:[%s2 + $0x8] sm:$0xff] %vm120, %v117
  %s123 = scalar_lea.vmem %s1, 56
  %v124 = vld [vmem:[%s123] sm:$0xff]
  %v125 = vld [vmem:[%s123 + $0x8] sm:$0xff]
  %v126 = vld [vmem:[%s123 + $0x10] sm:$0xff]
  %v127 = vld [vmem:[%s123 + $0x18] sm:$0xff]
  %v128 = vld [vmem:[%s123 + $0x20] sm:$0xff]
  %v129 = vld [vmem:[%s123 + $0x28] sm:$0xff]
  %v130 = vld [vmem:[%s123 + $0x30] sm:$0x3]
  %v132 = vsel %vm41, %v130, 0
  %134 = vmatprep.subr.mxu0 0.0
  %135 = vmatpush1.msra.mxu0 %v124
  %136 = vmatprep.subr.mxu0 0.0
  %137 = vmatpush1.msra.mxu0 %v125
  %138 = vmatprep.subr.mxu0 0.0
  %139 = vmatpush1.msra.mxu0 %v126
  %140 = vmatprep.subr.mxu0 0.0
  %141 = vmatpush1.msra.mxu0 %v127
  %142 = vmatprep.subr.mxu0 0.0
  %143 = vmatpush1.msra.mxu0 %v128
  %144 = vmatprep.subr.mxu0 0.0
  %145 = vmatpush1.msra.mxu0 %v129
  %146 = vmatprep.subr.mxu0 0.0
  %147 = vmatpush1.msra.mxu0 %v132
  %148 = vmatprep.subr.mxu0 0.0
  %149 = vmatpush1.msra.mxu0 0.0
  %150 = vmatprep.subr.mxu0 0.0
  %151 = vmatpush1.msra.mxu0 0.0
  %152 = vmatprep.subr.mxu0 0.0
  %153 = vmatpush1.msra.mxu0 0.0
  %154 = vmatprep.subr.mxu0 0.0
  %155 = vmatpush1.msra.mxu0 0.0
  %156 = vmatprep.subr.mxu0 0.0
  %157 = vmatpush1.msra.mxu0 0.0
  %158 = vmatprep.subr.mxu0 0.0
  %159 = vmatpush1.msra.mxu0 0.0
  %160 = vmatprep.subr.mxu0 0.0
  %161 = vmatpush1.msra.mxu0 0.0
  %162 = vmatprep.subr.mxu0 0.0
  %163 = vmatpush1.msra.mxu0 0.0
  %164 = vmatprep.subr.mxu0 0.0
  %165 = vmatpush1.msra.mxu0 0.0
  %166 = vmatprep.subr.mxu0 0.0
  %167 = vmatpush1.msra.mxu0 0.0
  %168 = vmatprep.subr.mxu0 0.0
  %169 = vmatpush1.msra.mxu0 0.0
  %170 = vmatprep.subr.mxu0 0.0
  %171 = vmatpush1.msra.mxu0 0.0
  %172 = vmatprep.subr.mxu0 0.0
  %173 = vmatpush1.msra.mxu0 0.0
  %174 = vmatprep.subr.mxu0 0.0
  %175 = vmatpush1.msra.mxu0 0.0
  %176 = vmatprep.subr.mxu0 0.0
  %177 = vmatpush1.msra.mxu0 0.0
  %178 = vmatprep.subr.mxu0 0.0
  %179 = vmatpush1.msra.mxu0 0.0
  %180 = vmatprep.subr.mxu0 0.0
  %181 = vmatpush1.msra.mxu0 0.0
  %182 = vmatprep.subr.mxu0 0.0
  %183 = vmatpush1.msra.mxu0 0.0
  %184 = vmatprep.subr.mxu0 0.0
  %185 = vmatpush1.msra.mxu0 0.0
  %186 = vmatprep.subr.mxu0 0.0
  %187 = vmatpush1.msra.mxu0 0.0
  %188 = vmatprep.subr.mxu0 0.0
  %189 = vmatpush1.msra.mxu0 0.0
  %190 = vmatprep.subr.mxu0 0.0
  %191 = vmatpush1.msra.mxu0 0.0
  %192 = vmatprep.subr.mxu0 0.0
  %193 = vmatpush1.msra.mxu0 0.0
  %194 = vmatprep.subr.mxu0 0.0
  %195 = vmatpush1.msra.mxu0 0.0
  %196 = vmatprep.subr.mxu0 0.0
  %197 = vmatpush1.msra.mxu0 0.0
  %198 = vmatprep.mubr.f32.mxu0 0.0
  %199 = vmatmul.mubr.f32.gmra.mrb[0].mxu0 %v36
  %v200 = vpop.f32.mrb[0].mxu0
  %v201 = vadd.f32 0.0, %v200
  %v202 = vpop.f32.mrb[0].mxu0
  %203 = vmatprep.mubr.f32.mxu0 0.0
  %204 = vmatmul.mubr.f32.gmra.mrb[0].mxu0 %v39
  %v205 = vpop.f32.mrb[0].mxu0
  %v206 = vadd.f32 0.0, %v205
  %v207 = vpop.f32.mrb[0].mxu0
  %208 = vdwg.mxu0
  %s209 = scalar_lea.vmem %s2, 16
  %210 = vst.msk [vmem:[%s209] sm:$0xff] %vm120, %v201
  %211 = vst.msk [vmem:[%s209 + $0x8] sm:$0xff] %vm120, %v206
  %s212 = scalar_lea.vmem %s1, 112
  %v213 = vld [vmem:[%s212] sm:$0xff]
  %v214 = vld [vmem:[%s212 + $0x8] sm:$0xff]
  %v215 = vld [vmem:[%s212 + $0x10] sm:$0xff]
  %v216 = vld [vmem:[%s212 + $0x18] sm:$0xff]
  %v217 = vld [vmem:[%s212 + $0x20] sm:$0xff]
  %v218 = vld [vmem:[%s212 + $0x28] sm:$0xff]
  %v219 = vld [vmem:[%s212 + $0x30] sm:$0x3]
  %v221 = vsel %vm41, %v219, 0
  %223 = vmatprep.subr.mxu0 0.0
  %224 = vmatpush1.msra.mxu0 %v213
  %225 = vmatprep.subr.mxu0 0.0
  %226 = vmatpush1.msra.mxu0 %v214
  %227 = vmatprep.subr.mxu0 0.0
  %228 = vmatpush1.msra.mxu0 %v215
  %229 = vmatprep.subr.mxu0 0.0
  %230 = vmatpush1.msra.mxu0 %v216
  %231 = vmatprep.subr.mxu0 0.0
  %232 = vmatpush1.msra.mxu0 %v217
  %233 = vmatprep.subr.mxu0 0.0
  %234 = vmatpush1.msra.mxu0 %v218
  %235 = vmatprep.subr.mxu0 0.0
  %236 = vmatpush1.msra.mxu0 %v221
  %237 = vmatprep.subr.mxu0 0.0
  %238 = vmatpush1.msra.mxu0 0.0
  %239 = vmatprep.subr.mxu0 0.0
  %240 = vmatpush1.msra.mxu0 0.0
  %241 = vmatprep.subr.mxu0 0.0
  %242 = vmatpush1.msra.mxu0 0.0
  %243 = vmatprep.subr.mxu0 0.0
  %244 = vmatpush1.msra.mxu0 0.0
  %245 = vmatprep.subr.mxu0 0.0
  %246 = vmatpush1.msra.mxu0 0.0
  %247 = vmatprep.subr.mxu0 0.0
  %248 = vmatpush1.msra.mxu0 0.0
  %249 = vmatprep.subr.mxu0 0.0
  %250 = vmatpush1.msra.mxu0 0.0
  %251 = vmatprep.subr.mxu0 0.0
  %252 = vmatpush1.msra.mxu0 0.0
  %253 = vmatprep.subr.mxu0 0.0
  %254 = vmatpush1.msra.mxu0 0.0
  %255 = vmatprep.subr.mxu0 0.0
  %256 = vmatpush1.msra.mxu0 0.0
  %257 = vmatprep.subr.mxu0 0.0
  %258 = vmatpush1.msra.mxu0 0.0
  %259 = vmatprep.subr.mxu0 0.0
  %260 = vmatpush1.msra.mxu0 0.0
  %261 = vmatprep.subr.mxu0 0.0
  %262 = vmatpush1.msra.mxu0 0.0
  %263 = vmatprep.subr.mxu0 0.0
  %264 = vmatpush1.msra.mxu0 0.0
  %265 = vmatprep.subr.mxu0 0.0
  %266 = vmatpush1.msra.mxu0 0.0
  %267 = vmatprep.subr.mxu0 0.0
  %268 = vmatpush1.msra.mxu0 0.0
  %269 = vmatprep.subr.mxu0 0.0
  %270 = vmatpush1.msra.mxu0 0.0
  %271 = vmatprep.subr.mxu0 0.0
  %272 = vmatpush1.msra.mxu0 0.0
  %273 = vmatprep.subr.mxu0 0.0
  %274 = vmatpush1.msra.mxu0 0.0
  %275 = vmatprep.subr.mxu0 0.0
  %276 = vmatpush1.msra.mxu0 0.0
  %277 = vmatprep.subr.mxu0 0.0
  %278 = vmatpush1.msra.mxu0 0.0
  %279 = vmatprep.subr.mxu0 0.0
  %280 = vmatpush1.msra.mxu0 0.0
  %281 = vmatprep.subr.mxu0 0.0
  %282 = vmatpush1.msra.mxu0 0.0
  %283 = vmatprep.subr.mxu0 0.0
  %284 = vmatpush1.msra.mxu0 0.0
  %285 = vmatprep.subr.mxu0 0.0
  %286 = vmatpush1.msra.mxu0 0.0
  %287 = vmatprep.mubr.f32.mxu0 0.0
  %288 = vmatmul.mubr.f32.gmra.mrb[0].mxu0 %v36
  %v289 = vpop.f32.mrb[0].mxu0
  %v290 = vadd.f32 0.0, %v289
  %v291 = vpop.f32.mrb[0].mxu0
  %292 = vmatprep.mubr.f32.mxu0 0.0
  %293 = vmatmul.mubr.f32.gmra.mrb[0].mxu0 %v39
  %v294 = vpop.f32.mrb[0].mxu0
  %v295 = vadd.f32 0.0, %v294
  %v296 = vpop.f32.mrb[0].mxu0
  %297 = vdwg.mxu0
  %s298 = scalar_lea.vmem %s2, 32
  %299 = vst.msk [vmem:[%s298] sm:$0xff] %vm120, %v290
  %300 = vst.msk [vmem:[%s298 + $0x8] sm:$0xff] %vm120, %v295
  %s301 = scalar_lea.vmem %s1, 168
  %v302 = vld [vmem:[%s301] sm:$0xff]
  %v303 = vld [vmem:[%s301 + $0x8] sm:$0xff]
  %v304 = vld [vmem:[%s301 + $0x10] sm:$0xff]
  %v305 = vld [vmem:[%s301 + $0x18] sm:$0xff]
  %v306 = vld [vmem:[%s301 + $0x20] sm:$0xff]
  %v307 = vld [vmem:[%s301 + $0x28] sm:$0xff]
  %v308 = vld [vmem:[%s301 + $0x30] sm:$0x3]
  %v310 = vsel %vm41, %v308, 0
  %312 = vmatprep.subr.mxu0 0.0
  %313 = vmatpush1.msra.mxu0 %v302
  %314 = vmatprep.subr.mxu0 0.0
  %315 = vmatpush1.msra.mxu0 %v303
  %316 = vmatprep.subr.mxu0 0.0
  %317 = vmatpush1.msra.mxu0 %v304
  %318 = vmatprep.subr.mxu0 0.0
  %319 = vmatpush1.msra.mxu0 %v305
  %320 = vmatprep.subr.mxu0 0.0
  %321 = vmatpush1.msra.mxu0 %v306
  %322 = vmatprep.subr.mxu0 0.0
  %323 = vmatpush1.msra.mxu0 %v307
  %324 = vmatprep.subr.mxu0 0.0
  %325 = vmatpush1.msra.mxu0 %v310
  %326 = vmatprep.subr.mxu0 0.0
  %327 = vmatpush1.msra.mxu0 0.0
  %328 = vmatprep.subr.mxu0 0.0
  %329 = vmatpush1.msra.mxu0 0.0
  %330 = vmatprep.subr.mxu0 0.0
  %331 = vmatpush1.msra.mxu0 0.0
  %332 = vmatprep.subr.mxu0 0.0
  %333 = vmatpush1.msra.mxu0 0.0
  %334 = vmatprep.subr.mxu0 0.0
  %335 = vmatpush1.msra.mxu0 0.0
  %336 = vmatprep.subr.mxu0 0.0
  %337 = vmatpush1.msra.mxu0 0.0
  %338 = vmatprep.subr.mxu0 0.0
  %339 = vmatpush1.msra.mxu0 0.0
  %340 = vmatprep.subr.mxu0 0.0
  %341 = vmatpush1.msra.mxu0 0.0
  %342 = vmatprep.subr.mxu0 0.0
  %343 = vmatpush1.msra.mxu0 0.0
  %344 = vmatprep.subr.mxu0 0.0
  %345 = vmatpush1.msra.mxu0 0.0
  %346 = vmatprep.subr.mxu0 0.0
  %347 = vmatpush1.msra.mxu0 0.0
  %348 = vmatprep.subr.mxu0 0.0
  %349 = vmatpush1.msra.mxu0 0.0
  %350 = vmatprep.subr.mxu0 0.0
  %351 = vmatpush1.msra.mxu0 0.0
  %352 = vmatprep.subr.mxu0 0.0
  %353 = vmatpush1.msra.mxu0 0.0
  %354 = vmatprep.subr.mxu0 0.0
  %355 = vmatpush1.msra.mxu0 0.0
  %356 = vmatprep.subr.mxu0 0.0
  %357 = vmatpush1.msra.mxu0 0.0
  %358 = vmatprep.subr.mxu0 0.0
  %359 = vmatpush1.msra.mxu0 0.0
  %360 = vmatprep.subr.mxu0 0.0
  %361 = vmatpush1.msra.mxu0 0.0
  %362 = vmatprep.subr.mxu0 0.0
  %363 = vmatpush1.msra.mxu0 0.0
  %364 = vmatprep.subr.mxu0 0.0
  %365 = vmatpush1.msra.mxu0 0.0
  %366 = vmatprep.subr.mxu0 0.0
  %367 = vmatpush1.msra.mxu0 0.0
  %368 = vmatprep.subr.mxu0 0.0
  %369 = vmatpush1.msra.mxu0 0.0
  %370 = vmatprep.subr.mxu0 0.0
  %371 = vmatpush1.msra.mxu0 0.0
  %372 = vmatprep.subr.mxu0 0.0
  %373 = vmatpush1.msra.mxu0 0.0
  %374 = vmatprep.subr.mxu0 0.0
  %375 = vmatpush1.msra.mxu0 0.0
  %376 = vmatprep.mubr.f32.mxu0 0.0
  %377 = vmatmul.mubr.f32.gmra.mrb[0].mxu0 %v36
  %v378 = vpop.f32.mrb[0].mxu0
  %v379 = vadd.f32 0.0, %v378
  %v380 = vpop.f32.mrb[0].mxu0
  %381 = vmatprep.mubr.f32.mxu0 0.0
  %382 = vmatmul.mubr.f32.gmra.mrb[0].mxu0 %v39
  %v383 = vpop.f32.mrb[0].mxu0
  %v384 = vadd.f32 0.0, %v383
  %v385 = vpop.f32.mrb[0].mxu0
  %386 = vdwg.mxu0
  %s387 = scalar_lea.vmem %s2, 48
  %388 = vst.msk [vmem:[%s387] sm:$0xff] %vm120, %v379
  %389 = vst.msk [vmem:[%s387 + $0x8] sm:$0xff] %vm120, %v384
  %s390 = scalar_lea.vmem %s1, 224
  %v391 = vld [vmem:[%s390] sm:$0xff]
  %v392 = vld [vmem:[%s390 + $0x8] sm:$0xff]
  %v393 = vld [vmem:[%s390 + $0x10] sm:$0xff]
  %v394 = vld [vmem:[%s390 + $0x18] sm:$0xff]
  %v395 = vld [vmem:[%s390 + $0x20] sm:$0xff]
  %v396 = vld [vmem:[%s390 + $0x28] sm:$0xff]
  %v397 = vld [vmem:[%s390 + $0x30] sm:$0x3]
  %v399 = vsel %vm41, %v397, 0
  %401 = vmatprep.subr.mxu0 0.0
  %402 = vmatpush1.msra.mxu0 %v391
  %403 = vmatprep.subr.mxu0 0.0
  %404 = vmatpush1.msra.mxu0 %v392
  %405 = vmatprep.subr.mxu0 0.0
  %406 = vmatpush1.msra.mxu0 %v393
  %407 = vmatprep.subr.mxu0 0.0
  %408 = vmatpush1.msra.mxu0 %v394
  %409 = vmatprep.subr.mxu0 0.0
  %410 = vmatpush1.msra.mxu0 %v395
  %411 = vmatprep.subr.mxu0 0.0
  %412 = vmatpush1.msra.mxu0 %v396
  %413 = vmatprep.subr.mxu0 0.0
  %414 = vmatpush1.msra.mxu0 %v399
  %415 = vmatprep.subr.mxu0 0.0
  %416 = vmatpush1.msra.mxu0 0.0
  %417 = vmatprep.subr.mxu0 0.0
  %418 = vmatpush1.msra.mxu0 0.0
  %419 = vmatprep.subr.mxu0 0.0
  %420 = vmatpush1.msra.mxu0 0.0
  %421 = vmatprep.subr.mxu0 0.0
  %422 = vmatpush1.msra.mxu0 0.0
  %423 = vmatprep.subr.mxu0 0.0
  %424 = vmatpush1.msra.mxu0 0.0
  %425 = vmatprep.subr.mxu0 0.0
  %426 = vmatpush1.msra.mxu0 0.0
  %427 = vmatprep.subr.mxu0 0.0
  %428 = vmatpush1.msra.mxu0 0.0
  %429 = vmatprep.subr.mxu0 0.0
  %430 = vmatpush1.msra.mxu0 0.0
  %431 = vmatprep.subr.mxu0 0.0
  %432 = vmatpush1.msra.mxu0 0.0
  %433 = vmatprep.subr.mxu0 0.0
  %434 = vmatpush1.msra.mxu0 0.0
  %435 = vmatprep.subr.mxu0 0.0
  %436 = vmatpush1.msra.mxu0 0.0
  %437 = vmatprep.subr.mxu0 0.0
  %438 = vmatpush1.msra.mxu0 0.0
  %439 = vmatprep.subr.mxu0 0.0
  %440 = vmatpush1.msra.mxu0 0.0
  %441 = vmatprep.subr.mxu0 0.0
  %442 = vmatpush1.msra.mxu0 0.0
  %443 = vmatprep.subr.mxu0 0.0
  %444 = vmatpush1.msra.mxu0 0.0
  %445 = vmatprep.subr.mxu0 0.0
  %446 = vmatpush1.msra.mxu0 0.0
  %447 = vmatprep.subr.mxu0 0.0
  %448 = vmatpush1.msra.mxu0 0.0
  %449 = vmatprep.subr.mxu0 0.0
  %450 = vmatpush1.msra.mxu0 0.0
  %451 = vmatprep.subr.mxu0 0.0
  %452 = vmatpush1.msra.mxu0 0.0
  %453 = vmatprep.subr.mxu0 0.0
  %454 = vmatpush1.msra.mxu0 0.0
  %455 = vmatprep.subr.mxu0 0.0
  %456 = vmatpush1.msra.mxu0 0.0
  %457 = vmatprep.subr.mxu0 0.0
  %458 = vmatpush1.msra.mxu0 0.0
  %459 = vmatprep.subr.mxu0 0.0
  %460 = vmatpush1.msra.mxu0 0.0
  %461 = vmatprep.subr.mxu0 0.0
  %462 = vmatpush1.msra.mxu0 0.0
  %463 = vmatprep.subr.mxu0 0.0
  %464 = vmatpush1.msra.mxu0 0.0
  %465 = vmatprep.mubr.f32.mxu0 0.0
  %466 = vmatmul.mubr.f32.gmra.mrb[0].mxu0 %v36
  %v467 = vpop.f32.mrb[0].mxu0
  %v468 = vadd.f32 0.0, %v467
  %v469 = vpop.f32.mrb[0].mxu0
  %470 = vmatprep.mubr.f32.mxu0 0.0
  %471 = vmatmul.mubr.f32.gmra.mrb[0].mxu0 %v39
  %v472 = vpop.f32.mrb[0].mxu0
  %v473 = vadd.f32 0.0, %v472
  %v474 = vpop.f32.mrb[0].mxu0
  %475 = vdwg.mxu0
  %s476 = scalar_lea.vmem %s2, 64
  %477 = vst.msk [vmem:[%s476] sm:$0xff] %vm120, %v468
  %478 = vst.msk [vmem:[%s476 + $0x8] sm:$0xff] %vm120, %v473
  %s479 = scalar_lea.vmem %s1, 280
  %v480 = vld [vmem:[%s479] sm:$0xff]
  %v481 = vld [vmem:[%s479 + $0x8] sm:$0xff]
  %v482 = vld [vmem:[%s479 + $0x10] sm:$0xff]
  %v483 = vld [vmem:[%s479 + $0x18] sm:$0xff]
  %v484 = vld [vmem:[%s479 + $0x20] sm:$0xff]
  %v485 = vld [vmem:[%s479 + $0x28] sm:$0xff]
  %v486 = vld [vmem:[%s479 + $0x30] sm:$0x3]
  %v488 = vsel %vm41, %v486, 0
  %490 = vmatprep.subr.mxu0 0.0
  %491 = vmatpush1.msra.mxu0 %v480
  %492 = vmatprep.subr.mxu0 0.0
  %493 = vmatpush1.msra.mxu0 %v481
  %494 = vmatprep.subr.mxu0 0.0
  %495 = vmatpush1.msra.mxu0 %v482
  %496 = vmatprep.subr.mxu0 0.0
  %497 = vmatpush1.msra.mxu0 %v483
  %498 = vmatprep.subr.mxu0 0.0
  %499 = vmatpush1.msra.mxu0 %v484
  %500 = vmatprep.subr.mxu0 0.0
  %501 = vmatpush1.msra.mxu0 %v485
  %502 = vmatprep.subr.mxu0 0.0
  %503 = vmatpush1.msra.mxu0 %v488
  %504 = vmatprep.subr.mxu0 0.0
  %505 = vmatpush1.msra.mxu0 0.0
  %506 = vmatprep.subr.mxu0 0.0
  %507 = vmatpush1.msra.mxu0 0.0
  %508 = vmatprep.subr.mxu0 0.0
  %509 = vmatpush1.msra.mxu0 0.0
  %510 = vmatprep.subr.mxu0 0.0
  %511 = vmatpush1.msra.mxu0 0.0
  %512 = vmatprep.subr.mxu0 0.0
  %513 = vmatpush1.msra.mxu0 0.0
  %514 = vmatprep.subr.mxu0 0.0
  %515 = vmatpush1.msra.mxu0 0.0
  %516 = vmatprep.subr.mxu0 0.0
  %517 = vmatpush1.msra.mxu0 0.0
  %518 = vmatprep.subr.mxu0 0.0
  %519 = vmatpush1.msra.mxu0 0.0
  %520 = vmatprep.subr.mxu0 0.0
  %521 = vmatpush1.msra.mxu0 0.0
  %522 = vmatprep.subr.mxu0 0.0
  %523 = vmatpush1.msra.mxu0 0.0
  %524 = vmatprep.subr.mxu0 0.0
  %525 = vmatpush1.msra.mxu0 0.0
  %526 = vmatprep.subr.mxu0 0.0
  %527 = vmatpush1.msra.mxu0 0.0
  %528 = vmatprep.subr.mxu0 0.0
  %529 = vmatpush1.msra.mxu0 0.0
  %530 = vmatprep.subr.mxu0 0.0
  %531 = vmatpush1.msra.mxu0 0.0
  %532 = vmatprep.subr.mxu0 0.0
  %533 = vmatpush1.msra.mxu0 0.0
  %534 = vmatprep.subr.mxu0 0.0
  %535 = vmatpush1.msra.mxu0 0.0
  %536 = vmatprep.subr.mxu0 0.0
  %537 = vmatpush1.msra.mxu0 0.0
  %538 = vmatprep.subr.mxu0 0.0
  %539 = vmatpush1.msra.mxu0 0.0
  %540 = vmatprep.subr.mxu0 0.0
  %541 = vmatpush1.msra.mxu0 0.0
  %542 = vmatprep.subr.mxu0 0.0
  %543 = vmatpush1.msra.mxu0 0.0
  %544 = vmatprep.subr.mxu0 0.0
  %545 = vmatpush1.msra.mxu0 0.0
  %546 = vmatprep.subr.mxu0 0.0
  %547 = vmatpush1.msra.mxu0 0.0
  %548 = vmatprep.subr.mxu0 0.0
  %549 = vmatpush1.msra.mxu0 0.0
  %550 = vmatprep.subr.mxu0 0.0
  %551 = vmatpush1.msra.mxu0 0.0
  %552 = vmatprep.subr.mxu0 0.0
  %553 = vmatpush1.msra.mxu0 0.0
  %554 = vmatprep.mubr.f32.mxu0 0.0
  %555 = vmatmul.mubr.f32.gmra.mrb[0].mxu0 %v36
  %v556 = vpop.f32.mrb[0].mxu0
  %v557 = vadd.f32 0.0, %v556
  %v558 = vpop.f32.mrb[0].mxu0
  %559 = vmatprep.mubr.f32.mxu0 0.0
  %560 = vmatmul.mubr.f32.gmra.mrb[0].mxu0 %v39
  %v561 = vpop.f32.mrb[0].mxu0
  %v562 = vadd.f32 0.0, %v561
  %v563 = vpop.f32.mrb[0].mxu0
  %564 = vdwg.mxu0
  %s565 = scalar_lea.vmem %s2, 80
  %566 = vst.msk [vmem:[%s565] sm:$0xff] %vm120, %v557
  %567 = vst.msk [vmem:[%s565 + $0x8] sm:$0xff] %vm120, %v562
  // Predicated region
  $region10: #{extractive_model_forward.5} parent=0 // pred_check
    _
  $region11: #{extractive_model_forward.5} parent=0 // pred_check_branch
    %569 = sbr.rel (0) target = $region13
  $region12: #{extractive_model_forward.5} parent=0 // pred_region
    _
  $region13: #{extractive_model_forward.5} parent=0 // pred_fallthru
    _
  // Predicated region
  $region14: #{extractive_model_forward.5} parent=0 // pred_check
    _
  $region15: #{extractive_model_forward.5} parent=0 // pred_check_branch
    %571 = sbr.rel (0) target = $region17
  $region16: #{extractive_model_forward.5} parent=0 // pred_region
    _
  $region17: #{extractive_model_forward.5} parent=0 // pred_fallthru
    _

// kernel: extractive_model_forward.7
$region0: #{extractive_model_forward.7}
  #allocation0 [shape = 'u32[]', space=smem, size = 0x4, offset = 0x4, fixed_abs, tag = 'smem constant byte address 0x4 - core index']
  #allocation1 [shape = 'u32[144,128]{1,0:T(1,128)}', space=vmem, size = 0x12000, scoped, tag = 'internal scratch']
  %s0 = inlined_call_operand.vmem [shape: f32[16,32], index: 0, kind: input, shape index: {}]
  %s1 = inlined_call_operand.vmem [shape: f32[16,32], index: 1, kind: input, shape index: {}]
  %s2 = inlined_call_operand.vmem [shape: f32[6,32,32], index: 2, kind: input, shape index: {}]
  %s3 = inlined_call_operand.vmem [shape: f32[6,32,32], index: 3, kind: input, shape index: {}]
  %s4 = inlined_call_operand.vmem [shape: f32[6,1,32], index: 4, kind: input, shape index: {}]
  %s5 = inlined_call_operand.vmem [shape: f32[6,16,32], index: 5, kind: output, shape index: {}]
  %s6 = sld [smem:[#allocation0]]
  $region30: #{extractive_model_forward.7} parent=0
    _
  %s8 = ssub.s32 1, %s6
  %s9 = scalar_select 0, %s8, %s6
  // Predicated region
  $region2: #{extractive_model_forward.7} parent=0 // pred_check
    _
  $region3: #{extractive_model_forward.7} parent=0 // pred_check_branch
    %11 = sbr.rel (0) target = $region5
  $region4: #{extractive_model_forward.7} parent=0 // pred_region
    _
  $region5: #{extractive_model_forward.7} parent=0 // pred_fallthru
    _
  // Predicated region
  $region6: #{extractive_model_forward.7} parent=0 // pred_check
    _
  $region7: #{extractive_model_forward.7} parent=0 // pred_check_branch
    %13 = sbr.rel (0) target = $region9
  $region8: #{extractive_model_forward.7} parent=0 // pred_region
    _
  $region9: #{extractive_model_forward.7} parent=0 // pred_fallthru
    _
  // Predicated region
  $region10: #{extractive_model_forward.7} parent=0 // pred_check
    _
  $region11: #{extractive_model_forward.7} parent=0 // pred_check_branch
    %15 = sbr.rel (0) target = $region13
  $region12: #{extractive_model_forward.7} parent=0 // pred_region
    _
  $region13: #{extractive_model_forward.7} parent=0 // pred_fallthru
    _
  // Predicated region
  $region14: #{extractive_model_forward.7} parent=0 // pred_check
    _
  $region15: #{extractive_model_forward.7} parent=0 // pred_check_branch
    %17 = sbr.rel (0) target = $region17
  $region16: #{extractive_model_forward.7} parent=0 // pred_region
    _
  $region17: #{extractive_model_forward.7} parent=0 // pred_fallthru
    _
  // Predicated region
  $region18: #{extractive_model_forward.7} parent=0 // pred_check
    _
  $region19: #{extractive_model_forward.7} parent=0 // pred_check_branch
    %19 = sbr.rel (0) target = $region21
  $region20: #{extractive_model_forward.7} parent=0 // pred_region
    _
  $region21: #{extractive_model_forward.7} parent=0 // pred_fallthru
    _
  %v20 = vld [vmem:[%s0] sm:$0xff]
  %v21 = vld [vmem:[%s0 + $0x8] sm:$0xff]
  %v22 = vld [vmem:[%s1] sm:$0xff]
  %v23 = vld [vmem:[%s1 + $0x8] sm:$0xff]
  %v24 = vld [vmem:[%s2] sm:$0xff]
  %v25 = vld [vmem:[%s2 + $0x8] sm:$0xff]
  %v26 = vld [vmem:[%s2 + $0x10] sm:$0xff]
  %v27 = vld [vmem:[%s2 + $0x18] sm:$0xff]
  %v28 = vld [vmem:[%s3] sm:$0xff]
  %v29 = vld [vmem:[%s3 + $0x8] sm:$0xff]
  %v30 = vld [vmem:[%s3 + $0x10] sm:$0xff]
  %v31 = vld [vmem:[%s3 + $0x18] sm:$0xff]
  %vm32 = vcmask 261120
  %v34 = vsel %vm32, %v22, 0
  %v37 = vsel %vm32, %v23, 0
  %39 = vmatprep.subr.mxu0 0.0
  %40 = vmatpush1.msra.mxu0 %v28
  %41 = vmatprep.subr.mxu0 0.0
  %42 = vmatpush1.msra.mxu0 %v29
  %43 = vmatprep.subr.mxu0 0.0
  %44 = vmatpush1.msra.mxu0 %v30
  %45 = vmatprep.subr.mxu0 0.0
  %46 = vmatpush1.msra.mxu0 %v31
  %47 = vmatprep.subr.mxu0 0.0
  %48 = vmatpush1.msra.mxu0 0.0
  %49 = vmatprep.subr.mxu0 0.0
  %50 = vmatpush1.msra.mxu0 0.0
  %51 = vmatprep.subr.mxu0 0.0
  %52 = vmatpush1.msra.mxu0 0.0
  %53 = vmatprep.subr.mxu0 0.0
  %54 = vmatpush1.msra.mxu0 0.0
  %55 = vmatprep.subr.mxu0 0.0
  %56 = vmatpush1.msra.mxu0 0.0
  %57 = vmatprep.subr.mxu0 0.0
  %58 = vmatpush1.msra.mxu0 0.0
  %59 = vmatprep.subr.mxu0 0.0
  %60 = vmatpush1.msra.mxu0 0.0
  %61 = vmatprep.subr.mxu0 0.0
  %62 = vmatpush1.msra.mxu0 0.0
  %63 = vmatprep.subr.mxu0 0.0
  %64 = vmatpush1.msra.mxu0 0.0
  %65 = vmatprep.subr.mxu0 0.0
  %66 = vmatpush1.msra.mxu0 0.0
  %67 = vmatprep.subr.mxu0 0.0
  %68 = vmatpush1.msra.mxu0 0.0
  %69 = vmatprep.subr.mxu0 0.0
  %70 = vmatpush1.msra.mxu0 0.0
  %71 = vmatprep.subr.mxu0 0.0
  %72 = vmatpush1.msra.mxu0 0.0
  %73 = vmatprep.subr.mxu0 0.0
  %74 = vmatpush1.msra.mxu0 0.0
  %75 = vmatprep.subr.mxu0 0.0
  %76 = vmatpush1.msra.mxu0 0.0
  %77 = vmatprep.subr.mxu0 0.0
  %78 = vmatpush1.msra.mxu0 0.0
  %79 = vmatprep.subr.mxu0 0.0
  %80 = vmatpush1.msra.mxu0 0.0
  %81 = vmatprep.subr.mxu0 0.0
  %82 = vmatpush1.msra.mxu0 0.0
  %83 = vmatprep.subr.mxu0 0.0
  %84 = vmatpush1.msra.mxu0 0.0
  %85 = vmatprep.subr.mxu0 0.0
  %86 = vmatpush1.msra.mxu0 0.0
  %87 = vmatprep.subr.mxu0 0.0
  %88 = vmatpush1.msra.mxu0 0.0
  %89 = vmatprep.subr.mxu0 0.0
  %90 = vmatpush1.msra.mxu0 0.0
  %91 = vmatprep.subr.mxu0 0.0
  %92 = vmatpush1.msra.mxu0 0.0
  %93 = vmatprep.subr.mxu0 0.0
  %94 = vmatpush1.msra.mxu0 0.0
  %95 = vmatprep.subr.mxu0 0.0
  %96 = vmatpush1.msra.mxu0 0.0
  %97 = vmatprep.subr.mxu0 0.0
  %98 = vmatpush1.msra.mxu0 0.0
  %99 = vmatprep.subr.mxu0 0.0
  %100 = vmatpush1.msra.mxu0 0.0
  %101 = vmatprep.subr.mxu0 0.0
  %102 = vmatpush1.msra.mxu0 0.0
  %103 = vmatprep.mubr.f32.mxu0 0.0
  %104 = vmatmul.mubr.f32.gmra.mrb[0].mxu0 %v34
  %v105 = vpop.f32.mrb[0].mxu0
  %v106 = vadd.f32 0.0, %v105
  %v107 = vpop.f32.mrb[0].mxu0
  %108 = vmatprep.mubr.f32.mxu0 0.0
  %109 = vmatmul.mubr.f32.gmra.mrb[0].mxu0 %v37
  %v110 = vpop.f32.mrb[0].mxu0
  %v111 = vadd.f32 0.0, %v110
  %v112 = vpop.f32.mrb[0].mxu0
  %113 = vdwg.mxu0
  %v115 = vsel %vm32, %v20, 0
  %v118 = vsel %vm32, %v21, 0
  %120 = vmatprep.subr.mxu0 0.0
  %121 = vmatpush1.msra.mxu0 %v24
  %122 = vmatprep.subr.mxu0 0.0
  %123 = vmatpush1.msra.mxu0 %v25
  %124 = vmatprep.subr.mxu0 0.0
  %125 = vmatpush1.msra.mxu0 %v26
  %126 = vmatprep.subr.mxu0 0.0
  %127 = vmatpush1.msra.mxu0 %v27
  %128 = vmatprep.subr.mxu0 0.0
  %129 = vmatpush1.msra.mxu0 0.0
  %130 = vmatprep.subr.mxu0 0.0
  %131 = vmatpush1.msra.mxu0 0.0
  %132 = vmatprep.subr.mxu0 0.0
  %133 = vmatpush1.msra.mxu0 0.0
  %134 = vmatprep.subr.mxu0 0.0
  %135 = vmatpush1.msra.mxu0 0.0
  %136 = vmatprep.subr.mxu0 0.0
  %137 = vmatpush1.msra.mxu0 0.0
  %138 = vmatprep.subr.mxu0 0.0
  %139 = vmatpush1.msra.mxu0 0.0
  %140 = vmatprep.subr.mxu0 0.0
  %141 = vmatpush1.msra.mxu0 0.0
  %142 = vmatprep.subr.mxu0 0.0
  %143 = vmatpush1.msra.mxu0 0.0
  %144 = vmatprep.subr.mxu0 0.0
  %145 = vmatpush1.msra.mxu0 0.0
  %146 = vmatprep.subr.mxu0 0.0
  %147 = vmatpush1.msra.mxu0 0.0
  %148 = vmatprep.subr.mxu0 0.0
  %149 = vmatpush1.msra.mxu0 0.0
  %150 = vmatprep.subr.mxu0 0.0
  %151 = vmatpush1.msra.mxu0 0.0
  %152 = vmatprep.subr.mxu0 0.0
  %153 = vmatpush1.msra.mxu0 0.0
  %154 = vmatprep.subr.mxu0 0.0
  %155 = vmatpush1.msra.mxu0 0.0
  %156 = vmatprep.subr.mxu0 0.0
  %157 = vmatpush1.msra.mxu0 0.0
  %158 = vmatprep.subr.mxu0 0.0
  %159 = vmatpush1.msra.mxu0 0.0
  %160 = vmatprep.subr.mxu0 0.0
  %161 = vmatpush1.msra.mxu0 0.0
  %162 = vmatprep.subr.mxu0 0.0
  %163 = vmatpush1.msra.mxu0 0.0
  %164 = vmatprep.subr.mxu0 0.0
  %165 = vmatpush1.msra.mxu0 0.0
  %166 = vmatprep.subr.mxu0 0.0
  %167 = vmatpush1.msra.mxu0 0.0
  %168 = vmatprep.subr.mxu0 0.0
  %169 = vmatpush1.msra.mxu0 0.0
  %170 = vmatprep.subr.mxu0 0.0
  %171 = vmatpush1.msra.mxu0 0.0
  %172 = vmatprep.subr.mxu0 0.0
  %173 = vmatpush1.msra.mxu0 0.0
  %174 = vmatprep.subr.mxu0 0.0
  %175 = vmatpush1.msra.mxu0 0.0
  %176 = vmatprep.subr.mxu0 0.0
  %177 = vmatpush1.msra.mxu0 0.0
  %178 = vmatprep.subr.mxu0 0.0
  %179 = vmatpush1.msra.mxu0 0.0
  %180 = vmatprep.subr.mxu0 0.0
  %181 = vmatpush1.msra.mxu0 0.0
  %182 = vmatprep.subr.mxu0 0.0
  %183 = vmatpush1.msra.mxu0 0.0
  %184 = vmatprep.mubr.f32.mxu0 0.0
  %185 = vmatmul.mubr.f32.gmra.mrb[0].mxu0 %v115
  %v186 = vpop.f32.mrb[0].mxu0
  %v187 = vadd.f32 %v106, %v186
  %v188 = vpop.f32.mrb[0].mxu0
  %189 = vmatprep.mubr.f32.mxu0 0.0
  %190 = vmatmul.mubr.f32.gmra.mrb[0].mxu0 %v118
  %v191 = vpop.f32.mrb[0].mxu0
  %v192 = vadd.f32 %v111, %v191
  %v193 = vpop.f32.mrb[0].mxu0
  %194 = vdwg.mxu0
  %v195 = vld [vmem:[%s4] sm:$0x1]
  %v197 = vlaneseq
  %v198 = vshrl.u32 %v197, 7
  %v199 = vsub.s32 0, %v198
  %v200 = vrot.slane %v195, %v199
  %v202 = vadd.f32 %v187, %v200
  %v203 = vadd.f32 %v192, %v200
  %204 = vst.msk [vmem:[%s5] sm:$0xff] %vm32, %v202
  %205 = vst.msk [vmem:[%s5 + $0x8] sm:$0xff] %vm32, %v203
  %s206 = scalar_lea.vmem %s2, 32
  %v207 = vld [vmem:[%s206] sm:$0xff]
  %v208 = vld [vmem:[%s206 + $0x8] sm:$0xff]
  %v209 = vld [vmem:[%s206 + $0x10] sm:$0xff]
  %v210 = vld [vmem:[%s206 + $0x18] sm:$0xff]
  %s211 = scalar_lea.vmem %s3, 32
  %v212 = vld [vmem:[%s211] sm:$0xff]
  %v213 = vld [vmem:[%s211 + $0x8] sm:$0xff]
  %v214 = vld [vmem:[%s211 + $0x10] sm:$0xff]
  %v215 = vld [vmem:[%s211 + $0x18] sm:$0xff]
  %216 = vmatprep.subr.mxu0 0.0
  %217 = vmatpush1.msra.mxu0 %v212
  %218 = vmatprep.subr.mxu0 0.0
  %219 = vmatpush1.msra.mxu0 %v213
  %220 = vmatprep.subr.mxu0 0.0
  %221 = vmatpush1.msra.mxu0 %v214
  %222 = vmatprep.subr.mxu0 0.0
  %223 = vmatpush1.msra.mxu0 %v215
  %224 = vmatprep.subr.mxu0 0.0
  %225 = vmatpush1.msra.mxu0 0.0
  %226 = vmatprep.subr.mxu0 0.0
  %227 = vmatpush1.msra.mxu0 0.0
  %228 = vmatprep.subr.mxu0 0.0
  %229 = vmatpush1.msra.mxu0 0.0
  %230 = vmatprep.subr.mxu0 0.0
  %231 = vmatpush1.msra.mxu0 0.0
  %232 = vmatprep.subr.mxu0 0.0
  %233 = vmatpush1.msra.mxu0 0.0
  %234 = vmatprep.subr.mxu0 0.0
  %235 = vmatpush1.msra.mxu0 0.0
  %236 = vmatprep.subr.mxu0 0.0
  %237 = vmatpush1.msra.mxu0 0.0
  %238 = vmatprep.subr.mxu0 0.0
  %239 = vmatpush1.msra.mxu0 0.0
  %240 = vmatprep.subr.mxu0 0.0
  %241 = vmatpush1.msra.mxu0 0.0
  %242 = vmatprep.subr.mxu0 0.0
  %243 = vmatpush1.msra.mxu0 0.0
  %244 = vmatprep.subr.mxu0 0.0
  %245 = vmatpush1.msra.mxu0 0.0
  %246 = vmatprep.subr.mxu0 0.0
  %247 = vmatpush1.msra.mxu0 0.0
  %248 = vmatprep.subr.mxu0 0.0
  %249 = vmatpush1.msra.mxu0 0.0
  %250 = vmatprep.subr.mxu0 0.0
  %251 = vmatpush1.msra.mxu0 0.0
  %252 = vmatprep.subr.mxu0 0.0
  %253 = vmatpush1.msra.mxu0 0.0
  %254 = vmatprep.subr.mxu0 0.0
  %255 = vmatpush1.msra.mxu0 0.0
  %256 = vmatprep.subr.mxu0 0.0
  %257 = vmatpush1.msra.mxu0 0.0
  %258 = vmatprep.subr.mxu0 0.0
  %259 = vmatpush1.msra.mxu0 0.0
  %260 = vmatprep.subr.mxu0 0.0
  %261 = vmatpush1.msra.mxu0 0.0
  %262 = vmatprep.subr.mxu0 0.0
  %263 = vmatpush1.msra.mxu0 0.0
  %264 = vmatprep.subr.mxu0 0.0
  %265 = vmatpush1.msra.mxu0 0.0
  %266 = vmatprep.subr.mxu0 0.0
  %267 = vmatpush1.msra.mxu0 0.0
  %268 = vmatprep.subr.mxu0 0.0
  %269 = vmatpush1.msra.mxu0 0.0
  %270 = vmatprep.subr.mxu0 0.0
  %271 = vmatpush1.msra.mxu0 0.0
  %272 = vmatprep.subr.mxu0 0.0
  %273 = vmatpush1.msra.mxu0 0.0
  %274 = vmatprep.subr.mxu0 0.0
  %275 = vmatpush1.msra.mxu0 0.0
  %276 = vmatprep.subr.mxu0 0.0
  %277 = vmatpush1.msra.mxu0 0.0
  %278 = vmatprep.subr.mxu0 0.0
  %279 = vmatpush1.msra.mxu0 0.0
  %280 = vmatprep.mubr.f32.mxu0 0.0
  %281 = vmatmul.mubr.f32.gmra.mrb[0].mxu0 %v34
  %v282 = vpop.f32.mrb[0].mxu0
  %v283 = vadd.f32 0.0, %v282
  %v284 = vpop.f32.mrb[0].mxu0
  %285 = vmatprep.mubr.f32.mxu0 0.0
  %286 = vmatmul.mubr.f32.gmra.mrb[0].mxu0 %v37
  %v287 = vpop.f32.mrb[0].mxu0
  %v288 = vadd.f32 0.0, %v287
  %v289 = vpop.f32.mrb[0].mxu0
  %290 = vdwg.mxu0
  %291 = vmatprep.subr.mxu0 0.0
  %292 = vmatpush1.msra.mxu0 %v207
  %293 = vmatprep.subr.mxu0 0.0
  %294 = vmatpush1.msra.mxu0 %v208
  %295 = vmatprep.subr.mxu0 0.0
  %296 = vmatpush1.msra.mxu0 %v209
  %297 = vmatprep.subr.mxu0 0.0
  %298 = vmatpush1.msra.mxu0 %v210
  %299 = vmatprep.subr.mxu0 0.0
  %300 = vmatpush1.msra.mxu0 0.0
  %301 = vmatprep.subr.mxu0 0.0
  %302 = vmatpush1.msra.mxu0 0.0
  %303 = vmatprep.subr.mxu0 0.0
  %304 = vmatpush1.msra.mxu0 0.0
  %305 = vmatprep.subr.mxu0 0.0
  %306 = vmatpush1.msra.mxu0 0.0
  %307 = vmatprep.subr.mxu0 0.0
  %308 = vmatpush1.msra.mxu0 0.0
  %309 = vmatprep.subr.mxu0 0.0
  %310 = vmatpush1.msra.mxu0 0.0
  %311 = vmatprep.subr.mxu0 0.0
  %312 = vmatpush1.msra.mxu0 0.0
  %313 = vmatprep.subr.mxu0 0.0
  %314 = vmatpush1.msra.mxu0 0.0
  %315 = vmatprep.subr.mxu0 0.0
  %316 = vmatpush1.msra.mxu0 0.0
  %317 = vmatprep.subr.mxu0 0.0
  %318 = vmatpush1.msra.mxu0 0.0
  %319 = vmatprep.subr.mxu0 0.0
  %320 = vmatpush1.msra.mxu0 0.0
  %321 = vmatprep.subr.mxu0 0.0
  %322 = vmatpush1.msra.mxu0 0.0
  %323 = vmatprep.subr.mxu0 0.0
  %324 = vmatpush1.msra.mxu0 0.0
  %325 = vmatprep.subr.mxu0 0.0
  %326 = vmatpush1.msra.mxu0 0.0
  %327 = vmatprep.subr.mxu0 0.0
  %328 = vmatpush1.msra.mxu0 0.0
  %329 = vmatprep.subr.mxu0 0.0
  %330 = vmatpush1.msra.mxu0 0.0
  %331 = vmatprep.subr.mxu0 0.0
  %332 = vmatpush1.msra.mxu0 0.0
  %333 = vmatprep.subr.mxu0 0.0
  %334 = vmatpush1.msra.mxu0 0.0
  %335 = vmatprep.subr.mxu0 0.0
  %336 = vmatpush1.msra.mxu0 0.0
  %337 = vmatprep.subr.mxu0 0.0
  %338 = vmatpush1.msra.mxu0 0.0
  %339 = vmatprep.subr.mxu0 0.0
  %340 = vmatpush1.msra.mxu0 0.0
  %341 = vmatprep.subr.mxu0 0.0
  %342 = vmatpush1.msra.mxu0 0.0
  %343 = vmatprep.subr.mxu0 0.0
  %344 = vmatpush1.msra.mxu0 0.0
  %345 = vmatprep.subr.mxu0 0.0
  %346 = vmatpush1.msra.mxu0 0.0
  %347 = vmatprep.subr.mxu0 0.0
  %348 = vmatpush1.msra.mxu0 0.0
  %349 = vmatprep.subr.mxu0 0.0
  %350 = vmatpush1.msra.mxu0 0.0
  %351 = vmatprep.subr.mxu0 0.0
  %352 = vmatpush1.msra.mxu0 0.0
  %353 = vmatprep.subr.mxu0 0.0
  %354 = vmatpush1.msra.mxu0 0.0
  %355 = vmatprep.mubr.f32.mxu0 0.0
  %356 = vmatmul.mubr.f32.gmra.mrb[0].mxu0 %v115
  %v357 = vpop.f32.mrb[0].mxu0
  %v358 = vadd.f32 %v283, %v357
  %v359 = vpop.f32.mrb[0].mxu0
  %360 = vmatprep.mubr.f32.mxu0 0.0
  %361 = vmatmul.mubr.f32.gmra.mrb[0].mxu0 %v118
  %v362 = vpop.f32.mrb[0].mxu0
  %v363 = vadd.f32 %v288, %v362
  %v364 = vpop.f32.mrb[0].mxu0
  %365 = vdwg.mxu0
  %s366 = scalar_lea.vmem %s4, 1
  %v367 = vld [vmem:[%s366] sm:$0x1]
  %v369 = vlaneseq
  %v370 = vshrl.u32 %v369, 7
  %v371 = vsub.s32 0, %v370
  %v372 = vrot.slane %v367, %v371
  %v374 = vadd.f32 %v358, %v372
  %v375 = vadd.f32 %v363, %v372
  %s376 = scalar_lea.vmem %s5, 16
  %377 = vst.msk [vmem:[%s376] sm:$0xff] %vm32, %v374
  %378 = vst.msk [vmem:[%s376 + $0x8] sm:$0xff] %vm32, %v375
  %s379 = scalar_lea.vmem %s2, 64
  %v380 = vld [vmem:[%s379] sm:$0xff]
  %v381 = vld [vmem:[%s379 + $0x8] sm:$0xff]
  %v382 = vld [vmem:[%s379 + $0x10] sm:$0xff]
  %v383 = vld [vmem:[%s379 + $0x18] sm:$0xff]
  %s384 = scalar_lea.vmem %s3, 64
  %v385 = vld [vmem:[%s384] sm:$0xff]
  %v386 = vld [vmem:[%s384 + $0x8] sm:$0xff]
  %v387 = vld [vmem:[%s384 + $0x10] sm:$0xff]
  %v388 = vld [vmem:[%s384 + $0x18] sm:$0xff]
  %389 = vmatprep.subr.mxu0 0.0
  %390 = vmatpush1.msra.mxu0 %v385
  %391 = vmatprep.subr.mxu0 0.0
  %392 = vmatpush1.msra.mxu0 %v386
  %393 = vmatprep.subr.mxu0 0.0
  %394 = vmatpush1.msra.mxu0 %v387
  %395 = vmatprep.subr.mxu0 0.0
  %396 = vmatpush1.msra.mxu0 %v388
  %397 = vmatprep.subr.mxu0 0.0
  %398 = vmatpush1.msra.mxu0 0.0
  %399 = vmatprep.subr.mxu0 0.0
  %400 = vmatpush1.msra.mxu0 0.0
  %401 = vmatprep.subr.mxu0 0.0
  %402 = vmatpush1.msra.mxu0 0.0
  %403 = vmatprep.subr.mxu0 0.0
  %404 = vmatpush1.msra.mxu0 0.0
  %405 = vmatprep.subr.mxu0 0.0
  %406 = vmatpush1.msra.mxu0 0.0
  %407 = vmatprep.subr.mxu0 0.0
  %408 = vmatpush1.msra.mxu0 0.0
  %409 = vmatprep.subr.mxu0 0.0
  %410 = vmatpush1.msra.mxu0 0.0
  %411 = vmatprep.subr.mxu0 0.0
  %412 = vmatpush1.msra.mxu0 0.0
  %413 = vmatprep.subr.mxu0 0.0
  %414 = vmatpush1.msra.mxu0 0.0
  %415 = vmatprep.subr.mxu0 0.0
  %416 = vmatpush1.msra.mxu0 0.0
  %417 = vmatprep.subr.mxu0 0.0
  %418 = vmatpush1.msra.mxu0 0.0
  %419 = vmatprep.subr.mxu0 0.0
  %420 = vmatpush1.msra.mxu0 0.0
  %421 = vmatprep.subr.mxu0 0.0
  %422 = vmatpush1.msra.mxu0 0.0
  %423 = vmatprep.subr.mxu0 0.0
  %424 = vmatpush1.msra.mxu0 0.0
  %425 = vmatprep.subr.mxu0 0.0
  %426 = vmatpush1.msra.mxu0 0.0
  %427 = vmatprep.subr.mxu0 0.0
  %428 = vmatpush1.msra.mxu0 0.0
  %429 = vmatprep.subr.mxu0 0.0
  %430 = vmatpush1.msra.mxu0 0.0
  %431 = vmatprep.subr.mxu0 0.0
  %432 = vmatpush1.msra.mxu0 0.0
  %433 = vmatprep.subr.mxu0 0.0
  %434 = vmatpush1.msra.mxu0 0.0
  %435 = vmatprep.subr.mxu0 0.0
  %436 = vmatpush1.msra.mxu0 0.0
  %437 = vmatprep.subr.mxu0 0.0
  %438 = vmatpush1.msra.mxu0 0.0
  %439 = vmatprep.subr.mxu0 0.0
  %440 = vmatpush1.msra.mxu0 0.0
  %441 = vmatprep.subr.mxu0 0.0
  %442 = vmatpush1.msra.mxu0 0.0
  %443 = vmatprep.subr.mxu0 0.0
  %444 = vmatpush1.msra.mxu0 0.0
  %445 = vmatprep.subr.mxu0 0.0
  %446 = vmatpush1.msra.mxu0 0.0
  %447 = vmatprep.subr.mxu0 0.0
  %448 = vmatpush1.msra.mxu0 0.0
  %449 = vmatprep.subr.mxu0 0.0
  %450 = vmatpush1.msra.mxu0 0.0
  %451 = vmatprep.subr.mxu0 0.0
  %452 = vmatpush1.msra.mxu0 0.0
  %453 = vmatprep.mubr.f32.mxu0 0.0
  %454 = vmatmul.mubr.f32.gmra.mrb[0].mxu0 %v34
  %v455 = vpop.f32.mrb[0].mxu0
  %v456 = vadd.f32 0.0, %v455
  %v457 = vpop.f32.mrb[0].mxu0
  %458 = vmatprep.mubr.f32.mxu0 0.0
  %459 = vmatmul.mubr.f32.gmra.mrb[0].mxu0 %v37
  %v460 = vpop.f32.mrb[0].mxu0
  %v461 = vadd.f32 0.0, %v460
  %v462 = vpop.f32.mrb[0].mxu0
  %463 = vdwg.mxu0
  %464 = vmatprep.subr.mxu0 0.0
  %465 = vmatpush1.msra.mxu0 %v380
  %466 = vmatprep.subr.mxu0 0.0
  %467 = vmatpush1.msra.mxu0 %v381
  %468 = vmatprep.subr.mxu0 0.0
  %469 = vmatpush1.msra.mxu0 %v382
  %470 = vmatprep.subr.mxu0 0.0
  %471 = vmatpush1.msra.mxu0 %v383
  %472 = vmatprep.subr.mxu0 0.0
  %473 = vmatpush1.msra.mxu0 0.0
  %474 = vmatprep.subr.mxu0 0.0
  %475 = vmatpush1.msra.mxu0 0.0
  %476 = vmatprep.subr.mxu0 0.0
  %477 = vmatpush1.msra.mxu0 0.0
  %478 = vmatprep.subr.mxu0 0.0
  %479 = vmatpush1.msra.mxu0 0.0
  %480 = vmatprep.subr.mxu0 0.0
  %481 = vmatpush1.msra.mxu0 0.0
  %482 = vmatprep.subr.mxu0 0.0
  %483 = vmatpush1.msra.mxu0 0.0
  %484 = vmatprep.subr.mxu0 0.0
  %485 = vmatpush1.msra.mxu0 0.0
  %486 = vmatprep.subr.mxu0 0.0
  %487 = vmatpush1.msra.mxu0 0.0
  %488 = vmatprep.subr.mxu0 0.0
  %489 = vmatpush1.msra.mxu0 0.0
  %490 = vmatprep.subr.mxu0 0.0
  %491 = vmatpush1.msra.mxu0 0.0
  %492 = vmatprep.subr.mxu0 0.0
  %493 = vmatpush1.msra.mxu0 0.0
  %494 = vmatprep.subr.mxu0 0.0
  %495 = vmatpush1.msra.mxu0 0.0
  %496 = vmatprep.subr.mxu0 0.0
  %497 = vmatpush1.msra.mxu0 0.0
  %498 = vmatprep.subr.mxu0 0.0
  %499 = vmatpush1.msra.mxu0 0.0
  %500 = vmatprep.subr.mxu0 0.0
  %501 = vmatpush1.msra.mxu0 0.0
  %502 = vmatprep.subr.mxu0 0.0
  %503 = vmatpush1.msra.mxu0 0.0
  %504 = vmatprep.subr.mxu0 0.0
  %505 = vmatpush1.msra.mxu0 0.0
  %506 = vmatprep.subr.mxu0 0.0
  %507 = vmatpush1.msra.mxu0 0.0
  %508 = vmatprep.subr.mxu0 0.0
  %509 = vmatpush1.msra.mxu0 0.0
  %510 = vmatprep.subr.mxu0 0.0
  %511 = vmatpush1.msra.mxu0 0.0
  %512 = vmatprep.subr.mxu0 0.0
  %513 = vmatpush1.msra.mxu0 0.0
  %514 = vmatprep.subr.mxu0 0.0
  %515 = vmatpush1.msra.mxu0 0.0
  %516 = vmatprep.subr.mxu0 0.0
  %517 = vmatpush1.msra.mxu0 0.0
  %518 = vmatprep.subr.mxu0 0.0
  %519 = vmatpush1.msra.mxu0 0.0
  %520 = vmatprep.subr.mxu0 0.0
  %521 = vmatpush1.msra.mxu0 0.0
  %522 = vmatprep.subr.mxu0 0.0
  %523 = vmatpush1.msra.mxu0 0.0
  %524 = vmatprep.subr.mxu0 0.0
  %525 = vmatpush1.msra.mxu0 0.0
  %526 = vmatprep.subr.mxu0 0.0
  %527 = vmatpush1.msra.mxu0 0.0
  %528 = vmatprep.mubr.f32.mxu0 0.0
  %529 = vmatmul.mubr.f32.gmra.mrb[0].mxu0 %v115
  %v530 = vpop.f32.mrb[0].mxu0
  %v531 = vadd.f32 %v456, %v530
  %v532 = vpop.f32.mrb[0].mxu0
  %533 = vmatprep.mubr.f32.mxu0 0.0
  %534 = vmatmul.mubr.f32.gmra.mrb[0].mxu0 %v118
  %v535 = vpop.f32.mrb[0].mxu0
  %v536 = vadd.f32 %v461, %v535
  %v537 = vpop.f32.mrb[0].mxu0
  %538 = vdwg.mxu0
  %s539 = scalar_lea.vmem %s4, 2
  %v540 = vld [vmem:[%s539] sm:$0x1]
  %v542 = vlaneseq
  %v543 = vshrl.u32 %v542, 7
  %v544 = vsub.s32 0, %v543
  %v545 = vrot.slane %v540, %v544
  %v547 = vadd.f32 %v531, %v545
  %v548 = vadd.f32 %v536, %v545
  %s549 = scalar_lea.vmem %s5, 32
  %550 = vst.msk [vmem:[%s549] sm:$0xff] %vm32, %v547
  %551 = vst.msk [vmem:[%s549 + $0x8] sm:$0xff] %vm32, %v548
  %s552 = scalar_lea.vmem %s2, 96
  %v553 = vld [vmem:[%s552] sm:$0xff]
  %v554 = vld [vmem:[%s552 + $0x8] sm:$0xff]
  %v555 = vld [vmem:[%s552 + $0x10] sm:$0xff]
  %v556 = vld [vmem:[%s552 + $0x18] sm:$0xff]
  %s557 = scalar_lea.vmem %s3, 96
  %v558 = vld [vmem:[%s557] sm:$0xff]
  %v559 = vld [vmem:[%s557 + $0x8] sm:$0xff]
  %v560 = vld [vmem:[%s557 + $0x10] sm:$0xff]
  %v561 = vld [vmem:[%s557 + $0x18] sm:$0xff]
  %562 = vmatprep.subr.mxu0 0.0
  %563 = vmatpush1.msra.mxu0 %v558
  %564 = vmatprep.subr.mxu0 0.0
  %565 = vmatpush1.msra.mxu0 %v559
  %566 = vmatprep.subr.mxu0 0.0
  %567 = vmatpush1.msra.mxu0 %v560
  %568 = vmatprep.subr.mxu0 0.0
  %569 = vmatpush1.msra.mxu0 %v561
  %570 = vmatprep.subr.mxu0 0.0
  %571 = vmatpush1.msra.mxu0 0.0
  %572 = vmatprep.subr.mxu0 0.0
  %573 = vmatpush1.msra.mxu0 0.0
  %574 = vmatprep.subr.mxu0 0.0
  %575 = vmatpush1.msra.mxu0 0.0
  %576 = vmatprep.subr.mxu0 0.0
  %577 = vmatpush1.msra.mxu0 0.0
  %578 = vmatprep.subr.mxu0 0.0
  %579 = vmatpush1.msra.mxu0 0.0
  %580 = vmatprep.subr.mxu0 0.0
  %581 = vmatpush1.msra.mxu0 0.0
  %582 = vmatprep.subr.mxu0 0.0
  %583 = vmatpush1.msra.mxu0 0.0
  %584 = vmatprep.subr.mxu0 0.0
  %585 = vmatpush1.msra.mxu0 0.0
  %586 = vmatprep.subr.mxu0 0.0
  %587 = vmatpush1.msra.mxu0 0.0
  %588 = vmatprep.subr.mxu0 0.0
  %589 = vmatpush1.msra.mxu0 0.0
  %590 = vmatprep.subr.mxu0 0.0
  %591 = vmatpush1.msra.mxu0 0.0
  %592 = vmatprep.subr.mxu0 0.0
  %593 = vmatpush1.msra.mxu0 0.0
  %594 = vmatprep.subr.mxu0 0.0
  %595 = vmatpush1.msra.mxu0 0.0
  %596 = vmatprep.subr.mxu0 0.0
  %597 = vmatpush1.msra.mxu0 0.0
  %598 = vmatprep.subr.mxu0 0.0
  %599 = vmatpush1.msra.mxu0 0.0
  %600 = vmatprep.subr.mxu0 0.0
  %601 = vmatpush1.msra.mxu0 0.0
  %602 = vmatprep.subr.mxu0 0.0
  %603 = vmatpush1.msra.mxu0 0.0
  %604 = vmatprep.subr.mxu0 0.0
  %605 = vmatpush1.msra.mxu0 0.0
  %606 = vmatprep.subr.mxu0 0.0
  %607 = vmatpush1.msra.mxu0 0.0
  %608 = vmatprep.subr.mxu0 0.0
  %609 = vmatpush1.msra.mxu0 0.0
  %610 = vmatprep.subr.mxu0 0.0
  %611 = vmatpush1.msra.mxu0 0.0
  %612 = vmatprep.subr.mxu0 0.0
  %613 = vmatpush1.msra.mxu0 0.0
  %614 = vmatprep.subr.mxu0 0.0
  %615 = vmatpush1.msra.mxu0 0.0
  %616 = vmatprep.subr.mxu0 0.0
  %617 = vmatpush1.msra.mxu0 0.0
  %618 = vmatprep.subr.mxu0 0.0
  %619 = vmatpush1.msra.mxu0 0.0
  %620 = vmatprep.subr.mxu0 0.0
  %621 = vmatpush1.msra.mxu0 0.0
  %622 = vmatprep.subr.mxu0 0.0
  %623 = vmatpush1.msra.mxu0 0.0
  %624 = vmatprep.subr.mxu0 0.0
  %625 = vmatpush1.msra.mxu0 0.0
  %626 = vmatprep.mubr.f32.mxu0 0.0
  %627 = vmatmul.mubr.f32.gmra.mrb[0].mxu0 %v34
  %v628 = vpop.f32.mrb[0].mxu0
  %v629 = vadd.f32 0.0, %v628
  %v630 = vpop.f32.mrb[0].mxu0
  %631 = vmatprep.mubr.f32.mxu0 0.0
  %632 = vmatmul.mubr.f32.gmra.mrb[0].mxu0 %v37
  %v633 = vpop.f32.mrb[0].mxu0
  %v634 = vadd.f32 0.0, %v633
  %v635 = vpop.f32.mrb[0].mxu0
  %636 = vdwg.mxu0
  %637 = vmatprep.subr.mxu0 0.0
  %638 = vmatpush1.msra.mxu0 %v553
  %639 = vmatprep.subr.mxu0 0.0
  %640 = vmatpush1.msra.mxu0 %v554
  %641 = vmatprep.subr.mxu0 0.0
  %642 = vmatpush1.msra.mxu0 %v555
  %643 = vmatprep.subr.mxu0 0.0
  %644 = vmatpush1.msra.mxu0 %v556
  %645 = vmatprep.subr.mxu0 0.0
  %646 = vmatpush1.msra.mxu0 0.0
  %647 = vmatprep.subr.mxu0 0.0
  %648 = vmatpush1.msra.mxu0 0.0
  %649 = vmatprep.subr.mxu0 0.0
  %650 = vmatpush1.msra.mxu0 0.0
  %651 = vmatprep.subr.mxu0 0.0
  %652 = vmatpush1.msra.mxu0 0.0
  %653 = vmatprep.subr.mxu0 0.0
  %654 = vmatpush1.msra.mxu0 0.0
  %655 = vmatprep.subr.mxu0 0.0
  %656 = vmatpush1.msra.mxu0 0.0
  %657 = vmatprep.subr.mxu0 0.0
  %658 = vmatpush1.msra.mxu0 0.0
  %659 = vmatprep.subr.mxu0 0.0
  %660 = vmatpush1.msra.mxu0 0.0
  %661 = vmatprep.subr.mxu0 0.0
  %662 = vmatpush1.msra.mxu0 0.0
  %663 = vmatprep.subr.mxu0 0.0
  %664 = vmatpush1.msra.mxu0 0.0
  %665 = vmatprep.subr.mxu0 0.0
  %666 = vmatpush1.msra.mxu0 0.0
  %667 = vmatprep.subr.mxu0 0.0
  %668 = vmatpush1.msra.mxu0 0.0
  %669 = vmatprep.subr.mxu0 0.0
  %670 = vmatpush1.msra.mxu0 0.0
  %671 = vmatprep.subr.mxu0 0.0
  %672 = vmatpush1.msra.mxu0 0.0
  %673 = vmatprep.subr.mxu0 0.0
  %674 = vmatpush1.msra.mxu0 0.0
  %675 = vmatprep.subr.mxu0 0.0
  %676 = vmatpush1.msra.mxu0 0.0
  %677 = vmatprep.subr.mxu0 0.0
  %678 = vmatpush1.msra.mxu0 0.0
  %679 = vmatprep.subr.mxu0 0.0
  %680 = vmatpush1.msra.mxu0 0.0
  %681 = vmatprep.subr.mxu0 0.0
  %682 = vmatpush1.msra.mxu0 0.0
  %683 = vmatprep.subr.mxu0 0.0
  %684 = vmatpush1.msra.mxu0 0.0
  %685 = vmatprep.subr.mxu0 0.0
  %686 = vmatpush1.msra.mxu0 0.0
  %687 = vmatprep.subr.mxu0 0.0
  %688 = vmatpush1.msra.mxu0 0.0
  %689 = vmatprep.subr.mxu0 0.0
  %690 = vmatpush1.msra.mxu0 0.0
  %691 = vmatprep.subr.mxu0 0.0
  %692 = vmatpush1.msra.mxu0 0.0
  %693 = vmatprep.subr.mxu0 0.0
  %694 = vmatpush1.msra.mxu0 0.0
  %695 = vmatprep.subr.mxu0 0.0
  %696 = vmatpush1.msra.mxu0 0.0
  %697 = vmatprep.subr.mxu0 0.0
  %698 = vmatpush1.msra.mxu0 0.0
  %699 = vmatprep.subr.mxu0 0.0
  %700 = vmatpush1.msra.mxu0 0.0
  %701 = vmatprep.mubr.f32.mxu0 0.0
  %702 = vmatmul.mubr.f32.gmra.mrb[0].mxu0 %v115
  %v703 = vpop.f32.mrb[0].mxu0
  %v704 = vadd.f32 %v629, %v703
  %v705 = vpop.f32.mrb[0].mxu0
  %706 = vmatprep.mubr.f32.mxu0 0.0
  %707 = vmatmul.mubr.f32.gmra.mrb[0].mxu0 %v118
  %v708 = vpop.f32.mrb[0].mxu0
  %v709 = vadd.f32 %v634, %v708
  %v710 = vpop.f32.mrb[0].mxu0
  %711 = vdwg.mxu0
  %s712 = scalar_lea.vmem %s4, 3
  %v713 = vld [vmem:[%s712] sm:$0x1]
  %v715 = vlaneseq
  %v716 = vshrl.u32 %v715, 7
  %v717 = vsub.s32 0, %v716
  %v718 = vrot.slane %v713, %v717
  %v720 = vadd.f32 %v704, %v718
  %v721 = vadd.f32 %v709, %v718
  %s722 = scalar_lea.vmem %s5, 48
  %723 = vst.msk [vmem:[%s722] sm:$0xff] %vm32, %v720
  %724 = vst.msk [vmem:[%s722 + $0x8] sm:$0xff] %vm32, %v721
  %s725 = scalar_lea.vmem %s2, 128
  %v726 = vld [vmem:[%s725] sm:$0xff]
  %v727 = vld [vmem:[%s725 + $0x8] sm:$0xff]
  %v728 = vld [vmem:[%s725 + $0x10] sm:$0xff]
  %v729 = vld [vmem:[%s725 + $0x18] sm:$0xff]
  %s730 = scalar_lea.vmem %s3, 128
  %v731 = vld [vmem:[%s730] sm:$0xff]
  %v732 = vld [vmem:[%s730 + $0x8] sm:$0xff]
  %v733 = vld [vmem:[%s730 + $0x10] sm:$0xff]
  %v734 = vld [vmem:[%s730 + $0x18] sm:$0xff]
  %735 = vmatprep.subr.mxu0 0.0
  %736 = vmatpush1.msra.mxu0 %v731
  %737 = vmatprep.subr.mxu0 0.0
  %738 = vmatpush1.msra.mxu0 %v732
  %739 = vmatprep.subr.mxu0 0.0
  %740 = vmatpush1.msra.mxu0 %v733
  %741 = vmatprep.subr.mxu0 0.0
  %742 = vmatpush1.msra.mxu0 %v734
  %743 = vmatprep.subr.mxu0 0.0
  %744 = vmatpush1.msra.mxu0 0.0
  %745 = vmatprep.subr.mxu0 0.0
  %746 = vmatpush1.msra.mxu0 0.0
  %747 = vmatprep.subr.mxu0 0.0
  %748 = vmatpush1.msra.mxu0 0.0
  %749 = vmatprep.subr.mxu0 0.0
  %750 = vmatpush1.msra.mxu0 0.0
  %751 = vmatprep.subr.mxu0 0.0
  %752 = vmatpush1.msra.mxu0 0.0
  %753 = vmatprep.subr.mxu0 0.0
  %754 = vmatpush1.msra.mxu0 0.0
  %755 = vmatprep.subr.mxu0 0.0
  %756 = vmatpush1.msra.mxu0 0.0
  %757 = vmatprep.subr.mxu0 0.0
  %758 = vmatpush1.msra.mxu0 0.0
  %759 = vmatprep.subr.mxu0 0.0
  %760 = vmatpush1.msra.mxu0 0.0
  %761 = vmatprep.subr.mxu0 0.0
  %762 = vmatpush1.msra.mxu0 0.0
  %763 = vmatprep.subr.mxu0 0.0
  %764 = vmatpush1.msra.mxu0 0.0
  %765 = vmatprep.subr.mxu0 0.0
  %766 = vmatpush1.msra.mxu0 0.0
  %767 = vmatprep.subr.mxu0 0.0
  %768 = vmatpush1.msra.mxu0 0.0
  %769 = vmatprep.subr.mxu0 0.0
  %770 = vmatpush1.msra.mxu0 0.0
  %771 = vmatprep.subr.mxu0 0.0
  %772 = vmatpush1.msra.mxu0 0.0
  %773 = vmatprep.subr.mxu0 0.0
  %774 = vmatpush1.msra.mxu0 0.0
  %775 = vmatprep.subr.mxu0 0.0
  %776 = vmatpush1.msra.mxu0 0.0
  %777 = vmatprep.subr.mxu0 0.0
  %778 = vmatpush1.msra.mxu0 0.0
  %779 = vmatprep.subr.mxu0 0.0
  %780 = vmatpush1.msra.mxu0 0.0
  %781 = vmatprep.subr.mxu0 0.0
  %782 = vmatpush1.msra.mxu0 0.0
  %783 = vmatprep.subr.mxu0 0.0
  %784 = vmatpush1.msra.mxu0 0.0
  %785 = vmatprep.subr.mxu0 0.0
  %786 = vmatpush1.msra.mxu0 0.0
  %787 = vmatprep.subr.mxu0 0.0
  %788 = vmatpush1.msra.mxu0 0.0
  %789 = vmatprep.subr.mxu0 0.0
  %790 = vmatpush1.msra.mxu0 0.0
  %791 = vmatprep.subr.mxu0 0.0
  %792 = vmatpush1.msra.mxu0 0.0
  %793 = vmatprep.subr.mxu0 0.0
  %794 = vmatpush1.msra.mxu0 0.0
  %795 = vmatprep.subr.mxu0 0.0
  %796 = vmatpush1.msra.mxu0 0.0
  %797 = vmatprep.subr.mxu0 0.0
  %798 = vmatpush1.msra.mxu0 0.0
  %799 = vmatprep.mubr.f32.mxu0 0.0
  %800 = vmatmul.mubr.f32.gmra.mrb[0].mxu0 %v34
  %v801 = vpop.f32.mrb[0].mxu0
  %v802 = vadd.f32 0.0, %v801
  %v803 = vpop.f32.mrb[0].mxu0
  %804 = vmatprep.mubr.f32.mxu0 0.0
  %805 = vmatmul.mubr.f32.gmra.mrb[0].mxu0 %v37
  %v806 = vpop.f32.mrb[0].mxu0
  %v807 = vadd.f32 0.0, %v806
  %v808 = vpop.f32.mrb[0].mxu0
  %809 = vdwg.mxu0
  %810 = vmatprep.subr.mxu0 0.0
  %811 = vmatpush1.msra.mxu0 %v726
  %812 = vmatprep.subr.mxu0 0.0
  %813 = vmatpush1.msra.mxu0 %v727
  %814 = vmatprep.subr.mxu0 0.0
  %815 = vmatpush1.msra.mxu0 %v728
  %816 = vmatprep.subr.mxu0 0.0
  %817 = vmatpush1.msra.mxu0 %v729
  %818 = vmatprep.subr.mxu0 0.0
  %819 = vmatpush1.msra.mxu0 0.0
  %820 = vmatprep.subr.mxu0 0.0
  %821 = vmatpush1.msra.mxu0 0.0
  %822 = vmatprep.subr.mxu0 0.0
  %823 = vmatpush1.msra.mxu0 0.0
  %824 = vmatprep.subr.mxu0 0.0
  %825 = vmatpush1.msra.mxu0 0.0
  %826 = vmatprep.subr.mxu0 0.0
  %827 = vmatpush1.msra.mxu0 0.0
  %828 = vmatprep.subr.mxu0 0.0
  %829 = vmatpush1.msra.mxu0 0.0
  %830 = vmatprep.subr.mxu0 0.0
  %831 = vmatpush1.msra.mxu0 0.0
  %832 = vmatprep.subr.mxu0 0.0
  %833 = vmatpush1.msra.mxu0 0.0
  %834 = vmatprep.subr.mxu0 0.0
  %835 = vmatpush1.msra.mxu0 0.0
  %836 = vmatprep.subr.mxu0 0.0
  %837 = vmatpush1.msra.mxu0 0.0
  %838 = vmatprep.subr.mxu0 0.0
  %839 = vmatpush1.msra.mxu0 0.0
  %840 = vmatprep.subr.mxu0 0.0
  %841 = vmatpush1.msra.mxu0 0.0
  %842 = vmatprep.subr.mxu0 0.0
  %843 = vmatpush1.msra.mxu0 0.0
  %844 = vmatprep.subr.mxu0 0.0
  %845 = vmatpush1.msra.mxu0 0.0
  %846 = vmatprep.subr.mxu0 0.0
  %847 = vmatpush1.msra.mxu0 0.0
  %848 = vmatprep.subr.mxu0 0.0
  %849 = vmatpush1.msra.mxu0 0.0
  %850 = vmatprep.subr.mxu0 0.0
  %851 = vmatpush1.msra.mxu0 0.0
  %852 = vmatprep.subr.mxu0 0.0
  %853 = vmatpush1.msra.mxu0 0.0
  %854 = vmatprep.subr.mxu0 0.0
  %855 = vmatpush1.msra.mxu0 0.0
  %856 = vmatprep.subr.mxu0 0.0
  %857 = vmatpush1.msra.mxu0 0.0
  %858 = vmatprep.subr.mxu0 0.0
  %859 = vmatpush1.msra.mxu0 0.0
  %860 = vmatprep.subr.mxu0 0.0
  %861 = vmatpush1.msra.mxu0 0.0
  %862 = vmatprep.subr.mxu0 0.0
  %863 = vmatpush1.msra.mxu0 0.0
  %864 = vmatprep.subr.mxu0 0.0
  %865 = vmatpush1.msra.mxu0 0.0
  %866 = vmatprep.subr.mxu0 0.0
  %867 = vmatpush1.msra.mxu0 0.0
  %868 = vmatprep.subr.mxu0 0.0
  %869 = vmatpush1.msra.mxu0 0.0
  %870 = vmatprep.subr.mxu0 0.0
  %871 = vmatpush1.msra.mxu0 0.0
  %872 = vmatprep.subr.mxu0 0.0
  %873 = vmatpush1.msra.mxu0 0.0
  %874 = vmatprep.mubr.f32.mxu0 0.0
  %875 = vmatmul.mubr.f32.gmra.mrb[0].mxu0 %v115
  %v876 = vpop.f32.mrb[0].mxu0
  %v877 = vadd.f32 %v802, %v876
  %v878 = vpop.f32.mrb[0].mxu0
  %879 = vmatprep.mubr.f32.mxu0 0.0
  %880 = vmatmul.mubr.f32.gmra.mrb[0].mxu0 %v118
  %v881 = vpop.f32.mrb[0].mxu0
  %v882 = vadd.f32 %v807, %v881
  %v883 = vpop.f32.mrb[0].mxu0
  %884 = vdwg.mxu0
  %s885 = scalar_lea.vmem %s4, 4
  %v886 = vld [vmem:[%s885] sm:$0x1]
  %v888 = vlaneseq
  %v889 = vshrl.u32 %v888, 7
  %v890 = vsub.s32 0, %v889
  %v891 = vrot.slane %v886, %v890
  %v893 = vadd.f32 %v877, %v891
  %v894 = vadd.f32 %v882, %v891
  %s895 = scalar_lea.vmem %s5, 64
  %896 = vst.msk [vmem:[%s895] sm:$0xff] %vm32, %v893
  %897 = vst.msk [vmem:[%s895 + $0x8] sm:$0xff] %vm32, %v894
  %s898 = scalar_lea.vmem %s2, 160
  %v899 = vld [vmem:[%s898] sm:$0xff]
  %v900 = vld [vmem:[%s898 + $0x8] sm:$0xff]
  %v901 = vld [vmem:[%s898 + $0x10] sm:$0xff]
  %v902 = vld [vmem:[%s898 + $0x18] sm:$0xff]
  %s903 = scalar_lea.vmem %s3, 160
  %v904 = vld [vmem:[%s903] sm:$0xff]
  %v905 = vld [vmem:[%s903 + $0x8] sm:$0xff]
  %v906 = vld [vmem:[%s903 + $0x10] sm:$0xff]
  %v907 = vld [vmem:[%s903 + $0x18] sm:$0xff]
  %908 = vmatprep.subr.mxu0 0.0
  %909 = vmatpush1.msra.mxu0 %v904
  %910 = vmatprep.subr.mxu0 0.0
  %911 = vmatpush1.msra.mxu0 %v905
  %912 = vmatprep.subr.mxu0 0.0
  %913 = vmatpush1.msra.mxu0 %v906
  %914 = vmatprep.subr.mxu0 0.0
  %915 = vmatpush1.msra.mxu0 %v907
  %916 = vmatprep.subr.mxu0 0.0
  %917 = vmatpush1.msra.mxu0 0.0
  %918 = vmatprep.subr.mxu0 0.0
  %919 = vmatpush1.msra.mxu0 0.0
  %920 = vmatprep.subr.mxu0 0.0
  %921 = vmatpush1.msra.mxu0 0.0
  %922 = vmatprep.subr.mxu0 0.0
  %923 = vmatpush1.msra.mxu0 0.0
  %924 = vmatprep.subr.mxu0 0.0
  %925 = vmatpush1.msra.mxu0 0.0
  %926 = vmatprep.subr.mxu0 0.0
  %927 = vmatpush1.msra.mxu0 0.0
  %928 = vmatprep.subr.mxu0 0.0
  %929 = vmatpush1.msra.mxu0 0.0
  %930 = vmatprep.subr.mxu0 0.0
  %931 = vmatpush1.msra.mxu0 0.0
  %932 = vmatprep.subr.mxu0 0.0
  %933 = vmatpush1.msra.mxu0 0.0
  %934 = vmatprep.subr.mxu0 0.0
  %935 = vmatpush1.msra.mxu0 0.0
  %936 = vmatprep.subr.mxu0 0.0
  %937 = vmatpush1.msra.mxu0 0.0
  %938 = vmatprep.subr.mxu0 0.0
  %939 = vmatpush1.msra.mxu0 0.0
  %940 = vmatprep.subr.mxu0 0.0
  %941 = vmatpush1.msra.mxu0 0.0
  %942 = vmatprep.subr.mxu0 0.0
  %943 = vmatpush1.msra.mxu0 0.0
  %944 = vmatprep.subr.mxu0 0.0
  %945 = vmatpush1.msra.mxu0 0.0
  %946 = vmatprep.subr.mxu0 0.0
  %947 = vmatpush1.msra.mxu0 0.0
  %948 = vmatprep.subr.mxu0 0.0
  %949 = vmatpush1.msra.mxu0 0.0
  %950 = vmatprep.subr.mxu0 0.0
  %951 = vmatpush1.msra.mxu0 0.0
  %952 = vmatprep.subr.mxu0 0.0
  %953 = vmatpush1.msra.mxu0 0.0
  %954 = vmatprep.subr.mxu0 0.0
  %955 = vmatpush1.msra.mxu0 0.0
  %956 = vmatprep.subr.mxu0 0.0
  %957 = vmatpush1.msra.mxu0 0.0
  %958 = vmatprep.subr.mxu0 0.0
  %959 = vmatpush1.msra.mxu0 0.0
  %960 = vmatprep.subr.mxu0 0.0
  %961 = vmatpush1.msra.mxu0 0.0
  %962 = vmatprep.subr.mxu0 0.0
  %963 = vmatpush1.msra.mxu0 0.0
  %964 = vmatprep.subr.mxu0 0.0
  %965 = vmatpush1.msra.mxu0 0.0
  %966 = vmatprep.subr.mxu0 0.0
  %967 = vmatpush1.msra.mxu0 0.0
  %968 = vmatprep.subr.mxu0 0.0
  %969 = vmatpush1.msra.mxu0 0.0
  %970 = vmatprep.subr.mxu0 0.0
  %971 = vmatpush1.msra.mxu0 0.0
  %972 = vmatprep.mubr.f32.mxu0 0.0
  %973 = vmatmul.mubr.f32.gmra.mrb[0].mxu0 %v34
  %v974 = vpop.f32.mrb[0].mxu0
  %v975 = vadd.f32 0.0, %v974
  %v976 = vpop.f32.mrb[0].mxu0
  %977 = vmatprep.mubr.f32.mxu0 0.0
  %978 = vmatmul.mubr.f32.gmra.mrb[0].mxu0 %v37
  %v979 = vpop.f32.mrb[0].mxu0
  %v980 = vadd.f32 0.0, %v979
  %v981 = vpop.f32.mrb[0].mxu0
  %982 = vdwg.mxu0
  %983 = vmatprep.subr.mxu0 0.0
  %984 = vmatpush1.msra.mxu0 %v899
  %985 = vmatprep.subr.mxu0 0.0
  %986 = vmatpush1.msra.mxu0 %v900
  %987 = vmatprep.subr.mxu0 0.0
  %988 = vmatpush1.msra.mxu0 %v901
  %989 = vmatprep.subr.mxu0 0.0
  %990 = vmatpush1.msra.mxu0 %v902
  %991 = vmatprep.subr.mxu0 0.0
  %992 = vmatpush1.msra.mxu0 0.0
  %993 = vmatprep.subr.mxu0 0.0
  %994 = vmatpush1.msra.mxu0 0.0
  %995 = vmatprep.subr.mxu0 0.0
  %996 = vmatpush1.msra.mxu0 0.0
  %997 = vmatprep.subr.mxu0 0.0
  %998 = vmatpush1.msra.mxu0 0.0
  %999 = vmatprep.subr.mxu0 0.0
  %1000 = vmatpush1.msra.mxu0 0.0
  %1001 = vmatprep.subr.mxu0 0.0
  %1002 = vmatpush1.msra.mxu0 0.0
  %1003 = vmatprep.subr.mxu0 0.0
  %1004 = vmatpush1.msra.mxu0 0.0
  %1005 = vmatprep.subr.mxu0 0.0
  %1006 = vmatpush1.msra.mxu0 0.0
  %1007 = vmatprep.subr.mxu0 0.0
  %1008 = vmatpush1.msra.mxu0 0.0
  %1009 = vmatprep.subr.mxu0 0.0
  %1010 = vmatpush1.msra.mxu0 0.0
  %1011 = vmatprep.subr.mxu0 0.0
  %1012 = vmatpush1.msra.mxu0 0.0
  %1013 = vmatprep.subr.mxu0 0.0
  %1014 = vmatpush1.msra.mxu0 0.0
  %1015 = vmatprep.subr.mxu0 0.0
  %1016 = vmatpush1.msra.mxu0 0.0
  %1017 = vmatprep.subr.mxu0 0.0
  %1018 = vmatpush1.msra.mxu0 0.0
  %1019 = vmatprep.subr.mxu0 0.0
  %1020 = vmatpush1.msra.mxu0 0.0
  %1021 = vmatprep.subr.mxu0 0.0
  %1022 = vmatpush1.msra.mxu0 0.0
  %1023 = vmatprep.subr.mxu0 0.0
  %1024 = vmatpush1.msra.mxu0 0.0
  %1025 = vmatprep.subr.mxu0 0.0
  %1026 = vmatpush1.msra.mxu0 0.0
  %1027 = vmatprep.subr.mxu0 0.0
  %1028 = vmatpush1.msra.mxu0 0.0
  %1029 = vmatprep.subr.mxu0 0.0
  %1030 = vmatpush1.msra.mxu0 0.0
  %1031 = vmatprep.subr.mxu0 0.0
  %1032 = vmatpush1.msra.mxu0 0.0
  %1033 = vmatprep.subr.mxu0 0.0
  %1034 = vmatpush1.msra.mxu0 0.0
  %1035 = vmatprep.subr.mxu0 0.0
  %1036 = vmatpush1.msra.mxu0 0.0
  %1037 = vmatprep.subr.mxu0 0.0
  %1038 = vmatpush1.msra.mxu0 0.0
  %1039 = vmatprep.subr.mxu0 0.0
  %1040 = vmatpush1.msra.mxu0 0.0
  %1041 = vmatprep.subr.mxu0 0.0
  %1042 = vmatpush1.msra.mxu0 0.0
  %1043 = vmatprep.subr.mxu0 0.0
  %1044 = vmatpush1.msra.mxu0 0.0
  %1045 = vmatprep.subr.mxu0 0.0
  %1046 = vmatpush1.msra.mxu0 0.0
  %1047 = vmatprep.mubr.f32.mxu0 0.0
  %1048 = vmatmul.mubr.f32.gmra.mrb[0].mxu0 %v115
  %v1049 = vpop.f32.mrb[0].mxu0
  %v1050 = vadd.f32 %v975, %v1049
  %v1051 = vpop.f32.mrb[0].mxu0
  %1052 = vmatprep.mubr.f32.mxu0 0.0
  %1053 = vmatmul.mubr.f32.gmra.mrb[0].mxu0 %v118
  %v1054 = vpop.f32.mrb[0].mxu0
  %v1055 = vadd.f32 %v980, %v1054
  %v1056 = vpop.f32.mrb[0].mxu0
  %1057 = vdwg.mxu0
  %s1058 = scalar_lea.vmem %s4, 5
  %v1059 = vld [vmem:[%s1058] sm:$0x1]
  %v1061 = vlaneseq
  %v1062 = vshrl.u32 %v1061, 7
  %v1063 = vsub.s32 0, %v1062
  %v1064 = vrot.slane %v1059, %v1063
  %v1066 = vadd.f32 %v1050, %v1064
  %v1067 = vadd.f32 %v1055, %v1064
  %s1068 = scalar_lea.vmem %s5, 80
  %1069 = vst.msk [vmem:[%s1068] sm:$0xff] %vm32, %v1066
  %1070 = vst.msk [vmem:[%s1068 + $0x8] sm:$0xff] %vm32, %v1067
  // Predicated region
  $region22: #{extractive_model_forward.7} parent=0 // pred_check
    _
  $region23: #{extractive_model_forward.7} parent=0 // pred_check_branch
    %1072 = sbr.rel (0) target = $region25
  $region24: #{extractive_model_forward.7} parent=0 // pred_region
    _
  $region25: #{extractive_model_forward.7} parent=0 // pred_fallthru
    _
  // Predicated region
  $region26: #{extractive_model_forward.7} parent=0 // pred_check
    _
  $region27: #{extractive_model_forward.7} parent=0 // pred_check_branch
    %1074 = sbr.rel (0) target = $region29
  $region28: #{extractive_model_forward.7} parent=0 // pred_region
    _
  $region29: #{extractive_model_forward.7} parent=0 // pred_fallthru
    _

// kernel: extractive_model_forward.6
$region0: #{extractive_model_forward.6}
  #allocation0 [shape = 'u32[]', space=smem, size = 0x4, offset = 0x4, fixed_abs, tag = 'smem constant byte address 0x4 - core index']
  #allocation1 [shape = 'u32[144,128]{1,0:T(1,128)}', space=vmem, size = 0x12000, scoped, tag = 'internal scratch']
  #allocation2 [shape = 'f32[2,32]{1,0:T(2,128)}', space=vmem, size = 0x400, scoped, tag = 'scratch operand']
  #allocation3 [shape = 'f32[2,32]{1,0:T(2,128)}', space=vmem, size = 0x400, scoped, tag = 'scratch operand']
  %s0 = inlined_call_operand.vmem [shape: f32[6,8,2,32], index: 0, kind: input, shape index: {}, may-alias: {0,1}]
  %s1 = inlined_call_operand.vmem [shape: f32[6,8,2,32], index: 1, kind: input, shape index: {}, may-alias: {0,1}]
  %s2 = inlined_call_operand.vmem [shape: f32[3,32,32], index: 2, kind: input, shape index: {}]
  %s3 = inlined_call_operand.vmem [shape: f32[3,32,32], index: 3, kind: input, shape index: {}]
  %s4 = inlined_call_operand.vmem [shape: f32[3,1,32], index: 4, kind: input, shape index: {}]
  %s5 = inlined_call_operand.vmem [shape: f32[3,1,32], index: 5, kind: input, shape index: {}]
  %s6 = inlined_call_operand.vmem [shape: f32[8,2,32], index: 6, kind: output, shape index: {0}]
  %s7 = inlined_call_operand.vmem [shape: f32[8,2,32], index: 7, kind: output, shape index: {1}]
  %8 = xla_tuple %s6, %s7
  %s9 = sld [smem:[#allocation0]]
  $region151: #{extractive_model_forward.6} parent=0
    _
  %s11 = ssub.s32 1, %s9
  %s12 = scalar_select 0, %s11, %s9
  $region1: #{extractive_model_forward.6} parent=0
    #allocation4 [shape = 'u8[24576]{0}', space=vmem, size = 0x6000, scoped, tag = 'input window, operand 0']
    #allocation5 [shape = 'u8[24576]{0}', space=vmem, size = 0x6000, scoped, tag = 'input window, operand 1']
    loop: start=0, step=1, limit=4
    $region2: #{extractive_model_forward.6} parent=1 // loop_pre_header
      _
    $region3: #{extractive_model_forward.6} parent=1 // loop_header
      %s14 = sphi 0, %s18
      %p15 = scmp.ge.s32.totalorder %s14, 4
      %s24 = sphi 0, %s26
      %s27 = sphi 0, %s24
      %s28 = sphi 0, %s27
      %s44 = sphi 0, %s28
      %s52 = sphi 0, %s54
      %s55 = sphi 0, %s52
      %s56 = sphi 0, %s55
      %s72 = sphi 0, %s56
      %s76 = sphi 0, %s76
      %s78 = sphi 0, %s76
      %s79 = sphi 0, %s78
      %s93 = sphi 0, %s79
      %s97 = sphi 0, %s97
      %s99 = sphi 0, %s97
      %s100 = sphi 0, %s99
      %s114 = sphi 0, %s100
      %s118 = sphi 0, %s118
      %s120 = sphi 0, %s118
      %s121 = sphi 0, %s120
      %s135 = sphi 0, %s121
      %s139 = sphi 0, %s139
      %s141 = sphi 0, %s139
      %s142 = sphi 0, %s141
      %s156 = sphi 0, %s142
      %s162 = sphi 0, %s164
      %s165 = sphi 0, %s162
      %s166 = sphi 0, %s165
      %s182 = sphi 0, %s166
      %s190 = sphi 0, %s192
      %s193 = sphi 0, %s190
      %s194 = sphi 0, %s193
      %s210 = sphi 0, %s194
    $region4: #{extractive_model_forward.6} parent=1 // loop_header_branch
      %17 = sbr.rel (%p15) target = $region8
    $region5: #{extractive_model_forward.6} parent=1 // loop_body
      %s19 = ssub.s32 %s14, 1
      %s20 = ssub.s32 %s14, 2
      %s21 = sadd.s32 %s14, 1
      %s22 = ssub.s32 %s14, %s21
      %p23 = scmp.eq.s32.totalorder %s22, 0
      %s25 = sadd.s32 %s24, 1
      %s26 = scalar_select %p23, %s24, %s25
      %p29 = pneg %p23
      %p30 = scmp.eq.s32.totalorder %s14, 1
      %p31 = por %p29, %p30
      %p32 = scmp.ne.s32.totalorder %s24, %s27
      %p33 = scmp.eq.s32.totalorder %s14, 0
      %p34 = por %p32, %p33
      %p35 = scmp.ne.s32.totalorder %s24, %s27
      %p36 = scmp.eq.s32.totalorder %s19, 1
      %p37 = por %p35, %p36
      %p38 = scmp.ne.s32.totalorder %s27, %s28
      %p39 = scmp.eq.s32.totalorder %s19, 0
      %p40 = por %p38, %p39
      %p41 = scmp.ne.s32.totalorder %s27, %s28
      %p42 = scmp.eq.s32.totalorder %s20, 1
      %p43 = por %p41, %p42
      %p45 = scmp.ne.s32.totalorder %s28, %s44
      %p46 = scmp.eq.s32.totalorder %s20, 0
      %p47 = por %p45, %p46
      %s48 = ssub.s32 1, %s14
      %s49 = ssub.s32 1, %s21
      %s50 = ssub.s32 %s48, %s49
      %p51 = scmp.eq.s32.totalorder %s50, 0
      %s53 = sadd.s32 %s52, 1
      %s54 = scalar_select %p51, %s52, %s53
      %p57 = pneg %p51
      %p58 = scmp.eq.s32.totalorder %s14, 1
      %p59 = por %p57, %p58
      %p60 = scmp.ne.s32.totalorder %s52, %s55
      %p61 = scmp.eq.s32.totalorder %s14, 0
      %p62 = por %p60, %p61
      %p63 = scmp.ne.s32.totalorder %s52, %s55
      %p64 = scmp.eq.s32.totalorder %s19, 1
      %p65 = por %p63, %p64
      %p66 = scmp.ne.s32.totalorder %s55, %s56
      %p67 = scmp.eq.s32.totalorder %s19, 0
      %p68 = por %p66, %p67
      %p69 = scmp.ne.s32.totalorder %s55, %s56
      %p70 = scmp.eq.s32.totalorder %s20, 1
      %p71 = por %p69, %p70
      %p73 = scmp.ne.s32.totalorder %s56, %s72
      %p74 = scmp.eq.s32.totalorder %s20, 0
      %p75 = por %p73, %p74
      %s77 = sadd.s32 %s76, 1
      %p80 = scmp.eq.s32.totalorder %s14, 1
      %p81 = scmp.ne.s32.totalorder %s76, %s78
      %p82 = scmp.eq.s32.totalorder %s14, 0
      %p83 = por %p81, %p82
      %p84 = scmp.ne.s32.totalorder %s76, %s78
      %p85 = scmp.eq.s32.totalorder %s19, 1
      %p86 = por %p84, %p85
      %p87 = scmp.ne.s32.totalorder %s78, %s79
      %p88 = scmp.eq.s32.totalorder %s19, 0
      %p89 = por %p87, %p88
      %p90 = scmp.ne.s32.totalorder %s78, %s79
      %p91 = scmp.eq.s32.totalorder %s20, 1
      %p92 = por %p90, %p91
      %p94 = scmp.ne.s32.totalorder %s79, %s93
      %p95 = scmp.eq.s32.totalorder %s20, 0
      %p96 = por %p94, %p95
      %s98 = sadd.s32 %s97, 1
      %p101 = scmp.eq.s32.totalorder %s14, 1
      %p102 = scmp.ne.s32.totalorder %s97, %s99
      %p103 = scmp.eq.s32.totalorder %s14, 0
      %p104 = por %p102, %p103
      %p105 = scmp.ne.s32.totalorder %s97, %s99
      %p106 = scmp.eq.s32.totalorder %s19, 1
      %p107 = por %p105, %p106
      %p108 = scmp.ne.s32.totalorder %s99, %s100
      %p109 = scmp.eq.s32.totalorder %s19, 0
      %p110 = por %p108, %p109
      %p111 = scmp.ne.s32.totalorder %s99, %s100
      %p112 = scmp.eq.s32.totalorder %s20, 1
      %p113 = por %p111, %p112
      %p115 = scmp.ne.s32.totalorder %s100, %s114
      %p116 = scmp.eq.s32.totalorder %s20, 0
      %p117 = por %p115, %p116
      %s119 = sadd.s32 %s118, 1
      %p122 = scmp.eq.s32.totalorder %s14, 1
      %p123 = scmp.ne.s32.totalorder %s118, %s120
      %p124 = scmp.eq.s32.totalorder %s14, 0
      %p125 = por %p123, %p124
      %p126 = scmp.ne.s32.totalorder %s118, %s120
      %p127 = scmp.eq.s32.totalorder %s19, 1
      %p128 = por %p126, %p127
      %p129 = scmp.ne.s32.totalorder %s120, %s121
      %p130 = scmp.eq.s32.totalorder %s19, 0
      %p131 = por %p129, %p130
      %p132 = scmp.ne.s32.totalorder %s120, %s121
      %p133 = scmp.eq.s32.totalorder %s20, 1
      %p134 = por %p132, %p133
      %p136 = scmp.ne.s32.totalorder %s121, %s135
      %p137 = scmp.eq.s32.totalorder %s20, 0
      %p138 = por %p136, %p137
      %s140 = sadd.s32 %s139, 1
      %p143 = scmp.eq.s32.totalorder %s14, 1
      %p144 = scmp.ne.s32.totalorder %s139, %s141
      %p145 = scmp.eq.s32.totalorder %s14, 0
      %p146 = por %p144, %p145
      %p147 = scmp.ne.s32.totalorder %s139, %s141
      %p148 = scmp.eq.s32.totalorder %s19, 1
      %p149 = por %p147, %p148
      %p150 = scmp.ne.s32.totalorder %s141, %s142
      %p151 = scmp.eq.s32.totalorder %s19, 0
      %p152 = por %p150, %p151
      %p153 = scmp.ne.s32.totalorder %s141, %s142
      %p154 = scmp.eq.s32.totalorder %s20, 1
      %p155 = por %p153, %p154
      %p157 = scmp.ne.s32.totalorder %s142, %s156
      %p158 = scmp.eq.s32.totalorder %s20, 0
      %p159 = por %p157, %p158
      %s160 = ssub.s32 %s14, %s21
      %p161 = scmp.eq.s32.totalorder %s160, 0
      %s163 = sadd.s32 %s162, 1
      %s164 = scalar_select %p161, %s162, %s163
      %p167 = pneg %p161
      %p168 = scmp.eq.s32.totalorder %s14, 1
      %p169 = por %p167, %p168
      %p170 = scmp.ne.s32.totalorder %s162, %s165
      %p171 = scmp.eq.s32.totalorder %s14, 0
      %p172 = por %p170, %p171
      %p173 = scmp.ne.s32.totalorder %s162, %s165
      %p174 = scmp.eq.s32.totalorder %s19, 1
      %p175 = por %p173, %p174
      %p176 = scmp.ne.s32.totalorder %s165, %s166
      %p177 = scmp.eq.s32.totalorder %s19, 0
      %p178 = por %p176, %p177
      %p179 = scmp.ne.s32.totalorder %s165, %s166
      %p180 = scmp.eq.s32.totalorder %s20, 1
      %p181 = por %p179, %p180
      %p183 = scmp.ne.s32.totalorder %s166, %s182
      %p184 = scmp.eq.s32.totalorder %s20, 0
      %p185 = por %p183, %p184
      %s186 = ssub.s32 1, %s14
      %s187 = ssub.s32 1, %s21
      %s188 = ssub.s32 %s186, %s187
      %p189 = scmp.eq.s32.totalorder %s188, 0
      %s191 = sadd.s32 %s190, 1
      %s192 = scalar_select %p189, %s190, %s191
      %p195 = pneg %p189
      %p196 = scmp.eq.s32.totalorder %s14, 1
      %p197 = por %p195, %p196
      %p198 = scmp.ne.s32.totalorder %s190, %s193
      %p199 = scmp.eq.s32.totalorder %s14, 0
      %p200 = por %p198, %p199
      %p201 = scmp.ne.s32.totalorder %s190, %s193
      %p202 = scmp.eq.s32.totalorder %s19, 1
      %p203 = por %p201, %p202
      %p204 = scmp.ne.s32.totalorder %s193, %s194
      %p205 = scmp.eq.s32.totalorder %s19, 0
      %p206 = por %p204, %p205
      %p207 = scmp.ne.s32.totalorder %s193, %s194
      %p208 = scmp.eq.s32.totalorder %s20, 1
      %p209 = por %p207, %p208
      %p211 = scmp.ne.s32.totalorder %s194, %s210
      %p212 = scmp.eq.s32.totalorder %s20, 0
      %p213 = por %p211, %p212
      %p214 = scmp.le.s32.totalorder 1, %s14
      %p215 = scmp.lt.s32.totalorder %s14, 3
      %p216 = pnand %p214, %p215
      %p217 = pneg %p216
      // Predicated region
      $region9: #{extractive_model_forward.6} parent=5 // pred_check
        _
      $region10: #{extractive_model_forward.6} parent=5 // pred_check_branch
        %219 = sbr.rel (%p216) target = $region12
      $region11: #{extractive_model_forward.6} parent=5 // pred_region
        %s220 = ssub.s32 %s14, 1
        // Predicated region
        $region13: #{extractive_model_forward.6} parent=11 // pred_check
          %p221 = pneg %p89
        $region14: #{extractive_model_forward.6} parent=11 // pred_check_branch
          %223 = sbr.rel (%p221) target = $region16
        $region15: #{extractive_model_forward.6} parent=11 // pred_region
          _
        $region16: #{extractive_model_forward.6} parent=11 // pred_fallthru
          _
        // Predicated region
        $region17: #{extractive_model_forward.6} parent=11 // pred_check
          %p224 = pneg %p110
        $region18: #{extractive_model_forward.6} parent=11 // pred_check_branch
          %226 = sbr.rel (%p224) target = $region20
        $region19: #{extractive_model_forward.6} parent=11 // pred_region
          _
        $region20: #{extractive_model_forward.6} parent=11 // pred_fallthru
          _
        // Predicated region
        $region21: #{extractive_model_forward.6} parent=11 // pred_check
          %p227 = pneg %p131
        $region22: #{extractive_model_forward.6} parent=11 // pred_check_branch
          %229 = sbr.rel (%p227) target = $region24
        $region23: #{extractive_model_forward.6} parent=11 // pred_region
          _
        $region24: #{extractive_model_forward.6} parent=11 // pred_fallthru
          _
        // Predicated region
        $region25: #{extractive_model_forward.6} parent=11 // pred_check
          %p230 = pneg %p152
        $region26: #{extractive_model_forward.6} parent=11 // pred_check_branch
          %232 = sbr.rel (%p230) target = $region28
        $region27: #{extractive_model_forward.6} parent=11 // pred_region
          _
        $region28: #{extractive_model_forward.6} parent=11 // pred_fallthru
          _
      $region12: #{extractive_model_forward.6} parent=5 // pred_fallthru
        _
      %p233 = scmp.lt.s32.totalorder %s14, 2
      // Predicated region
      $region29: #{extractive_model_forward.6} parent=5 // pred_check
        %p234 = pneg %p233
      $region30: #{extractive_model_forward.6} parent=5 // pred_check_branch
        %236 = sbr.rel (%p234) target = $region32
      $region31: #{extractive_model_forward.6} parent=5 // pred_region
        // Predicated region
        $region33: #{extractive_model_forward.6} parent=31 // pred_check
          %p237 = pneg %p34
        $region34: #{extractive_model_forward.6} parent=31 // pred_check_branch
          %239 = sbr.rel (%p237) target = $region36
        $region35: #{extractive_model_forward.6} parent=31 // pred_region
          %s240 = sand.u32 %s24, 1
          %s241 = sand.u32 %s24, 1
          %s242 = smul.addr %s241, 24
          %s243 = scalar_lea.vmem [#allocation4], %s242
          %s244 = smul.u32 4, %s14
          %s245 = smul.addr %s244, 2
          %s246 = scalar_lea.vmem %s0, %s245
          // Predicated region
          $region37: #{extractive_model_forward.6} parent=35 // pred_check
            _
          $region38: #{extractive_model_forward.6} parent=35 // pred_check_branch
            %248 = sbr.rel (0) target = $region40
          $region39: #{extractive_model_forward.6} parent=35 // pred_region
            // Predicated region
            $region41: #{extractive_model_forward.6} parent=39 // pred_check
              _
            $region42: #{extractive_model_forward.6} parent=39 // pred_check_branch
              %250 = sbr.rel target = $region44
            $region43: #{extractive_model_forward.6} parent=39 // pred_region
              // Predicated region
              $region56: #{extractive_model_forward.6} parent=43 // pred_check
                _
              $region57: #{extractive_model_forward.6} parent=43 // pred_check_branch
                %287 = sbr.rel (0) target = $region59
              $region58: #{extractive_model_forward.6} parent=43 // pred_region
                loop: start=0, step=1, limit=1
                $region60: #{extractive_model_forward.6} parent=58 // loop_pre_header
                  _
                $region61: #{extractive_model_forward.6} parent=58 // loop_header
                  %s289 = sphi 0, %s293
                  %p290 = scmp.ge.s32.totalorder %s289, 1
                  %s294 = sphi %s246, %s246
                  %s295 = sphi %s243, %s243
                $region62: #{extractive_model_forward.6} parent=58 // loop_header_branch
                  %292 = sbr.rel (%p290) target = $region66
                $region63: #{extractive_model_forward.6} parent=58 // loop_body
                  _
                $region64: #{extractive_model_forward.6} parent=58 // loop_footer
                  %s293 = sadd.s32 1, %s289
                $region65: #{extractive_model_forward.6} parent=58 // loop_footer_branch
                  %288 = sbr.rel target = $region61
                $region66: #{extractive_model_forward.6} parent=58 // loop_exit
                  _
                loop: start=0, step=1, limit=1
                $region67: #{extractive_model_forward.6} parent=58 // loop_pre_header
                  _
                $region68: #{extractive_model_forward.6} parent=58 // loop_header
                  %s298 = sphi 0, %s302
                  %p299 = scmp.ge.s32.totalorder %s298, 1
                  %s303 = sphi %s246, %s246
                  %s304 = sphi %s243, %s243
                $region69: #{extractive_model_forward.6} parent=58 // loop_header_branch
                  %301 = sbr.rel (%p299) target = $region73
                $region70: #{extractive_model_forward.6} parent=58 // loop_body
                  %v305 = vld [vmem:[%s303] sm:$0x3]
                  %306 = vst [vmem:[%s304] sm:$0x3] %v305
                  %v307 = vld [vmem:[%s303 + $0x2] sm:$0x3]
                  %308 = vst [vmem:[%s304 + $0x2] sm:$0x3] %v307
                  %v309 = vld [vmem:[%s303 + $0x4] sm:$0x3]
                  %310 = vst [vmem:[%s304 + $0x4] sm:$0x3] %v309
                  %v311 = vld [vmem:[%s303 + $0x6] sm:$0x3]
                  %312 = vst [vmem:[%s304 + $0x6] sm:$0x3] %v311
                  %v313 = vld [vmem:[%s303 + $0x10] sm:$0x3]
                  %314 = vst [vmem:[%s304 + $0x8] sm:$0x3] %v313
                  %v315 = vld [vmem:[%s303 + $0x12] sm:$0x3]
                  %316 = vst [vmem:[%s304 + $0xa] sm:$0x3] %v315
                  %v317 = vld [vmem:[%s303 + $0x14] sm:$0x3]
                  %318 = vst [vmem:[%s304 + $0xc] sm:$0x3] %v317
                  %v319 = vld [vmem:[%s303 + $0x16] sm:$0x3]
                  %320 = vst [vmem:[%s304 + $0xe] sm:$0x3] %v319
                  %v321 = vld [vmem:[%s303 + $0x20] sm:$0x3]
                  %322 = vst [vmem:[%s304 + $0x10] sm:$0x3] %v321
                  %v323 = vld [vmem:[%s303 + $0x22] sm:$0x3]
                  %324 = vst [vmem:[%s304 + $0x12] sm:$0x3] %v323
                  %v325 = vld [vmem:[%s303 + $0x24] sm:$0x3]
                  %326 = vst [vmem:[%s304 + $0x14] sm:$0x3] %v325
                  %v327 = vld [vmem:[%s303 + $0x26] sm:$0x3]
                  %328 = vst [vmem:[%s304 + $0x16] sm:$0x3] %v327
                $region71: #{extractive_model_forward.6} parent=58 // loop_footer
                  %s302 = sadd.s32 1, %s298
                $region72: #{extractive_model_forward.6} parent=58 // loop_footer_branch
                  %297 = sbr.rel target = $region68
                $region73: #{extractive_model_forward.6} parent=58 // loop_exit
                  _
              $region59: #{extractive_model_forward.6} parent=43 // pred_fallthru
                _
            $region44: #{extractive_model_forward.6} parent=39 // pred_fallthru
              _
            // Predicated region
            $region45: #{extractive_model_forward.6} parent=39 // pred_check
              _
            $region46: #{extractive_model_forward.6} parent=39 // pred_check_branch
              %252 = sbr.rel (0) target = $region48
            $region47: #{extractive_model_forward.6} parent=39 // pred_region
              loop: start=0, step=1, limit=1
              $region49: #{extractive_model_forward.6} parent=47 // loop_pre_header
                _
              $region50: #{extractive_model_forward.6} parent=47 // loop_header
                %s255 = sphi 0, %s259
                %p256 = scmp.ge.s32.totalorder %s255, 1
                %s260 = sphi %s246, %s246
                %s261 = sphi %s243, %s243
              $region51: #{extractive_model_forward.6} parent=47 // loop_header_branch
                %258 = sbr.rel (%p256) target = $region55
              $region52: #{extractive_model_forward.6} parent=47 // loop_body
                %v262 = vld [vmem:[%s260] sm:$0x3]
                %263 = vst [vmem:[%s261] sm:$0x3] %v262
                %v264 = vld [vmem:[%s260 + $0x2] sm:$0x3]
                %265 = vst [vmem:[%s261 + $0x2] sm:$0x3] %v264
                %v266 = vld [vmem:[%s260 + $0x4] sm:$0x3]
                %267 = vst [vmem:[%s261 + $0x4] sm:$0x3] %v266
                %v268 = vld [vmem:[%s260 + $0x6] sm:$0x3]
                %269 = vst [vmem:[%s261 + $0x6] sm:$0x3] %v268
                %v270 = vld [vmem:[%s260 + $0x10] sm:$0x3]
                %271 = vst [vmem:[%s261 + $0x8] sm:$0x3] %v270
                %v272 = vld [vmem:[%s260 + $0x12] sm:$0x3]
                %273 = vst [vmem:[%s261 + $0xa] sm:$0x3] %v272
                %v274 = vld [vmem:[%s260 + $0x14] sm:$0x3]
                %275 = vst [vmem:[%s261 + $0xc] sm:$0x3] %v274
                %v276 = vld [vmem:[%s260 + $0x16] sm:$0x3]
                %277 = vst [vmem:[%s261 + $0xe] sm:$0x3] %v276
                %v278 = vld [vmem:[%s260 + $0x20] sm:$0x3]
                %279 = vst [vmem:[%s261 + $0x10] sm:$0x3] %v278
                %v280 = vld [vmem:[%s260 + $0x22] sm:$0x3]
                %281 = vst [vmem:[%s261 + $0x12] sm:$0x3] %v280
                %v282 = vld [vmem:[%s260 + $0x24] sm:$0x3]
                %283 = vst [vmem:[%s261 + $0x14] sm:$0x3] %v282
                %v284 = vld [vmem:[%s260 + $0x26] sm:$0x3]
                %285 = vst [vmem:[%s261 + $0x16] sm:$0x3] %v284
              $region53: #{extractive_model_forward.6} parent=47 // loop_footer
                %s259 = sadd.s32 1, %s255
              $region54: #{extractive_model_forward.6} parent=47 // loop_footer_branch
                %254 = sbr.rel target = $region50
              $region55: #{extractive_model_forward.6} parent=47 // loop_exit
                _
            $region48: #{extractive_model_forward.6} parent=39 // pred_fallthru
              _
          $region40: #{extractive_model_forward.6} parent=35 // pred_fallthru
            _
          %329 = vnop
        $region36: #{extractive_model_forward.6} parent=31 // pred_fallthru
          _
        // Predicated region
        $region74: #{extractive_model_forward.6} parent=31 // pred_check
          %p330 = pneg %p62
        $region75: #{extractive_model_forward.6} parent=31 // pred_check_branch
          %332 = sbr.rel (%p330) target = $region77
        $region76: #{extractive_model_forward.6} parent=31 // pred_region
          %s333 = sand.u32 %s52, 1
          %s334 = sand.u32 %s52, 1
          %s335 = smul.addr %s334, 24
          %s336 = scalar_lea.vmem [#allocation5], %s335
          %s337 = ssub.s32 1, %s14
          %s338 = smul.u32 4, %s337
          %s339 = sadd.s32 %s338, 24
          %s340 = smul.addr %s339, 2
          %s341 = scalar_lea.vmem %s1, %s340
          // Predicated region
          $region78: #{extractive_model_forward.6} parent=76 // pred_check
            _
          $region79: #{extractive_model_forward.6} parent=76 // pred_check_branch
            %343 = sbr.rel (0) target = $region81
          $region80: #{extractive_model_forward.6} parent=76 // pred_region
            // Predicated region
            $region82: #{extractive_model_forward.6} parent=80 // pred_check
              _
            $region83: #{extractive_model_forward.6} parent=80 // pred_check_branch
              %345 = sbr.rel target = $region85
            $region84: #{extractive_model_forward.6} parent=80 // pred_region
              // Predicated region
              $region97: #{extractive_model_forward.6} parent=84 // pred_check
                _
              $region98: #{extractive_model_forward.6} parent=84 // pred_check_branch
                %382 = sbr.rel (0) target = $region100
              $region99: #{extractive_model_forward.6} parent=84 // pred_region
                loop: start=0, step=1, limit=1
                $region101: #{extractive_model_forward.6} parent=99 // loop_pre_header
                  _
                $region102: #{extractive_model_forward.6} parent=99 // loop_header
                  %s384 = sphi 0, %s388
                  %p385 = scmp.ge.s32.totalorder %s384, 1
                  %s389 = sphi %s341, %s341
                  %s390 = sphi %s336, %s336
                $region103: #{extractive_model_forward.6} parent=99 // loop_header_branch
                  %387 = sbr.rel (%p385) target = $region107
                $region104: #{extractive_model_forward.6} parent=99 // loop_body
                  _
                $region105: #{extractive_model_forward.6} parent=99 // loop_footer
                  %s388 = sadd.s32 1, %s384
                $region106: #{extractive_model_forward.6} parent=99 // loop_footer_branch
                  %383 = sbr.rel target = $region102
                $region107: #{extractive_model_forward.6} parent=99 // loop_exit
                  _
                loop: start=0, step=1, limit=1
                $region108: #{extractive_model_forward.6} parent=99 // loop_pre_header
                  _
                $region109: #{extractive_model_forward.6} parent=99 // loop_header
                  %s393 = sphi 0, %s397
                  %p394 = scmp.ge.s32.totalorder %s393, 1
                  %s398 = sphi %s341, %s341
                  %s399 = sphi %s336, %s336
                $region110: #{extractive_model_forward.6} parent=99 // loop_header_branch
                  %396 = sbr.rel (%p394) target = $region114
                $region111: #{extractive_model_forward.6} parent=99 // loop_body
                  %v400 = vld [vmem:[%s398] sm:$0x3]
                  %401 = vst [vmem:[%s399] sm:$0x3] %v400
                  %v402 = vld [vmem:[%s398 + $0x2] sm:$0x3]
                  %403 = vst [vmem:[%s399 + $0x2] sm:$0x3] %v402
                  %v404 = vld [vmem:[%s398 + $0x4] sm:$0x3]
                  %405 = vst [vmem:[%s399 + $0x4] sm:$0x3] %v404
                  %v406 = vld [vmem:[%s398 + $0x6] sm:$0x3]
                  %407 = vst [vmem:[%s399 + $0x6] sm:$0x3] %v406
                  %v408 = vld [vmem:[%s398 + $0x10] sm:$0x3]
                  %409 = vst [vmem:[%s399 + $0x8] sm:$0x3] %v408
                  %v410 = vld [vmem:[%s398 + $0x12] sm:$0x3]
                  %411 = vst [vmem:[%s399 + $0xa] sm:$0x3] %v410
                  %v412 = vld [vmem:[%s398 + $0x14] sm:$0x3]
                  %413 = vst [vmem:[%s399 + $0xc] sm:$0x3] %v412
                  %v414 = vld [vmem:[%s398 + $0x16] sm:$0x3]
                  %415 = vst [vmem:[%s399 + $0xe] sm:$0x3] %v414
                  %v416 = vld [vmem:[%s398 + $0x20] sm:$0x3]
                  %417 = vst [vmem:[%s399 + $0x10] sm:$0x3] %v416
                  %v418 = vld [vmem:[%s398 + $0x22] sm:$0x3]
                  %419 = vst [vmem:[%s399 + $0x12] sm:$0x3] %v418
                  %v420 = vld [vmem:[%s398 + $0x24] sm:$0x3]
                  %421 = vst [vmem:[%s399 + $0x14] sm:$0x3] %v420
                  %v422 = vld [vmem:[%s398 + $0x26] sm:$0x3]
                  %423 = vst [vmem:[%s399 + $0x16] sm:$0x3] %v422
                $region112: #{extractive_model_forward.6} parent=99 // loop_footer
                  %s397 = sadd.s32 1, %s393
                $region113: #{extractive_model_forward.6} parent=99 // loop_footer_branch
                  %392 = sbr.rel target = $region109
                $region114: #{extractive_model_forward.6} parent=99 // loop_exit
                  _
              $region100: #{extractive_model_forward.6} parent=84 // pred_fallthru
                _
            $region85: #{extractive_model_forward.6} parent=80 // pred_fallthru
              _
            // Predicated region
            $region86: #{extractive_model_forward.6} parent=80 // pred_check
              _
            $region87: #{extractive_model_forward.6} parent=80 // pred_check_branch
              %347 = sbr.rel (0) target = $region89
            $region88: #{extractive_model_forward.6} parent=80 // pred_region
              loop: start=0, step=1, limit=1
              $region90: #{extractive_model_forward.6} parent=88 // loop_pre_header
                _
              $region91: #{extractive_model_forward.6} parent=88 // loop_header
                %s350 = sphi 0, %s354
                %p351 = scmp.ge.s32.totalorder %s350, 1
                %s355 = sphi %s341, %s341
                %s356 = sphi %s336, %s336
              $region92: #{extractive_model_forward.6} parent=88 // loop_header_branch
                %353 = sbr.rel (%p351) target = $region96
              $region93: #{extractive_model_forward.6} parent=88 // loop_body
                %v357 = vld [vmem:[%s355] sm:$0x3]
                %358 = vst [vmem:[%s356] sm:$0x3] %v357
                %v359 = vld [vmem:[%s355 + $0x2] sm:$0x3]
                %360 = vst [vmem:[%s356 + $0x2] sm:$0x3] %v359
                %v361 = vld [vmem:[%s355 + $0x4] sm:$0x3]
                %362 = vst [vmem:[%s356 + $0x4] sm:$0x3] %v361
                %v363 = vld [vmem:[%s355 + $0x6] sm:$0x3]
                %364 = vst [vmem:[%s356 + $0x6] sm:$0x3] %v363
                %v365 = vld [vmem:[%s355 + $0x10] sm:$0x3]
                %366 = vst [vmem:[%s356 + $0x8] sm:$0x3] %v365
                %v367 = vld [vmem:[%s355 + $0x12] sm:$0x3]
                %368 = vst [vmem:[%s356 + $0xa] sm:$0x3] %v367
                %v369 = vld [vmem:[%s355 + $0x14] sm:$0x3]
                %370 = vst [vmem:[%s356 + $0xc] sm:$0x3] %v369
                %v371 = vld [vmem:[%s355 + $0x16] sm:$0x3]
                %372 = vst [vmem:[%s356 + $0xe] sm:$0x3] %v371
                %v373 = vld [vmem:[%s355 + $0x20] sm:$0x3]
                %374 = vst [vmem:[%s356 + $0x10] sm:$0x3] %v373
                %v375 = vld [vmem:[%s355 + $0x22] sm:$0x3]
                %376 = vst [vmem:[%s356 + $0x12] sm:$0x3] %v375
                %v377 = vld [vmem:[%s355 + $0x24] sm:$0x3]
                %378 = vst [vmem:[%s356 + $0x14] sm:$0x3] %v377
                %v379 = vld [vmem:[%s355 + $0x26] sm:$0x3]
                %380 = vst [vmem:[%s356 + $0x16] sm:$0x3] %v379
              $region94: #{extractive_model_forward.6} parent=88 // loop_footer
                %s354 = sadd.s32 1, %s350
              $region95: #{extractive_model_forward.6} parent=88 // loop_footer_branch
                %349 = sbr.rel target = $region91
              $region96: #{extractive_model_forward.6} parent=88 // loop_exit
                _
            $region89: #{extractive_model_forward.6} parent=80 // pred_fallthru
              _
          $region81: #{extractive_model_forward.6} parent=76 // pred_fallthru
            _
          %424 = vnop
        $region77: #{extractive_model_forward.6} parent=31 // pred_fallthru
          _
      $region32: #{extractive_model_forward.6} parent=5 // pred_fallthru
        _
      %p425 = scmp.le.s32.totalorder 1, %s14
      %p426 = scmp.lt.s32.totalorder %s14, 3
      %p427 = pnand %p425, %p426
      %p428 = pneg %p427
      // Predicated region
      $region115: #{extractive_model_forward.6} parent=5 // pred_check
        _
      $region116: #{extractive_model_forward.6} parent=5 // pred_check_branch
        %430 = sbr.rel (%p427) target = $region118
      $region117: #{extractive_model_forward.6} parent=5 // pred_region
        %s431 = ssub.s32 %s14, 1
        %s432 = sand.u32 %s27, 1
        %s433 = sand.u32 %s27, 1
        %s434 = smul.addr %s433, 24
        %s435 = scalar_lea.vmem [#allocation4], %s434
        // Predicated region
        $region119: #{extractive_model_forward.6} parent=117 // pred_check
          %p436 = pneg %p40
        $region120: #{extractive_model_forward.6} parent=117 // pred_check_branch
          %438 = sbr.rel (%p436) target = $region122
        $region121: #{extractive_model_forward.6} parent=117 // pred_region
          _
        $region122: #{extractive_model_forward.6} parent=117 // pred_fallthru
          _
        %s439 = sand.u32 %s55, 1
        %s440 = sand.u32 %s55, 1
        %s441 = smul.addr %s440, 24
        %s442 = scalar_lea.vmem [#allocation5], %s441
        // Predicated region
        $region123: #{extractive_model_forward.6} parent=117 // pred_check
          %p443 = pneg %p68
        $region124: #{extractive_model_forward.6} parent=117 // pred_check_branch
          %445 = sbr.rel (%p443) target = $region126
        $region125: #{extractive_model_forward.6} parent=117 // pred_region
          _
        $region126: #{extractive_model_forward.6} parent=117 // pred_fallthru
          _
        %s446 = sand.u32 %s27, 1
        %s447 = sand.u32 %s27, 1
        %s448 = smul.addr %s447, 24
        %s449 = scalar_lea.vmem [#allocation4], %s448
        %p450 = pneg %p40
        %p451 = pneg %p37
        %s452 = sand.u32 %s55, 1
        %s453 = sand.u32 %s55, 1
        %s454 = smul.addr %s453, 24
        %s455 = scalar_lea.vmem [#allocation5], %s454
        %p456 = pneg %p68
        %p457 = pneg %p65
        %p458 = pneg %p89
        %p459 = pneg %p86
        %p460 = pneg %p110
        %p461 = pneg %p107
        %p462 = pneg %p131
        %p463 = pneg %p128
        %p464 = pneg %p152
        %p465 = pneg %p149
        %p466 = pneg %p178
        %p467 = pneg %p175
        %s468 = smul.u32 4, %s19
        %p469 = scmp.lt.s32.totalorder %s468, 7
        %s470 = scalar_select %p469, %s468, 7
        %s471 = smul.addr %s470, 2
        %s472 = scalar_lea.vmem %s6, %s471
        %p473 = pneg %p206
        %p474 = pneg %p203
        %s475 = ssub.s32 1, %s19
        %s476 = smul.u32 4, %s475
        %p477 = scmp.lt.s32.totalorder %s476, 7
        %s478 = scalar_select %p477, %s476, 7
        %s479 = smul.addr %s478, 2
        %s480 = scalar_lea.vmem %s7, %s479
        %s481 = smul.u32 4, %s19
        %s482 = ssub.s32 1, %s19
        %s483 = smul.u32 4, %s482
        %s484 = smul.u32 4, %s19
        %p485 = scmp.lt.s32.totalorder %s484, 7
        %s486 = scalar_select %p485, %s484, 7
        %s487 = smul.addr %s486, 2
        %s488 = scalar_lea.vmem %s6, %s487
        %s489 = smul.u32 4, %s19
        %s490 = ssub.s32 1, %s19
        %s491 = smul.u32 4, %s490
        %p492 = scmp.lt.s32.totalorder %s491, 7
        %s493 = scalar_select %p492, %s491, 7
        %s494 = smul.addr %s493, 2
        %s495 = scalar_lea.vmem %s7, %s494
        %s496 = ssub.s32 1, %s19
        %s497 = smul.u32 4, %s496
        %p498 = scmp.eq.s32.totalorder %s19, 0
        // Predicated region
        $region127: #{extractive_model_forward.6} parent=117 // pred_check
          %p499 = pneg %p498
        $region128: #{extractive_model_forward.6} parent=117 // pred_check_branch
          %501 = sbr.rel (%p499) target = $region130
        $region129: #{extractive_model_forward.6} parent=117 // pred_region
          %vm502 = vcmask 254976
          %503 = vst.msk [vmem:[#allocation2] sm:$0x3] %vm502, 0.0
          %504 = vst.msk [vmem:[#allocation3] sm:$0x3] %vm502, 0.0
        $region130: #{extractive_model_forward.6} parent=117 // pred_fallthru
          _
        %v505 = vld [vmem:[%s2] sm:$0xff]
        %v506 = vld [vmem:[%s2 + $0x8] sm:$0xff]
        %v507 = vld [vmem:[%s2 + $0x10] sm:$0xff]
        %v508 = vld [vmem:[%s2 + $0x18] sm:$0xff]
        %v509 = vld [vmem:[%s2 + $0x20] sm:$0xff]
        %v510 = vld [vmem:[%s2 + $0x28] sm:$0xff]
        %v511 = vld [vmem:[%s2 + $0x30] sm:$0xff]
        %v512 = vld [vmem:[%s2 + $0x38] sm:$0xff]
        %v513 = vld [vmem:[%s2 + $0x40] sm:$0xff]
        %v514 = vld [vmem:[%s2 + $0x48] sm:$0xff]
        %v515 = vld [vmem:[%s2 + $0x50] sm:$0xff]
        %v516 = vld [vmem:[%s2 + $0x58] sm:$0xff]
        %v517 = vld [vmem:[%s3] sm:$0xff]
        %v518 = vld [vmem:[%s3 + $0x8] sm:$0xff]
        %v519 = vld [vmem:[%s3 + $0x10] sm:$0xff]
        %v520 = vld [vmem:[%s3 + $0x18] sm:$0xff]
        %v521 = vld [vmem:[%s3 + $0x20] sm:$0xff]
        %v522 = vld [vmem:[%s3 + $0x28] sm:$0xff]
        %v523 = vld [vmem:[%s3 + $0x30] sm:$0xff]
        %v524 = vld [vmem:[%s3 + $0x38] sm:$0xff]
        %v525 = vld [vmem:[%s3 + $0x40] sm:$0xff]
        %v526 = vld [vmem:[%s3 + $0x48] sm:$0xff]
        %v527 = vld [vmem:[%s3 + $0x50] sm:$0xff]
        %v528 = vld [vmem:[%s3 + $0x58] sm:$0xff]
        %v529 = vld [vmem:[%s4] sm:$0x1]
        %v530 = vld [vmem:[%s4 + $0x1] sm:$0x1]
        %v531 = vld [vmem:[%s4 + $0x2] sm:$0x1]
        %v532 = vld [vmem:[%s5] sm:$0x1]
        %v533 = vld [vmem:[%s5 + $0x1] sm:$0x1]
        %v534 = vld [vmem:[%s5 + $0x2] sm:$0x1]
        %v535 = vld [vmem:[#allocation2] sm:$0x3]
        %v536 = vld [vmem:[#allocation3] sm:$0x3]
        %v537 = vld [vmem:[%s435] sm:$0x3]
        %s538 = scalar_lea.vmem %s435, 8 [#allocation4]
        %v539 = vld [vmem:[%s538] sm:$0x3]
        %s540 = scalar_lea.vmem %s435, 16 [#allocation4]
        %v541 = vld [vmem:[%s540] sm:$0x3]
        %v543 = vlaneseq
        %v544 = vshrl.u32 %v543, 7
        %v545 = vsub.s32 0, %v544
        %v546 = vrot.slane %v529, %v545
        %vm548 = vcmask 261120
        %v550 = vsel %vm548, %v535, 0
        %552 = vmatprep.subr.mxu0 0.0
        %553 = vmatpush1.msra.mxu0 %v505
        %554 = vmatprep.subr.mxu0 0.0
        %555 = vmatpush1.msra.mxu0 %v506
        %556 = vmatprep.subr.mxu0 0.0
        %557 = vmatpush1.msra.mxu0 %v507
        %558 = vmatprep.subr.mxu0 0.0
        %559 = vmatpush1.msra.mxu0 %v508
        %560 = vmatprep.subr.mxu0 0.0
        %561 = vmatpush1.msra.mxu0 0.0
        %562 = vmatprep.subr.mxu0 0.0
        %563 = vmatpush1.msra.mxu0 0.0
        %564 = vmatprep.subr.mxu0 0.0
        %565 = vmatpush1.msra.mxu0 0.0
        %566 = vmatprep.subr.mxu0 0.0
        %567 = vmatpush1.msra.mxu0 0.0
        %568 = vmatprep.subr.mxu0 0.0
        %569 = vmatpush1.msra.mxu0 0.0
        %570 = vmatprep.subr.mxu0 0.0
        %571 = vmatpush1.msra.mxu0 0.0
        %572 = vmatprep.subr.mxu0 0.0
        %573 = vmatpush1.msra.mxu0 0.0
        %574 = vmatprep.subr.mxu0 0.0
        %575 = vmatpush1.msra.mxu0 0.0
        %576 = vmatprep.subr.mxu0 0.0
        %577 = vmatpush1.msra.mxu0 0.0
        %578 = vmatprep.subr.mxu0 0.0
        %579 = vmatpush1.msra.mxu0 0.0
        %580 = vmatprep.subr.mxu0 0.0
        %581 = vmatpush1.msra.mxu0 0.0
        %582 = vmatprep.subr.mxu0 0.0
        %583 = vmatpush1.msra.mxu0 0.0
        %584 = vmatprep.subr.mxu0 0.0
        %585 = vmatpush1.msra.mxu0 0.0
        %586 = vmatprep.subr.mxu0 0.0
        %587 = vmatpush1.msra.mxu0 0.0
        %588 = vmatprep.subr.mxu0 0.0
        %589 = vmatpush1.msra.mxu0 0.0
        %590 = vmatprep.subr.mxu0 0.0
        %591 = vmatpush1.msra.mxu0 0.0
        %592 = vmatprep.subr.mxu0 0.0
        %593 = vmatpush1.msra.mxu0 0.0
        %594 = vmatprep.subr.mxu0 0.0
        %595 = vmatpush1.msra.mxu0 0.0
        %596 = vmatprep.subr.mxu0 0.0
        %597 = vmatpush1.msra.mxu0 0.0
        %598 = vmatprep.subr.mxu0 0.0
        %599 = vmatpush1.msra.mxu0 0.0
        %600 = vmatprep.subr.mxu0 0.0
        %601 = vmatpush1.msra.mxu0 0.0
        %602 = vmatprep.subr.mxu0 0.0
        %603 = vmatpush1.msra.mxu0 0.0
        %604 = vmatprep.subr.mxu0 0.0
        %605 = vmatpush1.msra.mxu0 0.0
        %606 = vmatprep.subr.mxu0 0.0
        %607 = vmatpush1.msra.mxu0 0.0
        %608 = vmatprep.subr.mxu0 0.0
        %609 = vmatpush1.msra.mxu0 0.0
        %610 = vmatprep.subr.mxu0 0.0
        %611 = vmatpush1.msra.mxu0 0.0
        %612 = vmatprep.subr.mxu0 0.0
        %613 = vmatpush1.msra.mxu0 0.0
        %614 = vmatprep.subr.mxu0 0.0
        %615 = vmatpush1.msra.mxu0 0.0
        %616 = vmatprep.mubr.f32.mxu0 0.0
        %617 = vmatmul.mubr.f32.gmra.mrb[0].mxu0 %v550
        %v618 = vpop.f32.mrb[0].mxu0
        %v619 = vadd.f32 %v546, %v618
        %v620 = vpop.f32.mrb[0].mxu0
        %621 = vdwg.mxu0
        %v623 = vlaneseq
        %v624 = vshrl.u32 %v623, 7
        %v625 = vsub.s32 0, %v624
        %v626 = vrot.slane %v530, %v625
        %628 = vmatprep.subr.mxu0 0.0
        %629 = vmatpush1.msra.mxu0 %v509
        %630 = vmatprep.subr.mxu0 0.0
        %631 = vmatpush1.msra.mxu0 %v510
        %632 = vmatprep.subr.mxu0 0.0
        %633 = vmatpush1.msra.mxu0 %v511
        %634 = vmatprep.subr.mxu0 0.0
        %635 = vmatpush1.msra.mxu0 %v512
        %636 = vmatprep.subr.mxu0 0.0
        %637 = vmatpush1.msra.mxu0 0.0
        %638 = vmatprep.subr.mxu0 0.0
        %639 = vmatpush1.msra.mxu0 0.0
        %640 = vmatprep.subr.mxu0 0.0
        %641 = vmatpush1.msra.mxu0 0.0
        %642 = vmatprep.subr.mxu0 0.0
        %643 = vmatpush1.msra.mxu0 0.0
        %644 = vmatprep.subr.mxu0 0.0
        %645 = vmatpush1.msra.mxu0 0.0
        %646 = vmatprep.subr.mxu0 0.0
        %647 = vmatpush1.msra.mxu0 0.0
        %648 = vmatprep.subr.mxu0 0.0
        %649 = vmatpush1.msra.mxu0 0.0
        %650 = vmatprep.subr.mxu0 0.0
        %651 = vmatpush1.msra.mxu0 0.0
        %652 = vmatprep.subr.mxu0 0.0
        %653 = vmatpush1.msra.mxu0 0.0
        %654 = vmatprep.subr.mxu0 0.0
        %655 = vmatpush1.msra.mxu0 0.0
        %656 = vmatprep.subr.mxu0 0.0
        %657 = vmatpush1.msra.mxu0 0.0
        %658 = vmatprep.subr.mxu0 0.0
        %659 = vmatpush1.msra.mxu0 0.0
        %660 = vmatprep.subr.mxu0 0.0
        %661 = vmatpush1.msra.mxu0 0.0
        %662 = vmatprep.subr.mxu0 0.0
        %663 = vmatpush1.msra.mxu0 0.0
        %664 = vmatprep.subr.mxu0 0.0
        %665 = vmatpush1.msra.mxu0 0.0
        %666 = vmatprep.subr.mxu0 0.0
        %667 = vmatpush1.msra.mxu0 0.0
        %668 = vmatprep.subr.mxu0 0.0
        %669 = vmatpush1.msra.mxu0 0.0
        %670 = vmatprep.subr.mxu0 0.0
        %671 = vmatpush1.msra.mxu0 0.0
        %672 = vmatprep.subr.mxu0 0.0
        %673 = vmatpush1.msra.mxu0 0.0
        %674 = vmatprep.subr.mxu0 0.0
        %675 = vmatpush1.msra.mxu0 0.0
        %676 = vmatprep.subr.mxu0 0.0
        %677 = vmatpush1.msra.mxu0 0.0
        %678 = vmatprep.subr.mxu0 0.0
        %679 = vmatpush1.msra.mxu0 0.0
        %680 = vmatprep.subr.mxu0 0.0
        %681 = vmatpush1.msra.mxu0 0.0
        %682 = vmatprep.subr.mxu0 0.0
        %683 = vmatpush1.msra.mxu0 0.0
        %684 = vmatprep.subr.mxu0 0.0
        %685 = vmatpush1.msra.mxu0 0.0
        %686 = vmatprep.subr.mxu0 0.0
        %687 = vmatpush1.msra.mxu0 0.0
        %688 = vmatprep.subr.mxu0 0.0
        %689 = vmatpush1.msra.mxu0 0.0
        %690 = vmatprep.subr.mxu0 0.0
        %691 = vmatpush1.msra.mxu0 0.0
        %692 = vmatprep.mubr.f32.mxu0 0.0
        %693 = vmatmul.mubr.f32.gmra.mrb[0].mxu0 %v550
        %v694 = vpop.f32.mrb[0].mxu0
        %v695 = vadd.f32 %v626, %v694
        %v696 = vpop.f32.mrb[0].mxu0
        %697 = vdwg.mxu0
        %v699 = vlaneseq
        %v700 = vshrl.u32 %v699, 7
        %v701 = vsub.s32 0, %v700
        %v702 = vrot.slane %v531, %v701
        %704 = vmatprep.subr.mxu0 0.0
        %705 = vmatpush1.msra.mxu0 %v513
        %706 = vmatprep.subr.mxu0 0.0
        %707 = vmatpush1.msra.mxu0 %v514
        %708 = vmatprep.subr.mxu0 0.0
        %709 = vmatpush1.msra.mxu0 %v515
        %710 = vmatprep.subr.mxu0 0.0
        %711 = vmatpush1.msra.mxu0 %v516
        %712 = vmatprep.subr.mxu0 0.0
        %713 = vmatpush1.msra.mxu0 0.0
        %714 = vmatprep.subr.mxu0 0.0
        %715 = vmatpush1.msra.mxu0 0.0
        %716 = vmatprep.subr.mxu0 0.0
        %717 = vmatpush1.msra.mxu0 0.0
        %718 = vmatprep.subr.mxu0 0.0
        %719 = vmatpush1.msra.mxu0 0.0
        %720 = vmatprep.subr.mxu0 0.0
        %721 = vmatpush1.msra.mxu0 0.0
        %722 = vmatprep.subr.mxu0 0.0
        %723 = vmatpush1.msra.mxu0 0.0
        %724 = vmatprep.subr.mxu0 0.0
        %725 = vmatpush1.msra.mxu0 0.0
        %726 = vmatprep.subr.mxu0 0.0
        %727 = vmatpush1.msra.mxu0 0.0
        %728 = vmatprep.subr.mxu0 0.0
        %729 = vmatpush1.msra.mxu0 0.0
        %730 = vmatprep.subr.mxu0 0.0
        %731 = vmatpush1.msra.mxu0 0.0
        %732 = vmatprep.subr.mxu0 0.0
        %733 = vmatpush1.msra.mxu0 0.0
        %734 = vmatprep.subr.mxu0 0.0
        %735 = vmatpush1.msra.mxu0 0.0
        %736 = vmatprep.subr.mxu0 0.0
        %737 = vmatpush1.msra.mxu0 0.0
        %738 = vmatprep.subr.mxu0 0.0
        %739 = vmatpush1.msra.mxu0 0.0
        %740 = vmatprep.subr.mxu0 0.0
        %741 = vmatpush1.msra.mxu0 0.0
        %742 = vmatprep.subr.mxu0 0.0
        %743 = vmatpush1.msra.mxu0 0.0
        %744 = vmatprep.subr.mxu0 0.0
        %745 = vmatpush1.msra.mxu0 0.0
        %746 = vmatprep.subr.mxu0 0.0
        %747 = vmatpush1.msra.mxu0 0.0
        %748 = vmatprep.subr.mxu0 0.0
        %749 = vmatpush1.msra.mxu0 0.0
        %750 = vmatprep.subr.mxu0 0.0
        %751 = vmatpush1.msra.mxu0 0.0
        %752 = vmatprep.subr.mxu0 0.0
        %753 = vmatpush1.msra.mxu0 0.0
        %754 = vmatprep.subr.mxu0 0.0
        %755 = vmatpush1.msra.mxu0 0.0
        %756 = vmatprep.subr.mxu0 0.0
        %757 = vmatpush1.msra.mxu0 0.0
        %758 = vmatprep.subr.mxu0 0.0
        %759 = vmatpush1.msra.mxu0 0.0
        %760 = vmatprep.subr.mxu0 0.0
        %761 = vmatpush1.msra.mxu0 0.0
        %762 = vmatprep.subr.mxu0 0.0
        %763 = vmatpush1.msra.mxu0 0.0
        %764 = vmatprep.subr.mxu0 0.0
        %765 = vmatpush1.msra.mxu0 0.0
        %766 = vmatprep.subr.mxu0 0.0
        %767 = vmatpush1.msra.mxu0 0.0
        %768 = vmatprep.mubr.f32.mxu0 0.0
        %769 = vmatmul.mubr.f32.gmra.mrb[0].mxu0 %v550
        %v770 = vpop.f32.mrb[0].mxu0
        %v771 = vadd.f32 %v702, %v770
        %v772 = vpop.f32.mrb[0].mxu0
        %773 = vdwg.mxu0
        %v774 = vadd.f32 %v537, %v619
        %v775 = vxor.u32 %v774, 2147483648
        %v776 = vmul.f32 %v775, 1.442695
        %v777 = vpow.pop %v776
        %v778 = vadd.f32 %v777, 1.0
        %v779 = vrcp.pop %v778
        %v780 = vmul.f32 1.0, %v779
        %v781 = vadd.f32 %v539, %v695
        %v782 = vxor.u32 %v781, 2147483648
        %v783 = vmul.f32 %v782, 1.442695
        %v784 = vpow.pop %v783
        %v785 = vadd.f32 %v784, 1.0
        %v786 = vrcp.pop %v785
        %v787 = vmul.f32 1.0, %v786
        %v788 = vmul.f32 %v780, %v771
        %v789 = vadd.f32 %v541, %v788
        %v790 = vtanh.pop %v789
        %v791 = vsub.f32 1.0, %v787
        %v792 = vmul.f32 %v791, %v790
        %v793 = vmul.f32 %v787, %v535
        %v794 = vadd.f32 %v792, %v793
        %vm795 = vcmask 254976
        %796 = vst.msk [vmem:[%s488] sm:$0x3] %vm795, %v794
        %s797 = scalar_lea.vmem %s442, 6 [#allocation5]
        %v798 = vld [vmem:[%s797] sm:$0x3]
        %s799 = scalar_lea.vmem %s442, 14 [#allocation5]
        %v800 = vld [vmem:[%s799] sm:$0x3]
        %s801 = scalar_lea.vmem %s442, 22 [#allocation5]
        %v802 = vld [vmem:[%s801] sm:$0x3]
        %v804 = vlaneseq
        %v805 = vshrl.u32 %v804, 7
        %v806 = vsub.s32 0, %v805
        %v807 = vrot.slane %v532, %v806
        %v810 = vsel %vm548, %v536, 0
        %812 = vmatprep.subr.mxu0 0.0
        %813 = vmatpush1.msra.mxu0 %v517
        %814 = vmatprep.subr.mxu0 0.0
        %815 = vmatpush1.msra.mxu0 %v518
        %816 = vmatprep.subr.mxu0 0.0
        %817 = vmatpush1.msra.mxu0 %v519
        %818 = vmatprep.subr.mxu0 0.0
        %819 = vmatpush1.msra.mxu0 %v520
        %820 = vmatprep.subr.mxu0 0.0
        %821 = vmatpush1.msra.mxu0 0.0
        %822 = vmatprep.subr.mxu0 0.0
        %823 = vmatpush1.msra.mxu0 0.0
        %824 = vmatprep.subr.mxu0 0.0
        %825 = vmatpush1.msra.mxu0 0.0
        %826 = vmatprep.subr.mxu0 0.0
        %827 = vmatpush1.msra.mxu0 0.0
        %828 = vmatprep.subr.mxu0 0.0
        %829 = vmatpush1.msra.mxu0 0.0
        %830 = vmatprep.subr.mxu0 0.0
        %831 = vmatpush1.msra.mxu0 0.0
        %832 = vmatprep.subr.mxu0 0.0
        %833 = vmatpush1.msra.mxu0 0.0
        %834 = vmatprep.subr.mxu0 0.0
        %835 = vmatpush1.msra.mxu0 0.0
        %836 = vmatprep.subr.mxu0 0.0
        %837 = vmatpush1.msra.mxu0 0.0
        %838 = vmatprep.subr.mxu0 0.0
        %839 = vmatpush1.msra.mxu0 0.0
        %840 = vmatprep.subr.mxu0 0.0
        %841 = vmatpush1.msra.mxu0 0.0
        %842 = vmatprep.subr.mxu0 0.0
        %843 = vmatpush1.msra.mxu0 0.0
        %844 = vmatprep.subr.mxu0 0.0
        %845 = vmatpush1.msra.mxu0 0.0
        %846 = vmatprep.subr.mxu0 0.0
        %847 = vmatpush1.msra.mxu0 0.0
        %848 = vmatprep.subr.mxu0 0.0
        %849 = vmatpush1.msra.mxu0 0.0
        %850 = vmatprep.subr.mxu0 0.0
        %851 = vmatpush1.msra.mxu0 0.0
        %852 = vmatprep.subr.mxu0 0.0
        %853 = vmatpush1.msra.mxu0 0.0
        %854 = vmatprep.subr.mxu0 0.0
        %855 = vmatpush1.msra.mxu0 0.0
        %856 = vmatprep.subr.mxu0 0.0
        %857 = vmatpush1.msra.mxu0 0.0
        %858 = vmatprep.subr.mxu0 0.0
        %859 = vmatpush1.msra.mxu0 0.0
        %860 = vmatprep.subr.mxu0 0.0
        %861 = vmatpush1.msra.mxu0 0.0
        %862 = vmatprep.subr.mxu0 0.0
        %863 = vmatpush1.msra.mxu0 0.0
        %864 = vmatprep.subr.mxu0 0.0
        %865 = vmatpush1.msra.mxu0 0.0
        %866 = vmatprep.subr.mxu0 0.0
        %867 = vmatpush1.msra.mxu0 0.0
        %868 = vmatprep.subr.mxu0 0.0
        %869 = vmatpush1.msra.mxu0 0.0
        %870 = vmatprep.subr.mxu0 0.0
        %871 = vmatpush1.msra.mxu0 0.0
        %872 = vmatprep.subr.mxu0 0.0
        %873 = vmatpush1.msra.mxu0 0.0
        %874 = vmatprep.subr.mxu0 0.0
        %875 = vmatpush1.msra.mxu0 0.0
        %876 = vmatprep.mubr.f32.mxu0 0.0
        %877 = vmatmul.mubr.f32.gmra.mrb[0].mxu0 %v810
        %v878 = vpop.f32.mrb[0].mxu0
        %v879 = vadd.f32 %v807, %v878
        %v880 = vpop.f32.mrb[0].mxu0
        %881 = vdwg.mxu0
        %v883 = vlaneseq
        %v884 = vshrl.u32 %v883, 7
        %v885 = vsub.s32 0, %v884
        %v886 = vrot.slane %v533, %v885
        %888 = vmatprep.subr.mxu0 0.0
        %889 = vmatpush1.msra.mxu0 %v521
        %890 = vmatprep.subr.mxu0 0.0
        %891 = vmatpush1.msra.mxu0 %v522
        %892 = vmatprep.subr.mxu0 0.0
        %893 = vmatpush1.msra.mxu0 %v523
        %894 = vmatprep.subr.mxu0 0.0
        %895 = vmatpush1.msra.mxu0 %v524
        %896 = vmatprep.subr.mxu0 0.0
        %897 = vmatpush1.msra.mxu0 0.0
        %898 = vmatprep.subr.mxu0 0.0
        %899 = vmatpush1.msra.mxu0 0.0
        %900 = vmatprep.subr.mxu0 0.0
        %901 = vmatpush1.msra.mxu0 0.0
        %902 = vmatprep.subr.mxu0 0.0
        %903 = vmatpush1.msra.mxu0 0.0
        %904 = vmatprep.subr.mxu0 0.0
        %905 = vmatpush1.msra.mxu0 0.0
        %906 = vmatprep.subr.mxu0 0.0
        %907 = vmatpush1.msra.mxu0 0.0
        %908 = vmatprep.subr.mxu0 0.0
        %909 = vmatpush1.msra.mxu0 0.0
        %910 = vmatprep.subr.mxu0 0.0
        %911 = vmatpush1.msra.mxu0 0.0
        %912 = vmatprep.subr.mxu0 0.0
        %913 = vmatpush1.msra.mxu0 0.0
        %914 = vmatprep.subr.mxu0 0.0
        %915 = vmatpush1.msra.mxu0 0.0
        %916 = vmatprep.subr.mxu0 0.0
        %917 = vmatpush1.msra.mxu0 0.0
        %918 = vmatprep.subr.mxu0 0.0
        %919 = vmatpush1.msra.mxu0 0.0
        %920 = vmatprep.subr.mxu0 0.0
        %921 = vmatpush1.msra.mxu0 0.0
        %922 = vmatprep.subr.mxu0 0.0
        %923 = vmatpush1.msra.mxu0 0.0
        %924 = vmatprep.subr.mxu0 0.0
        %925 = vmatpush1.msra.mxu0 0.0
        %926 = vmatprep.subr.mxu0 0.0
        %927 = vmatpush1.msra.mxu0 0.0
        %928 = vmatprep.subr.mxu0 0.0
        %929 = vmatpush1.msra.mxu0 0.0
        %930 = vmatprep.subr.mxu0 0.0
        %931 = vmatpush1.msra.mxu0 0.0
        %932 = vmatprep.subr.mxu0 0.0
        %933 = vmatpush1.msra.mxu0 0.0
        %934 = vmatprep.subr.mxu0 0.0
        %935 = vmatpush1.msra.mxu0 0.0
        %936 = vmatprep.subr.mxu0 0.0
        %937 = vmatpush1.msra.mxu0 0.0
        %938 = vmatprep.subr.mxu0 0.0
        %939 = vmatpush1.msra.mxu0 0.0
        %940 = vmatprep.subr.mxu0 0.0
        %941 = vmatpush1.msra.mxu0 0.0
        %942 = vmatprep.subr.mxu0 0.0
        %943 = vmatpush1.msra.mxu0 0.0
        %944 = vmatprep.subr.mxu0 0.0
        %945 = vmatpush1.msra.mxu0 0.0
        %946 = vmatprep.subr.mxu0 0.0
        %947 = vmatpush1.msra.mxu0 0.0
        %948 = vmatprep.subr.mxu0 0.0
        %949 = vmatpush1.msra.mxu0 0.0
        %950 = vmatprep.subr.mxu0 0.0
        %951 = vmatpush1.msra.mxu0 0.0
        %952 = vmatprep.mubr.f32.mxu0 0.0
        %953 = vmatmul.mubr.f32.gmra.mrb[0].mxu0 %v810
        %v954 = vpop.f32.mrb[0].mxu0
        %v955 = vadd.f32 %v886, %v954
        %v956 = vpop.f32.mrb[0].mxu0
        %957 = vdwg.mxu0
        %v959 = vlaneseq
        %v960 = vshrl.u32 %v959, 7
        %v961 = vsub.s32 0, %v960
        %v962 = vrot.slane %v534, %v961
        %964 = vmatprep.subr.mxu0 0.0
        %965 = vmatpush1.msra.mxu0 %v525
        %966 = vmatprep.subr.mxu0 0.0
        %967 = vmatpush1.msra.mxu0 %v526
        %968 = vmatprep.subr.mxu0 0.0
        %969 = vmatpush1.msra.mxu0 %v527
        %970 = vmatprep.subr.mxu0 0.0
        %971 = vmatpush1.msra.mxu0 %v528
        %972 = vmatprep.subr.mxu0 0.0
        %973 = vmatpush1.msra.mxu0 0.0
        %974 = vmatprep.subr.mxu0 0.0
        %975 = vmatpush1.msra.mxu0 0.0
        %976 = vmatprep.subr.mxu0 0.0
        %977 = vmatpush1.msra.mxu0 0.0
        %978 = vmatprep.subr.mxu0 0.0
        %979 = vmatpush1.msra.mxu0 0.0
        %980 = vmatprep.subr.mxu0 0.0
        %981 = vmatpush1.msra.mxu0 0.0
        %982 = vmatprep.subr.mxu0 0.0
        %983 = vmatpush1.msra.mxu0 0.0
        %984 = vmatprep.subr.mxu0 0.0
        %985 = vmatpush1.msra.mxu0 0.0
        %986 = vmatprep.subr.mxu0 0.0
        %987 = vmatpush1.msra.mxu0 0.0
        %988 = vmatprep.subr.mxu0 0.0
        %989 = vmatpush1.msra.mxu0 0.0
        %990 = vmatprep.subr.mxu0 0.0
        %991 = vmatpush1.msra.mxu0 0.0
        %992 = vmatprep.subr.mxu0 0.0
        %993 = vmatpush1.msra.mxu0 0.0
        %994 = vmatprep.subr.mxu0 0.0
        %995 = vmatpush1.msra.mxu0 0.0
        %996 = vmatprep.subr.mxu0 0.0
        %997 = vmatpush1.msra.mxu0 0.0
        %998 = vmatprep.subr.mxu0 0.0
        %999 = vmatpush1.msra.mxu0 0.0
        %1000 = vmatprep.subr.mxu0 0.0
        %1001 = vmatpush1.msra.mxu0 0.0
        %1002 = vmatprep.subr.mxu0 0.0
        %1003 = vmatpush1.msra.mxu0 0.0
        %1004 = vmatprep.subr.mxu0 0.0
        %1005 = vmatpush1.msra.mxu0 0.0
        %1006 = vmatprep.subr.mxu0 0.0
        %1007 = vmatpush1.msra.mxu0 0.0
        %1008 = vmatprep.subr.mxu0 0.0
        %1009 = vmatpush1.msra.mxu0 0.0
        %1010 = vmatprep.subr.mxu0 0.0
        %1011 = vmatpush1.msra.mxu0 0.0
        %1012 = vmatprep.subr.mxu0 0.0
        %1013 = vmatpush1.msra.mxu0 0.0
        %1014 = vmatprep.subr.mxu0 0.0
        %1015 = vmatpush1.msra.mxu0 0.0
        %1016 = vmatprep.subr.mxu0 0.0
        %1017 = vmatpush1.msra.mxu0 0.0
        %1018 = vmatprep.subr.mxu0 0.0
        %1019 = vmatpush1.msra.mxu0 0.0
        %1020 = vmatprep.subr.mxu0 0.0
        %1021 = vmatpush1.msra.mxu0 0.0
        %1022 = vmatprep.subr.mxu0 0.0
        %1023 = vmatpush1.msra.mxu0 0.0
        %1024 = vmatprep.subr.mxu0 0.0
        %1025 = vmatpush1.msra.mxu0 0.0
        %1026 = vmatprep.subr.mxu0 0.0
        %1027 = vmatpush1.msra.mxu0 0.0
        %1028 = vmatprep.mubr.f32.mxu0 0.0
        %1029 = vmatmul.mubr.f32.gmra.mrb[0].mxu0 %v810
        %v1030 = vpop.f32.mrb[0].mxu0
        %v1031 = vadd.f32 %v962, %v1030
        %v1032 = vpop.f32.mrb[0].mxu0
        %1033 = vdwg.mxu0
        %v1034 = vadd.f32 %v798, %v879
        %v1035 = vxor.u32 %v1034, 2147483648
        %v1036 = vmul.f32 %v1035, 1.442695
        %v1037 = vpow.pop %v1036
        %v1038 = vadd.f32 %v1037, 1.0
        %v1039 = vrcp.pop %v1038
        %v1040 = vmul.f32 1.0, %v1039
        %v1041 = vadd.f32 %v800, %v955
        %v1042 = vxor.u32 %v1041, 2147483648
        %v1043 = vmul.f32 %v1042, 1.442695
        %v1044 = vpow.pop %v1043
        %v1045 = vadd.f32 %v1044, 1.0
        %v1046 = vrcp.pop %v1045
        %v1047 = vmul.f32 1.0, %v1046
        %v1048 = vmul.f32 %v1040, %v1031
        %v1049 = vadd.f32 %v802, %v1048
        %v1050 = vtanh.pop %v1049
        %v1051 = vsub.f32 1.0, %v1047
        %v1052 = vmul.f32 %v1051, %v1050
        %v1053 = vmul.f32 %v1047, %v536
        %v1054 = vadd.f32 %v1052, %v1053
        %s1055 = scalar_lea.vmem %s495, 6
        %1056 = vst.msk [vmem:[%s1055] sm:$0x3] %vm795, %v1054
        %s1057 = scalar_lea.vmem %s435, 2 [#allocation4]
        %v1058 = vld [vmem:[%s1057] sm:$0x3]
        %s1059 = scalar_lea.vmem %s435, 10 [#allocation4]
        %v1060 = vld [vmem:[%s1059] sm:$0x3]
        %s1061 = scalar_lea.vmem %s435, 18 [#allocation4]
        %v1062 = vld [vmem:[%s1061] sm:$0x3]
        %v1064 = vsel %vm548, %v794, 0
        %1066 = vmatprep.subr.mxu0 0.0
        %1067 = vmatpush1.msra.mxu0 %v505
        %1068 = vmatprep.subr.mxu0 0.0
        %1069 = vmatpush1.msra.mxu0 %v506
        %1070 = vmatprep.subr.mxu0 0.0
        %1071 = vmatpush1.msra.mxu0 %v507
        %1072 = vmatprep.subr.mxu0 0.0
        %1073 = vmatpush1.msra.mxu0 %v508
        %1074 = vmatprep.subr.mxu0 0.0
        %1075 = vmatpush1.msra.mxu0 0.0
        %1076 = vmatprep.subr.mxu0 0.0
        %1077 = vmatpush1.msra.mxu0 0.0
        %1078 = vmatprep.subr.mxu0 0.0
        %1079 = vmatpush1.msra.mxu0 0.0
        %1080 = vmatprep.subr.mxu0 0.0
        %1081 = vmatpush1.msra.mxu0 0.0
        %1082 = vmatprep.subr.mxu0 0.0
        %1083 = vmatpush1.msra.mxu0 0.0
        %1084 = vmatprep.subr.mxu0 0.0
        %1085 = vmatpush1.msra.mxu0 0.0
        %1086 = vmatprep.subr.mxu0 0.0
        %1087 = vmatpush1.msra.mxu0 0.0
        %1088 = vmatprep.subr.mxu0 0.0
        %1089 = vmatpush1.msra.mxu0 0.0
        %1090 = vmatprep.subr.mxu0 0.0
        %1091 = vmatpush1.msra.mxu0 0.0
        %1092 = vmatprep.subr.mxu0 0.0
        %1093 = vmatpush1.msra.mxu0 0.0
        %1094 = vmatprep.subr.mxu0 0.0
        %1095 = vmatpush1.msra.mxu0 0.0
        %1096 = vmatprep.subr.mxu0 0.0
        %1097 = vmatpush1.msra.mxu0 0.0
        %1098 = vmatprep.subr.mxu0 0.0
        %1099 = vmatpush1.msra.mxu0 0.0
        %1100 = vmatprep.subr.mxu0 0.0
        %1101 = vmatpush1.msra.mxu0 0.0
        %1102 = vmatprep.subr.mxu0 0.0
        %1103 = vmatpush1.msra.mxu0 0.0
        %1104 = vmatprep.subr.mxu0 0.0
        %1105 = vmatpush1.msra.mxu0 0.0
        %1106 = vmatprep.subr.mxu0 0.0
        %1107 = vmatpush1.msra.mxu0 0.0
        %1108 = vmatprep.subr.mxu0 0.0
        %1109 = vmatpush1.msra.mxu0 0.0
        %1110 = vmatprep.subr.mxu0 0.0
        %1111 = vmatpush1.msra.mxu0 0.0
        %1112 = vmatprep.subr.mxu0 0.0
        %1113 = vmatpush1.msra.mxu0 0.0
        %1114 = vmatprep.subr.mxu0 0.0
        %1115 = vmatpush1.msra.mxu0 0.0
        %1116 = vmatprep.subr.mxu0 0.0
        %1117 = vmatpush1.msra.mxu0 0.0
        %1118 = vmatprep.subr.mxu0 0.0
        %1119 = vmatpush1.msra.mxu0 0.0
        %1120 = vmatprep.subr.mxu0 0.0
        %1121 = vmatpush1.msra.mxu0 0.0
        %1122 = vmatprep.subr.mxu0 0.0
        %1123 = vmatpush1.msra.mxu0 0.0
        %1124 = vmatprep.subr.mxu0 0.0
        %1125 = vmatpush1.msra.mxu0 0.0
        %1126 = vmatprep.subr.mxu0 0.0
        %1127 = vmatpush1.msra.mxu0 0.0
        %1128 = vmatprep.subr.mxu0 0.0
        %1129 = vmatpush1.msra.mxu0 0.0
        %1130 = vmatprep.mubr.f32.mxu0 0.0
        %1131 = vmatmul.mubr.f32.gmra.mrb[0].mxu0 %v1064
        %v1132 = vpop.f32.mrb[0].mxu0
        %v1133 = vadd.f32 %v546, %v1132
        %v1134 = vpop.f32.mrb[0].mxu0
        %1135 = vdwg.mxu0
        %1136 = vmatprep.subr.mxu0 0.0
        %1137 = vmatpush1.msra.mxu0 %v509
        %1138 = vmatprep.subr.mxu0 0.0
        %1139 = vmatpush1.msra.mxu0 %v510
        %1140 = vmatprep.subr.mxu0 0.0
        %1141 = vmatpush1.msra.mxu0 %v511
        %1142 = vmatprep.subr.mxu0 0.0
        %1143 = vmatpush1.msra.mxu0 %v512
        %1144 = vmatprep.subr.mxu0 0.0
        %1145 = vmatpush1.msra.mxu0 0.0
        %1146 = vmatprep.subr.mxu0 0.0
        %1147 = vmatpush1.msra.mxu0 0.0
        %1148 = vmatprep.subr.mxu0 0.0
        %1149 = vmatpush1.msra.mxu0 0.0
        %1150 = vmatprep.subr.mxu0 0.0
        %1151 = vmatpush1.msra.mxu0 0.0
        %1152 = vmatprep.subr.mxu0 0.0
        %1153 = vmatpush1.msra.mxu0 0.0
        %1154 = vmatprep.subr.mxu0 0.0
        %1155 = vmatpush1.msra.mxu0 0.0
        %1156 = vmatprep.subr.mxu0 0.0
        %1157 = vmatpush1.msra.mxu0 0.0
        %1158 = vmatprep.subr.mxu0 0.0
        %1159 = vmatpush1.msra.mxu0 0.0
        %1160 = vmatprep.subr.mxu0 0.0
        %1161 = vmatpush1.msra.mxu0 0.0
        %1162 = vmatprep.subr.mxu0 0.0
        %1163 = vmatpush1.msra.mxu0 0.0
        %1164 = vmatprep.subr.mxu0 0.0
        %1165 = vmatpush1.msra.mxu0 0.0
        %1166 = vmatprep.subr.mxu0 0.0
        %1167 = vmatpush1.msra.mxu0 0.0
        %1168 = vmatprep.subr.mxu0 0.0
        %1169 = vmatpush1.msra.mxu0 0.0
        %1170 = vmatprep.subr.mxu0 0.0
        %1171 = vmatpush1.msra.mxu0 0.0
        %1172 = vmatprep.subr.mxu0 0.0
        %1173 = vmatpush1.msra.mxu0 0.0
        %1174 = vmatprep.subr.mxu0 0.0
        %1175 = vmatpush1.msra.mxu0 0.0
        %1176 = vmatprep.subr.mxu0 0.0
        %1177 = vmatpush1.msra.mxu0 0.0
        %1178 = vmatprep.subr.mxu0 0.0
        %1179 = vmatpush1.msra.mxu0 0.0
        %1180 = vmatprep.subr.mxu0 0.0
        %1181 = vmatpush1.msra.mxu0 0.0
        %1182 = vmatprep.subr.mxu0 0.0
        %1183 = vmatpush1.msra.mxu0 0.0
        %1184 = vmatprep.subr.mxu0 0.0
        %1185 = vmatpush1.msra.mxu0 0.0
        %1186 = vmatprep.subr.mxu0 0.0
        %1187 = vmatpush1.msra.mxu0 0.0
        %1188 = vmatprep.subr.mxu0 0.0
        %1189 = vmatpush1.msra.mxu0 0.0
        %1190 = vmatprep.subr.mxu0 0.0
        %1191 = vmatpush1.msra.mxu0 0.0
        %1192 = vmatprep.subr.mxu0 0.0
        %1193 = vmatpush1.msra.mxu0 0.0
        %1194 = vmatprep.subr.mxu0 0.0
        %1195 = vmatpush1.msra.mxu0 0.0
        %1196 = vmatprep.subr.mxu0 0.0
        %1197 = vmatpush1.msra.mxu0 0.0
        %1198 = vmatprep.subr.mxu0 0.0
        %1199 = vmatpush1.msra.mxu0 0.0
        %1200 = vmatprep.mubr.f32.mxu0 0.0
        %1201 = vmatmul.mubr.f32.gmra.mrb[0].mxu0 %v1064
        %v1202 = vpop.f32.mrb[0].mxu0
        %v1203 = vadd.f32 %v626, %v1202
        %v1204 = vpop.f32.mrb[0].mxu0
        %1205 = vdwg.mxu0
        %1206 = vmatprep.subr.mxu0 0.0
        %1207 = vmatpush1.msra.mxu0 %v513
        %1208 = vmatprep.subr.mxu0 0.0
        %1209 = vmatpush1.msra.mxu0 %v514
        %1210 = vmatprep.subr.mxu0 0.0
        %1211 = vmatpush1.msra.mxu0 %v515
        %1212 = vmatprep.subr.mxu0 0.0
        %1213 = vmatpush1.msra.mxu0 %v516
        %1214 = vmatprep.subr.mxu0 0.0
        %1215 = vmatpush1.msra.mxu0 0.0
        %1216 = vmatprep.subr.mxu0 0.0
        %1217 = vmatpush1.msra.mxu0 0.0
        %1218 = vmatprep.subr.mxu0 0.0
        %1219 = vmatpush1.msra.mxu0 0.0
        %1220 = vmatprep.subr.mxu0 0.0
        %1221 = vmatpush1.msra.mxu0 0.0
        %1222 = vmatprep.subr.mxu0 0.0
        %1223 = vmatpush1.msra.mxu0 0.0
        %1224 = vmatprep.subr.mxu0 0.0
        %1225 = vmatpush1.msra.mxu0 0.0
        %1226 = vmatprep.subr.mxu0 0.0
        %1227 = vmatpush1.msra.mxu0 0.0
        %1228 = vmatprep.subr.mxu0 0.0
        %1229 = vmatpush1.msra.mxu0 0.0
        %1230 = vmatprep.subr.mxu0 0.0
        %1231 = vmatpush1.msra.mxu0 0.0
        %1232 = vmatprep.subr.mxu0 0.0
        %1233 = vmatpush1.msra.mxu0 0.0
        %1234 = vmatprep.subr.mxu0 0.0
        %1235 = vmatpush1.msra.mxu0 0.0
        %1236 = vmatprep.subr.mxu0 0.0
        %1237 = vmatpush1.msra.mxu0 0.0
        %1238 = vmatprep.subr.mxu0 0.0
        %1239 = vmatpush1.msra.mxu0 0.0
        %1240 = vmatprep.subr.mxu0 0.0
        %1241 = vmatpush1.msra.mxu0 0.0
        %1242 = vmatprep.subr.mxu0 0.0
        %1243 = vmatpush1.msra.mxu0 0.0
        %1244 = vmatprep.subr.mxu0 0.0
        %1245 = vmatpush1.msra.mxu0 0.0
        %1246 = vmatprep.subr.mxu0 0.0
        %1247 = vmatpush1.msra.mxu0 0.0
        %1248 = vmatprep.subr.mxu0 0.0
        %1249 = vmatpush1.msra.mxu0 0.0
        %1250 = vmatprep.subr.mxu0 0.0
        %1251 = vmatpush1.msra.mxu0 0.0
        %1252 = vmatprep.subr.mxu0 0.0
        %1253 = vmatpush1.msra.mxu0 0.0
        %1254 = vmatprep.subr.mxu0 0.0
        %1255 = vmatpush1.msra.mxu0 0.0
        %1256 = vmatprep.subr.mxu0 0.0
        %1257 = vmatpush1.msra.mxu0 0.0
        %1258 = vmatprep.subr.mxu0 0.0
        %1259 = vmatpush1.msra.mxu0 0.0
        %1260 = vmatprep.subr.mxu0 0.0
        %1261 = vmatpush1.msra.mxu0 0.0
        %1262 = vmatprep.subr.mxu0 0.0
        %1263 = vmatpush1.msra.mxu0 0.0
        %1264 = vmatprep.subr.mxu0 0.0
        %1265 = vmatpush1.msra.mxu0 0.0
        %1266 = vmatprep.subr.mxu0 0.0
        %1267 = vmatpush1.msra.mxu0 0.0
        %1268 = vmatprep.subr.mxu0 0.0
        %1269 = vmatpush1.msra.mxu0 0.0
        %1270 = vmatprep.mubr.f32.mxu0 0.0
        %1271 = vmatmul.mubr.f32.gmra.mrb[0].mxu0 %v1064
        %v1272 = vpop.f32.mrb[0].mxu0
        %v1273 = vadd.f32 %v702, %v1272
        %v1274 = vpop.f32.mrb[0].mxu0
        %1275 = vdwg.mxu0
        %v1276 = vadd.f32 %v1058, %v1133
        %v1277 = vxor.u32 %v1276, 2147483648
        %v1278 = vmul.f32 %v1277, 1.442695
        %v1279 = vpow.pop %v1278
        %v1280 = vadd.f32 %v1279, 1.0
        %v1281 = vrcp.pop %v1280
        %v1282 = vmul.f32 1.0, %v1281
        %v1283 = vadd.f32 %v1060, %v1203
        %v1284 = vxor.u32 %v1283, 2147483648
        %v1285 = vmul.f32 %v1284, 1.442695
        %v1286 = vpow.pop %v1285
        %v1287 = vadd.f32 %v1286, 1.0
        %v1288 = vrcp.pop %v1287
        %v1289 = vmul.f32 1.0, %v1288
        %v1290 = vmul.f32 %v1282, %v1273
        %v1291 = vadd.f32 %v1062, %v1290
        %v1292 = vtanh.pop %v1291
        %v1293 = vsub.f32 1.0, %v1289
        %v1294 = vmul.f32 %v1293, %v1292
        %v1295 = vmul.f32 %v1289, %v794
        %v1296 = vadd.f32 %v1294, %v1295
        %s1297 = scalar_lea.vmem %s488, 2
        %1298 = vst.msk [vmem:[%s1297] sm:$0x3] %vm795, %v1296
        %s1299 = scalar_lea.vmem %s442, 4 [#allocation5]
        %v1300 = vld [vmem:[%s1299] sm:$0x3]
        %s1301 = scalar_lea.vmem %s442, 12 [#allocation5]
        %v1302 = vld [vmem:[%s1301] sm:$0x3]
        %s1303 = scalar_lea.vmem %s442, 20 [#allocation5]
        %v1304 = vld [vmem:[%s1303] sm:$0x3]
        %v1306 = vsel %vm548, %v1054, 0
        %1308 = vmatprep.subr.mxu0 0.0
        %1309 = vmatpush1.msra.mxu0 %v517
        %1310 = vmatprep.subr.mxu0 0.0
        %1311 = vmatpush1.msra.mxu0 %v518
        %1312 = vmatprep.subr.mxu0 0.0
        %1313 = vmatpush1.msra.mxu0 %v519
        %1314 = vmatprep.subr.mxu0 0.0
        %1315 = vmatpush1.msra.mxu0 %v520
        %1316 = vmatprep.subr.mxu0 0.0
        %1317 = vmatpush1.msra.mxu0 0.0
        %1318 = vmatprep.subr.mxu0 0.0
        %1319 = vmatpush1.msra.mxu0 0.0
        %1320 = vmatprep.subr.mxu0 0.0
        %1321 = vmatpush1.msra.mxu0 0.0
        %1322 = vmatprep.subr.mxu0 0.0
        %1323 = vmatpush1.msra.mxu0 0.0
        %1324 = vmatprep.subr.mxu0 0.0
        %1325 = vmatpush1.msra.mxu0 0.0
        %1326 = vmatprep.subr.mxu0 0.0
        %1327 = vmatpush1.msra.mxu0 0.0
        %1328 = vmatprep.subr.mxu0 0.0
        %1329 = vmatpush1.msra.mxu0 0.0
        %1330 = vmatprep.subr.mxu0 0.0
        %1331 = vmatpush1.msra.mxu0 0.0
        %1332 = vmatprep.subr.mxu0 0.0
        %1333 = vmatpush1.msra.mxu0 0.0
        %1334 = vmatprep.subr.mxu0 0.0
        %1335 = vmatpush1.msra.mxu0 0.0
        %1336 = vmatprep.subr.mxu0 0.0
        %1337 = vmatpush1.msra.mxu0 0.0
        %1338 = vmatprep.subr.mxu0 0.0
        %1339 = vmatpush1.msra.mxu0 0.0
        %1340 = vmatprep.subr.mxu0 0.0
        %1341 = vmatpush1.msra.mxu0 0.0
        %1342 = vmatprep.subr.mxu0 0.0
        %1343 = vmatpush1.msra.mxu0 0.0
        %1344 = vmatprep.subr.mxu0 0.0
        %1345 = vmatpush1.msra.mxu0 0.0
        %1346 = vmatprep.subr.mxu0 0.0
        %1347 = vmatpush1.msra.mxu0 0.0
        %1348 = vmatprep.subr.mxu0 0.0
        %1349 = vmatpush1.msra.mxu0 0.0
        %1350 = vmatprep.subr.mxu0 0.0
        %1351 = vmatpush1.msra.mxu0 0.0
        %1352 = vmatprep.subr.mxu0 0.0
        %1353 = vmatpush1.msra.mxu0 0.0
        %1354 = vmatprep.subr.mxu0 0.0
        %1355 = vmatpush1.msra.mxu0 0.0
        %1356 = vmatprep.subr.mxu0 0.0
        %1357 = vmatpush1.msra.mxu0 0.0
        %1358 = vmatprep.subr.mxu0 0.0
        %1359 = vmatpush1.msra.mxu0 0.0
        %1360 = vmatprep.subr.mxu0 0.0
        %1361 = vmatpush1.msra.mxu0 0.0
        %1362 = vmatprep.subr.mxu0 0.0
        %1363 = vmatpush1.msra.mxu0 0.0
        %1364 = vmatprep.subr.mxu0 0.0
        %1365 = vmatpush1.msra.mxu0 0.0
        %1366 = vmatprep.subr.mxu0 0.0
        %1367 = vmatpush1.msra.mxu0 0.0
        %1368 = vmatprep.subr.mxu0 0.0
        %1369 = vmatpush1.msra.mxu0 0.0
        %1370 = vmatprep.subr.mxu0 0.0
        %1371 = vmatpush1.msra.mxu0 0.0
        %1372 = vmatprep.mubr.f32.mxu0 0.0
        %1373 = vmatmul.mubr.f32.gmra.mrb[0].mxu0 %v1306
        %v1374 = vpop.f32.mrb[0].mxu0
        %v1375 = vadd.f32 %v807, %v1374
        %v1376 = vpop.f32.mrb[0].mxu0
        %1377 = vdwg.mxu0
        %1378 = vmatprep.subr.mxu0 0.0
        %1379 = vmatpush1.msra.mxu0 %v521
        %1380 = vmatprep.subr.mxu0 0.0
        %1381 = vmatpush1.msra.mxu0 %v522
        %1382 = vmatprep.subr.mxu0 0.0
        %1383 = vmatpush1.msra.mxu0 %v523
        %1384 = vmatprep.subr.mxu0 0.0
        %1385 = vmatpush1.msra.mxu0 %v524
        %1386 = vmatprep.subr.mxu0 0.0
        %1387 = vmatpush1.msra.mxu0 0.0
        %1388 = vmatprep.subr.mxu0 0.0
        %1389 = vmatpush1.msra.mxu0 0.0
        %1390 = vmatprep.subr.mxu0 0.0
        %1391 = vmatpush1.msra.mxu0 0.0
        %1392 = vmatprep.subr.mxu0 0.0
        %1393 = vmatpush1.msra.mxu0 0.0
        %1394 = vmatprep.subr.mxu0 0.0
        %1395 = vmatpush1.msra.mxu0 0.0
        %1396 = vmatprep.subr.mxu0 0.0
        %1397 = vmatpush1.msra.mxu0 0.0
        %1398 = vmatprep.subr.mxu0 0.0
        %1399 = vmatpush1.msra.mxu0 0.0
        %1400 = vmatprep.subr.mxu0 0.0
        %1401 = vmatpush1.msra.mxu0 0.0
        %1402 = vmatprep.subr.mxu0 0.0
        %1403 = vmatpush1.msra.mxu0 0.0
        %1404 = vmatprep.subr.mxu0 0.0
        %1405 = vmatpush1.msra.mxu0 0.0
        %1406 = vmatprep.subr.mxu0 0.0
        %1407 = vmatpush1.msra.mxu0 0.0
        %1408 = vmatprep.subr.mxu0 0.0
        %1409 = vmatpush1.msra.mxu0 0.0
        %1410 = vmatprep.subr.mxu0 0.0
        %1411 = vmatpush1.msra.mxu0 0.0
        %1412 = vmatprep.subr.mxu0 0.0
        %1413 = vmatpush1.msra.mxu0 0.0
        %1414 = vmatprep.subr.mxu0 0.0
        %1415 = vmatpush1.msra.mxu0 0.0
        %1416 = vmatprep.subr.mxu0 0.0
        %1417 = vmatpush1.msra.mxu0 0.0
        %1418 = vmatprep.subr.mxu0 0.0
        %1419 = vmatpush1.msra.mxu0 0.0
        %1420 = vmatprep.subr.mxu0 0.0
        %1421 = vmatpush1.msra.mxu0 0.0
        %1422 = vmatprep.subr.mxu0 0.0
        %1423 = vmatpush1.msra.mxu0 0.0
        %1424 = vmatprep.subr.mxu0 0.0
        %1425 = vmatpush1.msra.mxu0 0.0
        %1426 = vmatprep.subr.mxu0 0.0
        %1427 = vmatpush1.msra.mxu0 0.0
        %1428 = vmatprep.subr.mxu0 0.0
        %1429 = vmatpush1.msra.mxu0 0.0
        %1430 = vmatprep.subr.mxu0 0.0
        %1431 = vmatpush1.msra.mxu0 0.0
        %1432 = vmatprep.subr.mxu0 0.0
        %1433 = vmatpush1.msra.mxu0 0.0
        %1434 = vmatprep.subr.mxu0 0.0
        %1435 = vmatpush1.msra.mxu0 0.0
        %1436 = vmatprep.subr.mxu0 0.0
        %1437 = vmatpush1.msra.mxu0 0.0
        %1438 = vmatprep.subr.mxu0 0.0
        %1439 = vmatpush1.msra.mxu0 0.0
        %1440 = vmatprep.subr.mxu0 0.0
        %1441 = vmatpush1.msra.mxu0 0.0
        %1442 = vmatprep.mubr.f32.mxu0 0.0
        %1443 = vmatmul.mubr.f32.gmra.mrb[0].mxu0 %v1306
        %v1444 = vpop.f32.mrb[0].mxu0
        %v1445 = vadd.f32 %v886, %v1444
        %v1446 = vpop.f32.mrb[0].mxu0
        %1447 = vdwg.mxu0
        %1448 = vmatprep.subr.mxu0 0.0
        %1449 = vmatpush1.msra.mxu0 %v525
        %1450 = vmatprep.subr.mxu0 0.0
        %1451 = vmatpush1.msra.mxu0 %v526
        %1452 = vmatprep.subr.mxu0 0.0
        %1453 = vmatpush1.msra.mxu0 %v527
        %1454 = vmatprep.subr.mxu0 0.0
        %1455 = vmatpush1.msra.mxu0 %v528
        %1456 = vmatprep.subr.mxu0 0.0
        %1457 = vmatpush1.msra.mxu0 0.0
        %1458 = vmatprep.subr.mxu0 0.0
        %1459 = vmatpush1.msra.mxu0 0.0
        %1460 = vmatprep.subr.mxu0 0.0
        %1461 = vmatpush1.msra.mxu0 0.0
        %1462 = vmatprep.subr.mxu0 0.0
        %1463 = vmatpush1.msra.mxu0 0.0
        %1464 = vmatprep.subr.mxu0 0.0
        %1465 = vmatpush1.msra.mxu0 0.0
        %1466 = vmatprep.subr.mxu0 0.0
        %1467 = vmatpush1.msra.mxu0 0.0
        %1468 = vmatprep.subr.mxu0 0.0
        %1469 = vmatpush1.msra.mxu0 0.0
        %1470 = vmatprep.subr.mxu0 0.0
        %1471 = vmatpush1.msra.mxu0 0.0
        %1472 = vmatprep.subr.mxu0 0.0
        %1473 = vmatpush1.msra.mxu0 0.0
        %1474 = vmatprep.subr.mxu0 0.0
        %1475 = vmatpush1.msra.mxu0 0.0
        %1476 = vmatprep.subr.mxu0 0.0
        %1477 = vmatpush1.msra.mxu0 0.0
        %1478 = vmatprep.subr.mxu0 0.0
        %1479 = vmatpush1.msra.mxu0 0.0
        %1480 = vmatprep.subr.mxu0 0.0
        %1481 = vmatpush1.msra.mxu0 0.0
        %1482 = vmatprep.subr.mxu0 0.0
        %1483 = vmatpush1.msra.mxu0 0.0
        %1484 = vmatprep.subr.mxu0 0.0
        %1485 = vmatpush1.msra.mxu0 0.0
        %1486 = vmatprep.subr.mxu0 0.0
        %1487 = vmatpush1.msra.mxu0 0.0
        %1488 = vmatprep.subr.mxu0 0.0
        %1489 = vmatpush1.msra.mxu0 0.0
        %1490 = vmatprep.subr.mxu0 0.0
        %1491 = vmatpush1.msra.mxu0 0.0
        %1492 = vmatprep.subr.mxu0 0.0
        %1493 = vmatpush1.msra.mxu0 0.0
        %1494 = vmatprep.subr.mxu0 0.0
        %1495 = vmatpush1.msra.mxu0 0.0
        %1496 = vmatprep.subr.mxu0 0.0
        %1497 = vmatpush1.msra.mxu0 0.0
        %1498 = vmatprep.subr.mxu0 0.0
        %1499 = vmatpush1.msra.mxu0 0.0
        %1500 = vmatprep.subr.mxu0 0.0
        %1501 = vmatpush1.msra.mxu0 0.0
        %1502 = vmatprep.subr.mxu0 0.0
        %1503 = vmatpush1.msra.mxu0 0.0
        %1504 = vmatprep.subr.mxu0 0.0
        %1505 = vmatpush1.msra.mxu0 0.0
        %1506 = vmatprep.subr.mxu0 0.0
        %1507 = vmatpush1.msra.mxu0 0.0
        %1508 = vmatprep.subr.mxu0 0.0
        %1509 = vmatpush1.msra.mxu0 0.0
        %1510 = vmatprep.subr.mxu0 0.0
        %1511 = vmatpush1.msra.mxu0 0.0
        %1512 = vmatprep.mubr.f32.mxu0 0.0
        %1513 = vmatmul.mubr.f32.gmra.mrb[0].mxu0 %v1306
        %v1514 = vpop.f32.mrb[0].mxu0
        %v1515 = vadd.f32 %v962, %v1514
        %v1516 = vpop.f32.mrb[0].mxu0
        %1517 = vdwg.mxu0
        %v1518 = vadd.f32 %v1300, %v1375
        %v1519 = vxor.u32 %v1518, 2147483648
        %v1520 = vmul.f32 %v1519, 1.442695
        %v1521 = vpow.pop %v1520
        %v1522 = vadd.f32 %v1521, 1.0
        %v1523 = vrcp.pop %v1522
        %v1524 = vmul.f32 1.0, %v1523
        %v1525 = vadd.f32 %v1302, %v1445
        %v1526 = vxor.u32 %v1525, 2147483648
        %v1527 = vmul.f32 %v1526, 1.442695
        %v1528 = vpow.pop %v1527
        %v1529 = vadd.f32 %v1528, 1.0
        %v1530 = vrcp.pop %v1529
        %v1531 = vmul.f32 1.0, %v1530
        %v1532 = vmul.f32 %v1524, %v1515
        %v1533 = vadd.f32 %v1304, %v1532
        %v1534 = vtanh.pop %v1533
        %v1535 = vsub.f32 1.0, %v1531
        %v1536 = vmul.f32 %v1535, %v1534
        %v1537 = vmul.f32 %v1531, %v1054
        %v1538 = vadd.f32 %v1536, %v1537
        %s1539 = scalar_lea.vmem %s495, 4
        %1540 = vst.msk [vmem:[%s1539] sm:$0x3] %vm795, %v1538
        %s1541 = scalar_lea.vmem %s435, 4 [#allocation4]
        %v1542 = vld [vmem:[%s1541] sm:$0x3]
        %s1543 = scalar_lea.vmem %s435, 12 [#allocation4]
        %v1544 = vld [vmem:[%s1543] sm:$0x3]
        %s1545 = scalar_lea.vmem %s435, 20 [#allocation4]
        %v1546 = vld [vmem:[%s1545] sm:$0x3]
        %v1548 = vsel %vm548, %v1296, 0
        %1550 = vmatprep.subr.mxu0 0.0
        %1551 = vmatpush1.msra.mxu0 %v505
        %1552 = vmatprep.subr.mxu0 0.0
        %1553 = vmatpush1.msra.mxu0 %v506
        %1554 = vmatprep.subr.mxu0 0.0
        %1555 = vmatpush1.msra.mxu0 %v507
        %1556 = vmatprep.subr.mxu0 0.0
        %1557 = vmatpush1.msra.mxu0 %v508
        %1558 = vmatprep.subr.mxu0 0.0
        %1559 = vmatpush1.msra.mxu0 0.0
        %1560 = vmatprep.subr.mxu0 0.0
        %1561 = vmatpush1.msra.mxu0 0.0
        %1562 = vmatprep.subr.mxu0 0.0
        %1563 = vmatpush1.msra.mxu0 0.0
        %1564 = vmatprep.subr.mxu0 0.0
        %1565 = vmatpush1.msra.mxu0 0.0
        %1566 = vmatprep.subr.mxu0 0.0
        %1567 = vmatpush1.msra.mxu0 0.0
        %1568 = vmatprep.subr.mxu0 0.0
        %1569 = vmatpush1.msra.mxu0 0.0
        %1570 = vmatprep.subr.mxu0 0.0
        %1571 = vmatpush1.msra.mxu0 0.0
        %1572 = vmatprep.subr.mxu0 0.0
        %1573 = vmatpush1.msra.mxu0 0.0
        %1574 = vmatprep.subr.mxu0 0.0
        %1575 = vmatpush1.msra.mxu0 0.0
        %1576 = vmatprep.subr.mxu0 0.0
        %1577 = vmatpush1.msra.mxu0 0.0
        %1578 = vmatprep.subr.mxu0 0.0
        %1579 = vmatpush1.msra.mxu0 0.0
        %1580 = vmatprep.subr.mxu0 0.0
        %1581 = vmatpush1.msra.mxu0 0.0
        %1582 = vmatprep.subr.mxu0 0.0
        %1583 = vmatpush1.msra.mxu0 0.0
        %1584 = vmatprep.subr.mxu0 0.0
        %1585 = vmatpush1.msra.mxu0 0.0
        %1586 = vmatprep.subr.mxu0 0.0
        %1587 = vmatpush1.msra.mxu0 0.0
        %1588 = vmatprep.subr.mxu0 0.0
        %1589 = vmatpush1.msra.mxu0 0.0
        %1590 = vmatprep.subr.mxu0 0.0
        %1591 = vmatpush1.msra.mxu0 0.0
        %1592 = vmatprep.subr.mxu0 0.0
        %1593 = vmatpush1.msra.mxu0 0.0
        %1594 = vmatprep.subr.mxu0 0.0
        %1595 = vmatpush1.msra.mxu0 0.0
        %1596 = vmatprep.subr.mxu0 0.0
        %1597 = vmatpush1.msra.mxu0 0.0
        %1598 = vmatprep.subr.mxu0 0.0
        %1599 = vmatpush1.msra.mxu0 0.0
        %1600 = vmatprep.subr.mxu0 0.0
        %1601 = vmatpush1.msra.mxu0 0.0
        %1602 = vmatprep.subr.mxu0 0.0
        %1603 = vmatpush1.msra.mxu0 0.0
        %1604 = vmatprep.subr.mxu0 0.0
        %1605 = vmatpush1.msra.mxu0 0.0
        %1606 = vmatprep.subr.mxu0 0.0
        %1607 = vmatpush1.msra.mxu0 0.0
        %1608 = vmatprep.subr.mxu0 0.0
        %1609 = vmatpush1.msra.mxu0 0.0
        %1610 = vmatprep.subr.mxu0 0.0
        %1611 = vmatpush1.msra.mxu0 0.0
        %1612 = vmatprep.subr.mxu0 0.0
        %1613 = vmatpush1.msra.mxu0 0.0
        %1614 = vmatprep.mubr.f32.mxu0 0.0
        %1615 = vmatmul.mubr.f32.gmra.mrb[0].mxu0 %v1548
        %v1616 = vpop.f32.mrb[0].mxu0
        %v1617 = vadd.f32 %v546, %v1616
        %v1618 = vpop.f32.mrb[0].mxu0
        %1619 = vdwg.mxu0
        %1620 = vmatprep.subr.mxu0 0.0
        %1621 = vmatpush1.msra.mxu0 %v509
        %1622 = vmatprep.subr.mxu0 0.0
        %1623 = vmatpush1.msra.mxu0 %v510
        %1624 = vmatprep.subr.mxu0 0.0
        %1625 = vmatpush1.msra.mxu0 %v511
        %1626 = vmatprep.subr.mxu0 0.0
        %1627 = vmatpush1.msra.mxu0 %v512
        %1628 = vmatprep.subr.mxu0 0.0
        %1629 = vmatpush1.msra.mxu0 0.0
        %1630 = vmatprep.subr.mxu0 0.0
        %1631 = vmatpush1.msra.mxu0 0.0
        %1632 = vmatprep.subr.mxu0 0.0
        %1633 = vmatpush1.msra.mxu0 0.0
        %1634 = vmatprep.subr.mxu0 0.0
        %1635 = vmatpush1.msra.mxu0 0.0
        %1636 = vmatprep.subr.mxu0 0.0
        %1637 = vmatpush1.msra.mxu0 0.0
        %1638 = vmatprep.subr.mxu0 0.0
        %1639 = vmatpush1.msra.mxu0 0.0
        %1640 = vmatprep.subr.mxu0 0.0
        %1641 = vmatpush1.msra.mxu0 0.0
        %1642 = vmatprep.subr.mxu0 0.0
        %1643 = vmatpush1.msra.mxu0 0.0
        %1644 = vmatprep.subr.mxu0 0.0
        %1645 = vmatpush1.msra.mxu0 0.0
        %1646 = vmatprep.subr.mxu0 0.0
        %1647 = vmatpush1.msra.mxu0 0.0
        %1648 = vmatprep.subr.mxu0 0.0
        %1649 = vmatpush1.msra.mxu0 0.0
        %1650 = vmatprep.subr.mxu0 0.0
        %1651 = vmatpush1.msra.mxu0 0.0
        %1652 = vmatprep.subr.mxu0 0.0
        %1653 = vmatpush1.msra.mxu0 0.0
        %1654 = vmatprep.subr.mxu0 0.0
        %1655 = vmatpush1.msra.mxu0 0.0
        %1656 = vmatprep.subr.mxu0 0.0
        %1657 = vmatpush1.msra.mxu0 0.0
        %1658 = vmatprep.subr.mxu0 0.0
        %1659 = vmatpush1.msra.mxu0 0.0
        %1660 = vmatprep.subr.mxu0 0.0
        %1661 = vmatpush1.msra.mxu0 0.0
        %1662 = vmatprep.subr.mxu0 0.0
        %1663 = vmatpush1.msra.mxu0 0.0
        %1664 = vmatprep.subr.mxu0 0.0
        %1665 = vmatpush1.msra.mxu0 0.0
        %1666 = vmatprep.subr.mxu0 0.0
        %1667 = vmatpush1.msra.mxu0 0.0
        %1668 = vmatprep.subr.mxu0 0.0
        %1669 = vmatpush1.msra.mxu0 0.0
        %1670 = vmatprep.subr.mxu0 0.0
        %1671 = vmatpush1.msra.mxu0 0.0
        %1672 = vmatprep.subr.mxu0 0.0
        %1673 = vmatpush1.msra.mxu0 0.0
        %1674 = vmatprep.subr.mxu0 0.0
        %1675 = vmatpush1.msra.mxu0 0.0
        %1676 = vmatprep.subr.mxu0 0.0
        %1677 = vmatpush1.msra.mxu0 0.0
        %1678 = vmatprep.subr.mxu0 0.0
        %1679 = vmatpush1.msra.mxu0 0.0
        %1680 = vmatprep.subr.mxu0 0.0
        %1681 = vmatpush1.msra.mxu0 0.0
        %1682 = vmatprep.subr.mxu0 0.0
        %1683 = vmatpush1.msra.mxu0 0.0
        %1684 = vmatprep.mubr.f32.mxu0 0.0
        %1685 = vmatmul.mubr.f32.gmra.mrb[0].mxu0 %v1548
        %v1686 = vpop.f32.mrb[0].mxu0
        %v1687 = vadd.f32 %v626, %v1686
        %v1688 = vpop.f32.mrb[0].mxu0
        %1689 = vdwg.mxu0
        %1690 = vmatprep.subr.mxu0 0.0
        %1691 = vmatpush1.msra.mxu0 %v513
        %1692 = vmatprep.subr.mxu0 0.0
        %1693 = vmatpush1.msra.mxu0 %v514
        %1694 = vmatprep.subr.mxu0 0.0
        %1695 = vmatpush1.msra.mxu0 %v515
        %1696 = vmatprep.subr.mxu0 0.0
        %1697 = vmatpush1.msra.mxu0 %v516
        %1698 = vmatprep.subr.mxu0 0.0
        %1699 = vmatpush1.msra.mxu0 0.0
        %1700 = vmatprep.subr.mxu0 0.0
        %1701 = vmatpush1.msra.mxu0 0.0
        %1702 = vmatprep.subr.mxu0 0.0
        %1703 = vmatpush1.msra.mxu0 0.0
        %1704 = vmatprep.subr.mxu0 0.0
        %1705 = vmatpush1.msra.mxu0 0.0
        %1706 = vmatprep.subr.mxu0 0.0
        %1707 = vmatpush1.msra.mxu0 0.0
        %1708 = vmatprep.subr.mxu0 0.0
        %1709 = vmatpush1.msra.mxu0 0.0
        %1710 = vmatprep.subr.mxu0 0.0
        %1711 = vmatpush1.msra.mxu0 0.0
        %1712 = vmatprep.subr.mxu0 0.0
        %1713 = vmatpush1.msra.mxu0 0.0
        %1714 = vmatprep.subr.mxu0 0.0
        %1715 = vmatpush1.msra.mxu0 0.0
        %1716 = vmatprep.subr.mxu0 0.0
        %1717 = vmatpush1.msra.mxu0 0.0
        %1718 = vmatprep.subr.mxu0 0.0
        %1719 = vmatpush1.msra.mxu0 0.0
        %1720 = vmatprep.subr.mxu0 0.0
        %1721 = vmatpush1.msra.mxu0 0.0
        %1722 = vmatprep.subr.mxu0 0.0
        %1723 = vmatpush1.msra.mxu0 0.0
        %1724 = vmatprep.subr.mxu0 0.0
        %1725 = vmatpush1.msra.mxu0 0.0
        %1726 = vmatprep.subr.mxu0 0.0
        %1727 = vmatpush1.msra.mxu0 0.0
        %1728 = vmatprep.subr.mxu0 0.0
        %1729 = vmatpush1.msra.mxu0 0.0
        %1730 = vmatprep.subr.mxu0 0.0
        %1731 = vmatpush1.msra.mxu0 0.0
        %1732 = vmatprep.subr.mxu0 0.0
        %1733 = vmatpush1.msra.mxu0 0.0
        %1734 = vmatprep.subr.mxu0 0.0
        %1735 = vmatpush1.msra.mxu0 0.0
        %1736 = vmatprep.subr.mxu0 0.0
        %1737 = vmatpush1.msra.mxu0 0.0
        %1738 = vmatprep.subr.mxu0 0.0
        %1739 = vmatpush1.msra.mxu0 0.0
        %1740 = vmatprep.subr.mxu0 0.0
        %1741 = vmatpush1.msra.mxu0 0.0
        %1742 = vmatprep.subr.mxu0 0.0
        %1743 = vmatpush1.msra.mxu0 0.0
        %1744 = vmatprep.subr.mxu0 0.0
        %1745 = vmatpush1.msra.mxu0 0.0
        %1746 = vmatprep.subr.mxu0 0.0
        %1747 = vmatpush1.msra.mxu0 0.0
        %1748 = vmatprep.subr.mxu0 0.0
        %1749 = vmatpush1.msra.mxu0 0.0
        %1750 = vmatprep.subr.mxu0 0.0
        %1751 = vmatpush1.msra.mxu0 0.0
        %1752 = vmatprep.subr.mxu0 0.0
        %1753 = vmatpush1.msra.mxu0 0.0
        %1754 = vmatprep.mubr.f32.mxu0 0.0
        %1755 = vmatmul.mubr.f32.gmra.mrb[0].mxu0 %v1548
        %v1756 = vpop.f32.mrb[0].mxu0
        %v1757 = vadd.f32 %v702, %v1756
        %v1758 = vpop.f32.mrb[0].mxu0
        %1759 = vdwg.mxu0
        %v1760 = vadd.f32 %v1542, %v1617
        %v1761 = vxor.u32 %v1760, 2147483648
        %v1762 = vmul.f32 %v1761, 1.442695
        %v1763 = vpow.pop %v1762
        %v1764 = vadd.f32 %v1763, 1.0
        %v1765 = vrcp.pop %v1764
        %v1766 = vmul.f32 1.0, %v1765
        %v1767 = vadd.f32 %v1544, %v1687
        %v1768 = vxor.u32 %v1767, 2147483648
        %v1769 = vmul.f32 %v1768, 1.442695
        %v1770 = vpow.pop %v1769
        %v1771 = vadd.f32 %v1770, 1.0
        %v1772 = vrcp.pop %v1771
        %v1773 = vmul.f32 1.0, %v1772
        %v1774 = vmul.f32 %v1766, %v1757
        %v1775 = vadd.f32 %v1546, %v1774
        %v1776 = vtanh.pop %v1775
        %v1777 = vsub.f32 1.0, %v1773
        %v1778 = vmul.f32 %v1777, %v1776
        %v1779 = vmul.f32 %v1773, %v1296
        %v1780 = vadd.f32 %v1778, %v1779
        %s1781 = scalar_lea.vmem %s488, 4
        %1782 = vst.msk [vmem:[%s1781] sm:$0x3] %vm795, %v1780
        %s1783 = scalar_lea.vmem %s442, 2 [#allocation5]
        %v1784 = vld [vmem:[%s1783] sm:$0x3]
        %s1785 = scalar_lea.vmem %s442, 10 [#allocation5]
        %v1786 = vld [vmem:[%s1785] sm:$0x3]
        %s1787 = scalar_lea.vmem %s442, 18 [#allocation5]
        %v1788 = vld [vmem:[%s1787] sm:$0x3]
        %v1790 = vsel %vm548, %v1538, 0
        %1792 = vmatprep.subr.mxu0 0.0
        %1793 = vmatpush1.msra.mxu0 %v517
        %1794 = vmatprep.subr.mxu0 0.0
        %1795 = vmatpush1.msra.mxu0 %v518
        %1796 = vmatprep.subr.mxu0 0.0
        %1797 = vmatpush1.msra.mxu0 %v519
        %1798 = vmatprep.subr.mxu0 0.0
        %1799 = vmatpush1.msra.mxu0 %v520
        %1800 = vmatprep.subr.mxu0 0.0
        %1801 = vmatpush1.msra.mxu0 0.0
        %1802 = vmatprep.subr.mxu0 0.0
        %1803 = vmatpush1.msra.mxu0 0.0
        %1804 = vmatprep.subr.mxu0 0.0
        %1805 = vmatpush1.msra.mxu0 0.0
        %1806 = vmatprep.subr.mxu0 0.0
        %1807 = vmatpush1.msra.mxu0 0.0
        %1808 = vmatprep.subr.mxu0 0.0
        %1809 = vmatpush1.msra.mxu0 0.0
        %1810 = vmatprep.subr.mxu0 0.0
        %1811 = vmatpush1.msra.mxu0 0.0
        %1812 = vmatprep.subr.mxu0 0.0
        %1813 = vmatpush1.msra.mxu0 0.0
        %1814 = vmatprep.subr.mxu0 0.0
        %1815 = vmatpush1.msra.mxu0 0.0
        %1816 = vmatprep.subr.mxu0 0.0
        %1817 = vmatpush1.msra.mxu0 0.0
        %1818 = vmatprep.subr.mxu0 0.0
        %1819 = vmatpush1.msra.mxu0 0.0
        %1820 = vmatprep.subr.mxu0 0.0
        %1821 = vmatpush1.msra.mxu0 0.0
        %1822 = vmatprep.subr.mxu0 0.0
        %1823 = vmatpush1.msra.mxu0 0.0
        %1824 = vmatprep.subr.mxu0 0.0
        %1825 = vmatpush1.msra.mxu0 0.0
        %1826 = vmatprep.subr.mxu0 0.0
        %1827 = vmatpush1.msra.mxu0 0.0
        %1828 = vmatprep.subr.mxu0 0.0
        %1829 = vmatpush1.msra.mxu0 0.0
        %1830 = vmatprep.subr.mxu0 0.0
        %1831 = vmatpush1.msra.mxu0 0.0
        %1832 = vmatprep.subr.mxu0 0.0
        %1833 = vmatpush1.msra.mxu0 0.0
        %1834 = vmatprep.subr.mxu0 0.0
        %1835 = vmatpush1.msra.mxu0 0.0
        %1836 = vmatprep.subr.mxu0 0.0
        %1837 = vmatpush1.msra.mxu0 0.0
        %1838 = vmatprep.subr.mxu0 0.0
        %1839 = vmatpush1.msra.mxu0 0.0
        %1840 = vmatprep.subr.mxu0 0.0
        %1841 = vmatpush1.msra.mxu0 0.0
        %1842 = vmatprep.subr.mxu0 0.0
        %1843 = vmatpush1.msra.mxu0 0.0
        %1844 = vmatprep.subr.mxu0 0.0
        %1845 = vmatpush1.msra.mxu0 0.0
        %1846 = vmatprep.subr.mxu0 0.0
        %1847 = vmatpush1.msra.mxu0 0.0
        %1848 = vmatprep.subr.mxu0 0.0
        %1849 = vmatpush1.msra.mxu0 0.0
        %1850 = vmatprep.subr.mxu0 0.0
        %1851 = vmatpush1.msra.mxu0 0.0
        %1852 = vmatprep.subr.mxu0 0.0
        %1853 = vmatpush1.msra.mxu0 0.0
        %1854 = vmatprep.subr.mxu0 0.0
        %1855 = vmatpush1.msra.mxu0 0.0
        %1856 = vmatprep.mubr.f32.mxu0 0.0
        %1857 = vmatmul.mubr.f32.gmra.mrb[0].mxu0 %v1790
        %v1858 = vpop.f32.mrb[0].mxu0
        %v1859 = vadd.f32 %v807, %v1858
        %v1860 = vpop.f32.mrb[0].mxu0
        %1861 = vdwg.mxu0
        %1862 = vmatprep.subr.mxu0 0.0
        %1863 = vmatpush1.msra.mxu0 %v521
        %1864 = vmatprep.subr.mxu0 0.0
        %1865 = vmatpush1.msra.mxu0 %v522
        %1866 = vmatprep.subr.mxu0 0.0
        %1867 = vmatpush1.msra.mxu0 %v523
        %1868 = vmatprep.subr.mxu0 0.0
        %1869 = vmatpush1.msra.mxu0 %v524
        %1870 = vmatprep.subr.mxu0 0.0
        %1871 = vmatpush1.msra.mxu0 0.0
        %1872 = vmatprep.subr.mxu0 0.0
        %1873 = vmatpush1.msra.mxu0 0.0
        %1874 = vmatprep.subr.mxu0 0.0
        %1875 = vmatpush1.msra.mxu0 0.0
        %1876 = vmatprep.subr.mxu0 0.0
        %1877 = vmatpush1.msra.mxu0 0.0
        %1878 = vmatprep.subr.mxu0 0.0
        %1879 = vmatpush1.msra.mxu0 0.0
        %1880 = vmatprep.subr.mxu0 0.0
        %1881 = vmatpush1.msra.mxu0 0.0
        %1882 = vmatprep.subr.mxu0 0.0
        %1883 = vmatpush1.msra.mxu0 0.0
        %1884 = vmatprep.subr.mxu0 0.0
        %1885 = vmatpush1.msra.mxu0 0.0
        %1886 = vmatprep.subr.mxu0 0.0
        %1887 = vmatpush1.msra.mxu0 0.0
        %1888 = vmatprep.subr.mxu0 0.0
        %1889 = vmatpush1.msra.mxu0 0.0
        %1890 = vmatprep.subr.mxu0 0.0
        %1891 = vmatpush1.msra.mxu0 0.0
        %1892 = vmatprep.subr.mxu0 0.0
        %1893 = vmatpush1.msra.mxu0 0.0
        %1894 = vmatprep.subr.mxu0 0.0
        %1895 = vmatpush1.msra.mxu0 0.0
        %1896 = vmatprep.subr.mxu0 0.0
        %1897 = vmatpush1.msra.mxu0 0.0
        %1898 = vmatprep.subr.mxu0 0.0
        %1899 = vmatpush1.msra.mxu0 0.0
        %1900 = vmatprep.subr.mxu0 0.0
        %1901 = vmatpush1.msra.mxu0 0.0
        %1902 = vmatprep.subr.mxu0 0.0
        %1903 = vmatpush1.msra.mxu0 0.0
        %1904 = vmatprep.subr.mxu0 0.0
        %1905 = vmatpush1.msra.mxu0 0.0
        %1906 = vmatprep.subr.mxu0 0.0
        %1907 = vmatpush1.msra.mxu0 0.0
        %1908 = vmatprep.subr.mxu0 0.0
        %1909 = vmatpush1.msra.mxu0 0.0
        %1910 = vmatprep.subr.mxu0 0.0
        %1911 = vmatpush1.msra.mxu0 0.0
        %1912 = vmatprep.subr.mxu0 0.0
        %1913 = vmatpush1.msra.mxu0 0.0
        %1914 = vmatprep.subr.mxu0 0.0
        %1915 = vmatpush1.msra.mxu0 0.0
        %1916 = vmatprep.subr.mxu0 0.0
        %1917 = vmatpush1.msra.mxu0 0.0
        %1918 = vmatprep.subr.mxu0 0.0
        %1919 = vmatpush1.msra.mxu0 0.0
        %1920 = vmatprep.subr.mxu0 0.0
        %1921 = vmatpush1.msra.mxu0 0.0
        %1922 = vmatprep.subr.mxu0 0.0
        %1923 = vmatpush1.msra.mxu0 0.0
        %1924 = vmatprep.subr.mxu0 0.0
        %1925 = vmatpush1.msra.mxu0 0.0
        %1926 = vmatprep.mubr.f32.mxu0 0.0
        %1927 = vmatmul.mubr.f32.gmra.mrb[0].mxu0 %v1790
        %v1928 = vpop.f32.mrb[0].mxu0
        %v1929 = vadd.f32 %v886, %v1928
        %v1930 = vpop.f32.mrb[0].mxu0
        %1931 = vdwg.mxu0
        %1932 = vmatprep.subr.mxu0 0.0
        %1933 = vmatpush1.msra.mxu0 %v525
        %1934 = vmatprep.subr.mxu0 0.0
        %1935 = vmatpush1.msra.mxu0 %v526
        %1936 = vmatprep.subr.mxu0 0.0
        %1937 = vmatpush1.msra.mxu0 %v527
        %1938 = vmatprep.subr.mxu0 0.0
        %1939 = vmatpush1.msra.mxu0 %v528
        %1940 = vmatprep.subr.mxu0 0.0
        %1941 = vmatpush1.msra.mxu0 0.0
        %1942 = vmatprep.subr.mxu0 0.0
        %1943 = vmatpush1.msra.mxu0 0.0
        %1944 = vmatprep.subr.mxu0 0.0
        %1945 = vmatpush1.msra.mxu0 0.0
        %1946 = vmatprep.subr.mxu0 0.0
        %1947 = vmatpush1.msra.mxu0 0.0
        %1948 = vmatprep.subr.mxu0 0.0
        %1949 = vmatpush1.msra.mxu0 0.0
        %1950 = vmatprep.subr.mxu0 0.0
        %1951 = vmatpush1.msra.mxu0 0.0
        %1952 = vmatprep.subr.mxu0 0.0
        %1953 = vmatpush1.msra.mxu0 0.0
        %1954 = vmatprep.subr.mxu0 0.0
        %1955 = vmatpush1.msra.mxu0 0.0
        %1956 = vmatprep.subr.mxu0 0.0
        %1957 = vmatpush1.msra.mxu0 0.0
        %1958 = vmatprep.subr.mxu0 0.0
        %1959 = vmatpush1.msra.mxu0 0.0
        %1960 = vmatprep.subr.mxu0 0.0
        %1961 = vmatpush1.msra.mxu0 0.0
        %1962 = vmatprep.subr.mxu0 0.0
        %1963 = vmatpush1.msra.mxu0 0.0
        %1964 = vmatprep.subr.mxu0 0.0
        %1965 = vmatpush1.msra.mxu0 0.0
        %1966 = vmatprep.subr.mxu0 0.0
        %1967 = vmatpush1.msra.mxu0 0.0
        %1968 = vmatprep.subr.mxu0 0.0
        %1969 = vmatpush1.msra.mxu0 0.0
        %1970 = vmatprep.subr.mxu0 0.0
        %1971 = vmatpush1.msra.mxu0 0.0
        %1972 = vmatprep.subr.mxu0 0.0
        %1973 = vmatpush1.msra.mxu0 0.0
        %1974 = vmatprep.subr.mxu0 0.0
        %1975 = vmatpush1.msra.mxu0 0.0
        %1976 = vmatprep.subr.mxu0 0.0
        %1977 = vmatpush1.msra.mxu0 0.0
        %1978 = vmatprep.subr.mxu0 0.0
        %1979 = vmatpush1.msra.mxu0 0.0
        %1980 = vmatprep.subr.mxu0 0.0
        %1981 = vmatpush1.msra.mxu0 0.0
        %1982 = vmatprep.subr.mxu0 0.0
        %1983 = vmatpush1.msra.mxu0 0.0
        %1984 = vmatprep.subr.mxu0 0.0
        %1985 = vmatpush1.msra.mxu0 0.0
        %1986 = vmatprep.subr.mxu0 0.0
        %1987 = vmatpush1.msra.mxu0 0.0
        %1988 = vmatprep.subr.mxu0 0.0
        %1989 = vmatpush1.msra.mxu0 0.0
        %1990 = vmatprep.subr.mxu0 0.0
        %1991 = vmatpush1.msra.mxu0 0.0
        %1992 = vmatprep.subr.mxu0 0.0
        %1993 = vmatpush1.msra.mxu0 0.0
        %1994 = vmatprep.subr.mxu0 0.0
        %1995 = vmatpush1.msra.mxu0 0.0
        %1996 = vmatprep.mubr.f32.mxu0 0.0
        %1997 = vmatmul.mubr.f32.gmra.mrb[0].mxu0 %v1790
        %v1998 = vpop.f32.mrb[0].mxu0
        %v1999 = vadd.f32 %v962, %v1998
        %v2000 = vpop.f32.mrb[0].mxu0
        %2001 = vdwg.mxu0
        %v2002 = vadd.f32 %v1784, %v1859
        %v2003 = vxor.u32 %v2002, 2147483648
        %v2004 = vmul.f32 %v2003, 1.442695
        %v2005 = vpow.pop %v2004
        %v2006 = vadd.f32 %v2005, 1.0
        %v2007 = vrcp.pop %v2006
        %v2008 = vmul.f32 1.0, %v2007
        %v2009 = vadd.f32 %v1786, %v1929
        %v2010 = vxor.u32 %v2009, 2147483648
        %v2011 = vmul.f32 %v2010, 1.442695
        %v2012 = vpow.pop %v2011
        %v2013 = vadd.f32 %v2012, 1.0
        %v2014 = vrcp.pop %v2013
        %v2015 = vmul.f32 1.0, %v2014
        %v2016 = vmul.f32 %v2008, %v1999
        %v2017 = vadd.f32 %v1788, %v2016
        %v2018 = vtanh.pop %v2017
        %v2019 = vsub.f32 1.0, %v2015
        %v2020 = vmul.f32 %v2019, %v2018
        %v2021 = vmul.f32 %v2015, %v1538
        %v2022 = vadd.f32 %v2020, %v2021
        %s2023 = scalar_lea.vmem %s495, 2
        %2024 = vst.msk [vmem:[%s2023] sm:$0x3] %vm795, %v2022
        %s2025 = scalar_lea.vmem %s435, 6 [#allocation4]
        %v2026 = vld [vmem:[%s2025] sm:$0x3]
        %s2027 = scalar_lea.vmem %s435, 14 [#allocation4]
        %v2028 = vld [vmem:[%s2027] sm:$0x3]
        %s2029 = scalar_lea.vmem %s435, 22 [#allocation4]
        %v2030 = vld [vmem:[%s2029] sm:$0x3]
        %v2032 = vsel %vm548, %v1780, 0
        %2034 = vmatprep.subr.mxu0 0.0
        %2035 = vmatpush1.msra.mxu0 %v505
        %2036 = vmatprep.subr.mxu0 0.0
        %2037 = vmatpush1.msra.mxu0 %v506
        %2038 = vmatprep.subr.mxu0 0.0
        %2039 = vmatpush1.msra.mxu0 %v507
        %2040 = vmatprep.subr.mxu0 0.0
        %2041 = vmatpush1.msra.mxu0 %v508
        %2042 = vmatprep.subr.mxu0 0.0
        %2043 = vmatpush1.msra.mxu0 0.0
        %2044 = vmatprep.subr.mxu0 0.0
        %2045 = vmatpush1.msra.mxu0 0.0
        %2046 = vmatprep.subr.mxu0 0.0
        %2047 = vmatpush1.msra.mxu0 0.0
        %2048 = vmatprep.subr.mxu0 0.0
        %2049 = vmatpush1.msra.mxu0 0.0
        %2050 = vmatprep.subr.mxu0 0.0
        %2051 = vmatpush1.msra.mxu0 0.0
        %2052 = vmatprep.subr.mxu0 0.0
        %2053 = vmatpush1.msra.mxu0 0.0
        %2054 = vmatprep.subr.mxu0 0.0
        %2055 = vmatpush1.msra.mxu0 0.0
        %2056 = vmatprep.subr.mxu0 0.0
        %2057 = vmatpush1.msra.mxu0 0.0
        %2058 = vmatprep.subr.mxu0 0.0
        %2059 = vmatpush1.msra.mxu0 0.0
        %2060 = vmatprep.subr.mxu0 0.0
        %2061 = vmatpush1.msra.mxu0 0.0
        %2062 = vmatprep.subr.mxu0 0.0
        %2063 = vmatpush1.msra.mxu0 0.0
        %2064 = vmatprep.subr.mxu0 0.0
        %2065 = vmatpush1.msra.mxu0 0.0
        %2066 = vmatprep.subr.mxu0 0.0
        %2067 = vmatpush1.msra.mxu0 0.0
        %2068 = vmatprep.subr.mxu0 0.0
        %2069 = vmatpush1.msra.mxu0 0.0
        %2070 = vmatprep.subr.mxu0 0.0
        %2071 = vmatpush1.msra.mxu0 0.0
        %2072 = vmatprep.subr.mxu0 0.0
        %2073 = vmatpush1.msra.mxu0 0.0
        %2074 = vmatprep.subr.mxu0 0.0
        %2075 = vmatpush1.msra.mxu0 0.0
        %2076 = vmatprep.subr.mxu0 0.0
        %2077 = vmatpush1.msra.mxu0 0.0
        %2078 = vmatprep.subr.mxu0 0.0
        %2079 = vmatpush1.msra.mxu0 0.0
        %2080 = vmatprep.subr.mxu0 0.0
        %2081 = vmatpush1.msra.mxu0 0.0
        %2082 = vmatprep.subr.mxu0 0.0
        %2083 = vmatpush1.msra.mxu0 0.0
        %2084 = vmatprep.subr.mxu0 0.0
        %2085 = vmatpush1.msra.mxu0 0.0
        %2086 = vmatprep.subr.mxu0 0.0
        %2087 = vmatpush1.msra.mxu0 0.0
        %2088 = vmatprep.subr.mxu0 0.0
        %2089 = vmatpush1.msra.mxu0 0.0
        %2090 = vmatprep.subr.mxu0 0.0
        %2091 = vmatpush1.msra.mxu0 0.0
        %2092 = vmatprep.subr.mxu0 0.0
        %2093 = vmatpush1.msra.mxu0 0.0
        %2094 = vmatprep.subr.mxu0 0.0
        %2095 = vmatpush1.msra.mxu0 0.0
        %2096 = vmatprep.subr.mxu0 0.0
        %2097 = vmatpush1.msra.mxu0 0.0
        %2098 = vmatprep.mubr.f32.mxu0 0.0
        %2099 = vmatmul.mubr.f32.gmra.mrb[0].mxu0 %v2032
        %v2100 = vpop.f32.mrb[0].mxu0
        %v2101 = vadd.f32 %v546, %v2100
        %v2102 = vpop.f32.mrb[0].mxu0
        %2103 = vdwg.mxu0
        %2104 = vmatprep.subr.mxu0 0.0
        %2105 = vmatpush1.msra.mxu0 %v509
        %2106 = vmatprep.subr.mxu0 0.0
        %2107 = vmatpush1.msra.mxu0 %v510
        %2108 = vmatprep.subr.mxu0 0.0
        %2109 = vmatpush1.msra.mxu0 %v511
        %2110 = vmatprep.subr.mxu0 0.0
        %2111 = vmatpush1.msra.mxu0 %v512
        %2112 = vmatprep.subr.mxu0 0.0
        %2113 = vmatpush1.msra.mxu0 0.0
        %2114 = vmatprep.subr.mxu0 0.0
        %2115 = vmatpush1.msra.mxu0 0.0
        %2116 = vmatprep.subr.mxu0 0.0
        %2117 = vmatpush1.msra.mxu0 0.0
        %2118 = vmatprep.subr.mxu0 0.0
        %2119 = vmatpush1.msra.mxu0 0.0
        %2120 = vmatprep.subr.mxu0 0.0
        %2121 = vmatpush1.msra.mxu0 0.0
        %2122 = vmatprep.subr.mxu0 0.0
        %2123 = vmatpush1.msra.mxu0 0.0
        %2124 = vmatprep.subr.mxu0 0.0
        %2125 = vmatpush1.msra.mxu0 0.0
        %2126 = vmatprep.subr.mxu0 0.0
        %2127 = vmatpush1.msra.mxu0 0.0
        %2128 = vmatprep.subr.mxu0 0.0
        %2129 = vmatpush1.msra.mxu0 0.0
        %2130 = vmatprep.subr.mxu0 0.0
        %2131 = vmatpush1.msra.mxu0 0.0
        %2132 = vmatprep.subr.mxu0 0.0
        %2133 = vmatpush1.msra.mxu0 0.0
        %2134 = vmatprep.subr.mxu0 0.0
        %2135 = vmatpush1.msra.mxu0 0.0
        %2136 = vmatprep.subr.mxu0 0.0
        %2137 = vmatpush1.msra.mxu0 0.0
        %2138 = vmatprep.subr.mxu0 0.0
        %2139 = vmatpush1.msra.mxu0 0.0
        %2140 = vmatprep.subr.mxu0 0.0
        %2141 = vmatpush1.msra.mxu0 0.0
        %2142 = vmatprep.subr.mxu0 0.0
        %2143 = vmatpush1.msra.mxu0 0.0
        %2144 = vmatprep.subr.mxu0 0.0
        %2145 = vmatpush1.msra.mxu0 0.0
        %2146 = vmatprep.subr.mxu0 0.0
        %2147 = vmatpush1.msra.mxu0 0.0
        %2148 = vmatprep.subr.mxu0 0.0
        %2149 = vmatpush1.msra.mxu0 0.0
        %2150 = vmatprep.subr.mxu0 0.0
        %2151 = vmatpush1.msra.mxu0 0.0
        %2152 = vmatprep.subr.mxu0 0.0
        %2153 = vmatpush1.msra.mxu0 0.0
        %2154 = vmatprep.subr.mxu0 0.0
        %2155 = vmatpush1.msra.mxu0 0.0
        %2156 = vmatprep.subr.mxu0 0.0
        %2157 = vmatpush1.msra.mxu0 0.0
        %2158 = vmatprep.subr.mxu0 0.0
        %2159 = vmatpush1.msra.mxu0 0.0
        %2160 = vmatprep.subr.mxu0 0.0
        %2161 = vmatpush1.msra.mxu0 0.0
        %2162 = vmatprep.subr.mxu0 0.0
        %2163 = vmatpush1.msra.mxu0 0.0
        %2164 = vmatprep.subr.mxu0 0.0
        %2165 = vmatpush1.msra.mxu0 0.0
        %2166 = vmatprep.subr.mxu0 0.0
        %2167 = vmatpush1.msra.mxu0 0.0
        %2168 = vmatprep.mubr.f32.mxu0 0.0
        %2169 = vmatmul.mubr.f32.gmra.mrb[0].mxu0 %v2032
        %v2170 = vpop.f32.mrb[0].mxu0
        %v2171 = vadd.f32 %v626, %v2170
        %v2172 = vpop.f32.mrb[0].mxu0
        %2173 = vdwg.mxu0
        %2174 = vmatprep.subr.mxu0 0.0
        %2175 = vmatpush1.msra.mxu0 %v513
        %2176 = vmatprep.subr.mxu0 0.0
        %2177 = vmatpush1.msra.mxu0 %v514
        %2178 = vmatprep.subr.mxu0 0.0
        %2179 = vmatpush1.msra.mxu0 %v515
        %2180 = vmatprep.subr.mxu0 0.0
        %2181 = vmatpush1.msra.mxu0 %v516
        %2182 = vmatprep.subr.mxu0 0.0
        %2183 = vmatpush1.msra.mxu0 0.0
        %2184 = vmatprep.subr.mxu0 0.0
        %2185 = vmatpush1.msra.mxu0 0.0
        %2186 = vmatprep.subr.mxu0 0.0
        %2187 = vmatpush1.msra.mxu0 0.0
        %2188 = vmatprep.subr.mxu0 0.0
        %2189 = vmatpush1.msra.mxu0 0.0
        %2190 = vmatprep.subr.mxu0 0.0
        %2191 = vmatpush1.msra.mxu0 0.0
        %2192 = vmatprep.subr.mxu0 0.0
        %2193 = vmatpush1.msra.mxu0 0.0
        %2194 = vmatprep.subr.mxu0 0.0
        %2195 = vmatpush1.msra.mxu0 0.0
        %2196 = vmatprep.subr.mxu0 0.0
        %2197 = vmatpush1.msra.mxu0 0.0
        %2198 = vmatprep.subr.mxu0 0.0
        %2199 = vmatpush1.msra.mxu0 0.0
        %2200 = vmatprep.subr.mxu0 0.0
        %2201 = vmatpush1.msra.mxu0 0.0
        %2202 = vmatprep.subr.mxu0 0.0
        %2203 = vmatpush1.msra.mxu0 0.0
        %2204 = vmatprep.subr.mxu0 0.0
        %2205 = vmatpush1.msra.mxu0 0.0
        %2206 = vmatprep.subr.mxu0 0.0
        %2207 = vmatpush1.msra.mxu0 0.0
        %2208 = vmatprep.subr.mxu0 0.0
        %2209 = vmatpush1.msra.mxu0 0.0
        %2210 = vmatprep.subr.mxu0 0.0
        %2211 = vmatpush1.msra.mxu0 0.0
        %2212 = vmatprep.subr.mxu0 0.0
        %2213 = vmatpush1.msra.mxu0 0.0
        %2214 = vmatprep.subr.mxu0 0.0
        %2215 = vmatpush1.msra.mxu0 0.0
        %2216 = vmatprep.subr.mxu0 0.0
        %2217 = vmatpush1.msra.mxu0 0.0
        %2218 = vmatprep.subr.mxu0 0.0
        %2219 = vmatpush1.msra.mxu0 0.0
        %2220 = vmatprep.subr.mxu0 0.0
        %2221 = vmatpush1.msra.mxu0 0.0
        %2222 = vmatprep.subr.mxu0 0.0
        %2223 = vmatpush1.msra.mxu0 0.0
        %2224 = vmatprep.subr.mxu0 0.0
        %2225 = vmatpush1.msra.mxu0 0.0
        %2226 = vmatprep.subr.mxu0 0.0
        %2227 = vmatpush1.msra.mxu0 0.0
        %2228 = vmatprep.subr.mxu0 0.0
        %2229 = vmatpush1.msra.mxu0 0.0
        %2230 = vmatprep.subr.mxu0 0.0
        %2231 = vmatpush1.msra.mxu0 0.0
        %2232 = vmatprep.subr.mxu0 0.0
        %2233 = vmatpush1.msra.mxu0 0.0
        %2234 = vmatprep.subr.mxu0 0.0
        %2235 = vmatpush1.msra.mxu0 0.0
        %2236 = vmatprep.subr.mxu0 0.0
        %2237 = vmatpush1.msra.mxu0 0.0
        %2238 = vmatprep.mubr.f32.mxu0 0.0
        %2239 = vmatmul.mubr.f32.gmra.mrb[0].mxu0 %v2032
        %v2240 = vpop.f32.mrb[0].mxu0
        %v2241 = vadd.f32 %v702, %v2240
        %v2242 = vpop.f32.mrb[0].mxu0
        %2243 = vdwg.mxu0
        %v2244 = vadd.f32 %v2026, %v2101
        %v2245 = vxor.u32 %v2244, 2147483648
        %v2246 = vmul.f32 %v2245, 1.442695
        %v2247 = vpow.pop %v2246
        %v2248 = vadd.f32 %v2247, 1.0
        %v2249 = vrcp.pop %v2248
        %v2250 = vmul.f32 1.0, %v2249
        %v2251 = vadd.f32 %v2028, %v2171
        %v2252 = vxor.u32 %v2251, 2147483648
        %v2253 = vmul.f32 %v2252, 1.442695
        %v2254 = vpow.pop %v2253
        %v2255 = vadd.f32 %v2254, 1.0
        %v2256 = vrcp.pop %v2255
        %v2257 = vmul.f32 1.0, %v2256
        %v2258 = vmul.f32 %v2250, %v2241
        %v2259 = vadd.f32 %v2030, %v2258
        %v2260 = vtanh.pop %v2259
        %v2261 = vsub.f32 1.0, %v2257
        %v2262 = vmul.f32 %v2261, %v2260
        %v2263 = vmul.f32 %v2257, %v1780
        %v2264 = vadd.f32 %v2262, %v2263
        %s2265 = scalar_lea.vmem %s488, 6
        %2266 = vst.msk [vmem:[%s2265] sm:$0x3] %vm795, %v2264
        %v2267 = vld [vmem:[%s442] sm:$0x3]
        %s2268 = scalar_lea.vmem %s442, 8 [#allocation5]
        %v2269 = vld [vmem:[%s2268] sm:$0x3]
        %s2270 = scalar_lea.vmem %s442, 16 [#allocation5]
        %v2271 = vld [vmem:[%s2270] sm:$0x3]
        %v2273 = vsel %vm548, %v2022, 0
        %2275 = vmatprep.subr.mxu0 0.0
        %2276 = vmatpush1.msra.mxu0 %v517
        %2277 = vmatprep.subr.mxu0 0.0
        %2278 = vmatpush1.msra.mxu0 %v518
        %2279 = vmatprep.subr.mxu0 0.0
        %2280 = vmatpush1.msra.mxu0 %v519
        %2281 = vmatprep.subr.mxu0 0.0
        %2282 = vmatpush1.msra.mxu0 %v520
        %2283 = vmatprep.subr.mxu0 0.0
        %2284 = vmatpush1.msra.mxu0 0.0
        %2285 = vmatprep.subr.mxu0 0.0
        %2286 = vmatpush1.msra.mxu0 0.0
        %2287 = vmatprep.subr.mxu0 0.0
        %2288 = vmatpush1.msra.mxu0 0.0
        %2289 = vmatprep.subr.mxu0 0.0
        %2290 = vmatpush1.msra.mxu0 0.0
        %2291 = vmatprep.subr.mxu0 0.0
        %2292 = vmatpush1.msra.mxu0 0.0
        %2293 = vmatprep.subr.mxu0 0.0
        %2294 = vmatpush1.msra.mxu0 0.0
        %2295 = vmatprep.subr.mxu0 0.0
        %2296 = vmatpush1.msra.mxu0 0.0
        %2297 = vmatprep.subr.mxu0 0.0
        %2298 = vmatpush1.msra.mxu0 0.0
        %2299 = vmatprep.subr.mxu0 0.0
        %2300 = vmatpush1.msra.mxu0 0.0
        %2301 = vmatprep.subr.mxu0 0.0
        %2302 = vmatpush1.msra.mxu0 0.0
        %2303 = vmatprep.subr.mxu0 0.0
        %2304 = vmatpush1.msra.mxu0 0.0
        %2305 = vmatprep.subr.mxu0 0.0
        %2306 = vmatpush1.msra.mxu0 0.0
        %2307 = vmatprep.subr.mxu0 0.0
        %2308 = vmatpush1.msra.mxu0 0.0
        %2309 = vmatprep.subr.mxu0 0.0
        %2310 = vmatpush1.msra.mxu0 0.0
        %2311 = vmatprep.subr.mxu0 0.0
        %2312 = vmatpush1.msra.mxu0 0.0
        %2313 = vmatprep.subr.mxu0 0.0
        %2314 = vmatpush1.msra.mxu0 0.0
        %2315 = vmatprep.subr.mxu0 0.0
        %2316 = vmatpush1.msra.mxu0 0.0
        %2317 = vmatprep.subr.mxu0 0.0
        %2318 = vmatpush1.msra.mxu0 0.0
        %2319 = vmatprep.subr.mxu0 0.0
        %2320 = vmatpush1.msra.mxu0 0.0
        %2321 = vmatprep.subr.mxu0 0.0
        %2322 = vmatpush1.msra.mxu0 0.0
        %2323 = vmatprep.subr.mxu0 0.0
        %2324 = vmatpush1.msra.mxu0 0.0
        %2325 = vmatprep.subr.mxu0 0.0
        %2326 = vmatpush1.msra.mxu0 0.0
        %2327 = vmatprep.subr.mxu0 0.0
        %2328 = vmatpush1.msra.mxu0 0.0
        %2329 = vmatprep.subr.mxu0 0.0
        %2330 = vmatpush1.msra.mxu0 0.0
        %2331 = vmatprep.subr.mxu0 0.0
        %2332 = vmatpush1.msra.mxu0 0.0
        %2333 = vmatprep.subr.mxu0 0.0
        %2334 = vmatpush1.msra.mxu0 0.0
        %2335 = vmatprep.subr.mxu0 0.0
        %2336 = vmatpush1.msra.mxu0 0.0
        %2337 = vmatprep.subr.mxu0 0.0
        %2338 = vmatpush1.msra.mxu0 0.0
        %2339 = vmatprep.mubr.f32.mxu0 0.0
        %2340 = vmatmul.mubr.f32.gmra.mrb[0].mxu0 %v2273
        %v2341 = vpop.f32.mrb[0].mxu0
        %v2342 = vadd.f32 %v807, %v2341
        %v2343 = vpop.f32.mrb[0].mxu0
        %2344 = vdwg.mxu0
        %2345 = vmatprep.subr.mxu0 0.0
        %2346 = vmatpush1.msra.mxu0 %v521
        %2347 = vmatprep.subr.mxu0 0.0
        %2348 = vmatpush1.msra.mxu0 %v522
        %2349 = vmatprep.subr.mxu0 0.0
        %2350 = vmatpush1.msra.mxu0 %v523
        %2351 = vmatprep.subr.mxu0 0.0
        %2352 = vmatpush1.msra.mxu0 %v524
        %2353 = vmatprep.subr.mxu0 0.0
        %2354 = vmatpush1.msra.mxu0 0.0
        %2355 = vmatprep.subr.mxu0 0.0
        %2356 = vmatpush1.msra.mxu0 0.0
        %2357 = vmatprep.subr.mxu0 0.0
        %2358 = vmatpush1.msra.mxu0 0.0
        %2359 = vmatprep.subr.mxu0 0.0
        %2360 = vmatpush1.msra.mxu0 0.0
        %2361 = vmatprep.subr.mxu0 0.0
        %2362 = vmatpush1.msra.mxu0 0.0
        %2363 = vmatprep.subr.mxu0 0.0
        %2364 = vmatpush1.msra.mxu0 0.0
        %2365 = vmatprep.subr.mxu0 0.0
        %2366 = vmatpush1.msra.mxu0 0.0
        %2367 = vmatprep.subr.mxu0 0.0
        %2368 = vmatpush1.msra.mxu0 0.0
        %2369 = vmatprep.subr.mxu0 0.0
        %2370 = vmatpush1.msra.mxu0 0.0
        %2371 = vmatprep.subr.mxu0 0.0
        %2372 = vmatpush1.msra.mxu0 0.0
        %2373 = vmatprep.subr.mxu0 0.0
        %2374 = vmatpush1.msra.mxu0 0.0
        %2375 = vmatprep.subr.mxu0 0.0
        %2376 = vmatpush1.msra.mxu0 0.0
        %2377 = vmatprep.subr.mxu0 0.0
        %2378 = vmatpush1.msra.mxu0 0.0
        %2379 = vmatprep.subr.mxu0 0.0
        %2380 = vmatpush1.msra.mxu0 0.0
        %2381 = vmatprep.subr.mxu0 0.0
        %2382 = vmatpush1.msra.mxu0 0.0
        %2383 = vmatprep.subr.mxu0 0.0
        %2384 = vmatpush1.msra.mxu0 0.0
        %2385 = vmatprep.subr.mxu0 0.0
        %2386 = vmatpush1.msra.mxu0 0.0
        %2387 = vmatprep.subr.mxu0 0.0
        %2388 = vmatpush1.msra.mxu0 0.0
        %2389 = vmatprep.subr.mxu0 0.0
        %2390 = vmatpush1.msra.mxu0 0.0
        %2391 = vmatprep.subr.mxu0 0.0
        %2392 = vmatpush1.msra.mxu0 0.0
        %2393 = vmatprep.subr.mxu0 0.0
        %2394 = vmatpush1.msra.mxu0 0.0
        %2395 = vmatprep.subr.mxu0 0.0
        %2396 = vmatpush1.msra.mxu0 0.0
        %2397 = vmatprep.subr.mxu0 0.0
        %2398 = vmatpush1.msra.mxu0 0.0
        %2399 = vmatprep.subr.mxu0 0.0
        %2400 = vmatpush1.msra.mxu0 0.0
        %2401 = vmatprep.subr.mxu0 0.0
        %2402 = vmatpush1.msra.mxu0 0.0
        %2403 = vmatprep.subr.mxu0 0.0
        %2404 = vmatpush1.msra.mxu0 0.0
        %2405 = vmatprep.subr.mxu0 0.0
        %2406 = vmatpush1.msra.mxu0 0.0
        %2407 = vmatprep.subr.mxu0 0.0
        %2408 = vmatpush1.msra.mxu0 0.0
        %2409 = vmatprep.mubr.f32.mxu0 0.0
        %2410 = vmatmul.mubr.f32.gmra.mrb[0].mxu0 %v2273
        %v2411 = vpop.f32.mrb[0].mxu0
        %v2412 = vadd.f32 %v886, %v2411
        %v2413 = vpop.f32.mrb[0].mxu0
        %2414 = vdwg.mxu0
        %2415 = vmatprep.subr.mxu0 0.0
        %2416 = vmatpush1.msra.mxu0 %v525
        %2417 = vmatprep.subr.mxu0 0.0
        %2418 = vmatpush1.msra.mxu0 %v526
        %2419 = vmatprep.subr.mxu0 0.0
        %2420 = vmatpush1.msra.mxu0 %v527
        %2421 = vmatprep.subr.mxu0 0.0
        %2422 = vmatpush1.msra.mxu0 %v528
        %2423 = vmatprep.subr.mxu0 0.0
        %2424 = vmatpush1.msra.mxu0 0.0
        %2425 = vmatprep.subr.mxu0 0.0
        %2426 = vmatpush1.msra.mxu0 0.0
        %2427 = vmatprep.subr.mxu0 0.0
        %2428 = vmatpush1.msra.mxu0 0.0
        %2429 = vmatprep.subr.mxu0 0.0
        %2430 = vmatpush1.msra.mxu0 0.0
        %2431 = vmatprep.subr.mxu0 0.0
        %2432 = vmatpush1.msra.mxu0 0.0
        %2433 = vmatprep.subr.mxu0 0.0
        %2434 = vmatpush1.msra.mxu0 0.0
        %2435 = vmatprep.subr.mxu0 0.0
        %2436 = vmatpush1.msra.mxu0 0.0
        %2437 = vmatprep.subr.mxu0 0.0
        %2438 = vmatpush1.msra.mxu0 0.0
        %2439 = vmatprep.subr.mxu0 0.0
        %2440 = vmatpush1.msra.mxu0 0.0
        %2441 = vmatprep.subr.mxu0 0.0
        %2442 = vmatpush1.msra.mxu0 0.0
        %2443 = vmatprep.subr.mxu0 0.0
        %2444 = vmatpush1.msra.mxu0 0.0
        %2445 = vmatprep.subr.mxu0 0.0
        %2446 = vmatpush1.msra.mxu0 0.0
        %2447 = vmatprep.subr.mxu0 0.0
        %2448 = vmatpush1.msra.mxu0 0.0
        %2449 = vmatprep.subr.mxu0 0.0
        %2450 = vmatpush1.msra.mxu0 0.0
        %2451 = vmatprep.subr.mxu0 0.0
        %2452 = vmatpush1.msra.mxu0 0.0
        %2453 = vmatprep.subr.mxu0 0.0
        %2454 = vmatpush1.msra.mxu0 0.0
        %2455 = vmatprep.subr.mxu0 0.0
        %2456 = vmatpush1.msra.mxu0 0.0
        %2457 = vmatprep.subr.mxu0 0.0
        %2458 = vmatpush1.msra.mxu0 0.0
        %2459 = vmatprep.subr.mxu0 0.0
        %2460 = vmatpush1.msra.mxu0 0.0
        %2461 = vmatprep.subr.mxu0 0.0
        %2462 = vmatpush1.msra.mxu0 0.0
        %2463 = vmatprep.subr.mxu0 0.0
        %2464 = vmatpush1.msra.mxu0 0.0
        %2465 = vmatprep.subr.mxu0 0.0
        %2466 = vmatpush1.msra.mxu0 0.0
        %2467 = vmatprep.subr.mxu0 0.0
        %2468 = vmatpush1.msra.mxu0 0.0
        %2469 = vmatprep.subr.mxu0 0.0
        %2470 = vmatpush1.msra.mxu0 0.0
        %2471 = vmatprep.subr.mxu0 0.0
        %2472 = vmatpush1.msra.mxu0 0.0
        %2473 = vmatprep.subr.mxu0 0.0
        %2474 = vmatpush1.msra.mxu0 0.0
        %2475 = vmatprep.subr.mxu0 0.0
        %2476 = vmatpush1.msra.mxu0 0.0
        %2477 = vmatprep.subr.mxu0 0.0
        %2478 = vmatpush1.msra.mxu0 0.0
        %2479 = vmatprep.mubr.f32.mxu0 0.0
        %2480 = vmatmul.mubr.f32.gmra.mrb[0].mxu0 %v2273
        %v2481 = vpop.f32.mrb[0].mxu0
        %v2482 = vadd.f32 %v962, %v2481
        %v2483 = vpop.f32.mrb[0].mxu0
        %2484 = vdwg.mxu0
        %v2485 = vadd.f32 %v2267, %v2342
        %v2486 = vxor.u32 %v2485, 2147483648
        %v2487 = vmul.f32 %v2486, 1.442695
        %v2488 = vpow.pop %v2487
        %v2489 = vadd.f32 %v2488, 1.0
        %v2490 = vrcp.pop %v2489
        %v2491 = vmul.f32 1.0, %v2490
        %v2492 = vadd.f32 %v2269, %v2412
        %v2493 = vxor.u32 %v2492, 2147483648
        %v2494 = vmul.f32 %v2493, 1.442695
        %v2495 = vpow.pop %v2494
        %v2496 = vadd.f32 %v2495, 1.0
        %v2497 = vrcp.pop %v2496
        %v2498 = vmul.f32 1.0, %v2497
        %v2499 = vmul.f32 %v2491, %v2482
        %v2500 = vadd.f32 %v2271, %v2499
        %v2501 = vtanh.pop %v2500
        %v2502 = vsub.f32 1.0, %v2498
        %v2503 = vmul.f32 %v2502, %v2501
        %v2504 = vmul.f32 %v2498, %v2022
        %v2505 = vadd.f32 %v2503, %v2504
        %2506 = vst.msk [vmem:[%s495] sm:$0x3] %vm795, %v2505
        %2507 = vst.msk [vmem:[#allocation2] sm:$0x3] %vm795, %v2264
        %2508 = vst.msk [vmem:[#allocation3] sm:$0x3] %vm795, %v2505
        %s2509 = smul.u32 4, %s19
        %p2510 = scmp.lt.s32.totalorder %s2509, 7
        %s2511 = scalar_select %p2510, %s2509, 7
        %s2512 = smul.addr %s2511, 2
        %s2513 = scalar_lea.vmem %s6, %s2512
        %s2514 = ssub.s32 1, %s19
        %s2515 = smul.u32 4, %s2514
        %p2516 = scmp.lt.s32.totalorder %s2515, 7
        %s2517 = scalar_select %p2516, %s2515, 7
        %s2518 = smul.addr %s2517, 2
        %s2519 = scalar_lea.vmem %s7, %s2518
        // Predicated region
        $region131: #{extractive_model_forward.6} parent=117 // pred_check
          %p2520 = pneg %p175
        $region132: #{extractive_model_forward.6} parent=117 // pred_check_branch
          %2522 = sbr.rel (%p2520) target = $region134
        $region133: #{extractive_model_forward.6} parent=117 // pred_region
          %s2523 = smul.u32 4, %s19
        $region134: #{extractive_model_forward.6} parent=117 // pred_fallthru
          _
        // Predicated region
        $region135: #{extractive_model_forward.6} parent=117 // pred_check
          %p2524 = pneg %p203
        $region136: #{extractive_model_forward.6} parent=117 // pred_check_branch
          %2526 = sbr.rel (%p2524) target = $region138
        $region137: #{extractive_model_forward.6} parent=117 // pred_region
          %s2527 = ssub.s32 1, %s19
          %s2528 = smul.u32 4, %s2527
        $region138: #{extractive_model_forward.6} parent=117 // pred_fallthru
          _
      $region118: #{extractive_model_forward.6} parent=5 // pred_fallthru
        _
      %p2529 = scmp.le.s32.totalorder 2, %s14
      // Predicated region
      $region139: #{extractive_model_forward.6} parent=5 // pred_check
        %p2530 = pneg %p2529
      $region140: #{extractive_model_forward.6} parent=5 // pred_check_branch
        %2532 = sbr.rel (%p2530) target = $region142
      $region141: #{extractive_model_forward.6} parent=5 // pred_region
        %s2533 = ssub.s32 %s14, 2
        // Predicated region
        $region143: #{extractive_model_forward.6} parent=141 // pred_check
          %p2534 = pneg %p181
        $region144: #{extractive_model_forward.6} parent=141 // pred_check_branch
          %2536 = sbr.rel (%p2534) target = $region146
        $region145: #{extractive_model_forward.6} parent=141 // pred_region
          %s2537 = smul.u32 4, %s20
          %p2538 = scmp.lt.s32.totalorder %s2537, 7
          %s2539 = scalar_select %p2538, %s2537, 7
          %s2540 = smul.addr %s2539, 2
          %s2541 = scalar_lea.vmem %s6, %s2540
        $region146: #{extractive_model_forward.6} parent=141 // pred_fallthru
          _
        // Predicated region
        $region147: #{extractive_model_forward.6} parent=141 // pred_check
          %p2542 = pneg %p209
        $region148: #{extractive_model_forward.6} parent=141 // pred_check_branch
          %2544 = sbr.rel (%p2542) target = $region150
        $region149: #{extractive_model_forward.6} parent=141 // pred_region
          %s2545 = ssub.s32 1, %s20
          %s2546 = smul.u32 4, %s2545
          %p2547 = scmp.lt.s32.totalorder %s2546, 7
          %s2548 = scalar_select %p2547, %s2546, 7
          %s2549 = smul.addr %s2548, 2
          %s2550 = scalar_lea.vmem %s7, %s2549
        $region150: #{extractive_model_forward.6} parent=141 // pred_fallthru
          _
      $region142: #{extractive_model_forward.6} parent=5 // pred_fallthru
        _
    $region6: #{extractive_model_forward.6} parent=1 // loop_footer
      %s18 = sadd.s32 1, %s14
    $region7: #{extractive_model_forward.6} parent=1 // loop_footer_branch
      %13 = sbr.rel target = $region3
    $region8: #{extractive_model_forward.6} parent=1 // loop_exit
      _

</llo_original>
